<compile_context>
chip_gen: v5e
topology: v5e:2x2
jax: 0.10.0
libtpu: 0.0.40
codegen_flags: <defaults>
</compile_context>

<pallas_src>
import numpy as np
import jax
import jax.numpy as jnp
from jax import lax
from jax.experimental import pallas as pl
from jax.experimental.pallas import tpu as pltpu


# ----------------------------- static helpers ------------------------------

def _pool_out_dim(d, k=3, s=2):
    """PyTorch AvgPool2d(k, s, ceil_mode=True, padding=0) output size."""
    o = int(np.ceil((d - k) / s)) + 1
    if (o - 1) * s >= d:          # ceil_mode rule: last window must start in-bounds
        o -= 1
    return o


def _conv_tap_masks(H0, W0, d, Hg, Wg):
    """(9, H0*W0) f32 validity masks for dilated 3x3 conv taps (dy-major order).

    Only needs to be correct at 'real' positions (h, w multiples of d within the
    level grid); elsewhere values are finite don't-cares never read downstream."""
    h = np.arange(H0)[:, None]
    w = np.arange(W0)[None, :]
    masks = []
    for dy in (-1, 0, 1):
        for dx in (-1, 0, 1):
            ok = ((h + d * dy >= 0) & (h + d * dy <= d * (Hg - 1)) &
                  (w + d * dx >= 0) & (w + d * dx <= d * (Wg - 1)))
            masks.append(ok.astype(np.float32).reshape(-1))
    return np.stack(masks, axis=0)


def _pool_tap_weights(H0, W0, d, Hg_in, Wg_in):
    """(9, H0*W0) f32 weights (validity/count) for the 3x3 stride-2 ceil-mode
    avg-pool taps, consuming a level with dilation d and grid (Hg_in, Wg_in).

    Divisor is the clipped window size (matches torch AvgPool2d(3,2,ceil_mode=True,
    padding=0) edge-window semantics)."""
    h = np.arange(H0)[:, None]
    w = np.arange(W0)[None, :]
    row_ok = [(h + d * dy >= 0) & (h + d * dy <= d * (Hg_in - 1)) for dy in (0, 1, 2)]
    col_ok = [(w + d * dx >= 0) & (w + d * dx <= d * (Wg_in - 1)) for dx in (0, 1, 2)]
    nrow = sum(r.astype(np.int64) for r in row_ok)
    ncol = sum(c.astype(np.int64) for c in col_ok)
    cnt = np.maximum(nrow * ncol, 1).astype(np.float32)
    ws = []
    for dy in range(3):
        for dx in range(3):
            ok = row_ok[dy] & col_ok[dx]
            ws.append(np.where(ok, 1.0 / cnt, 0.0).astype(np.float32).reshape(-1))
    return np.stack(ws, axis=0)


def _mean_mask(H0, W0, d, Hf, Wf):
    """(1, H0*W0) f32 mask selecting the real final-scale positions with weight
    1/(Hf*Wf): spatial mean == masked lane reduction."""
    h = np.arange(H0)[:, None]
    w = np.arange(W0)[None, :]
    real = ((h % d == 0) & (h // d < Hf) & (w % d == 0) & (w // d < Wf))
    return np.where(real, 1.0 / (Hf * Wf), 0.0).astype(np.float32).reshape(1, -1)


# --------------------------- fused Pallas kernel ----------------------------

def _build_kernel(layer_cfg, dils, W0, L0, Mpad, latent_dim):
    """layer_cfg: tuple per block of tuple of (Cin, Cout); dils: per-block dilation."""
    n_blocks = len(layer_cfg)
    n_layers = sum(len(b) for b in layer_cfg)
    n_pools = n_blocks - 1

    conv_offs = tuple(
        tuple(dils[bi] * (dy * W0 + dx) for dy in (-1, 0, 1) for dx in (-1, 0, 1))
        for bi in range(n_blocks))
    pool_offs = tuple(
        tuple(dils[bi - 1] * (dy * W0 + dx) for dy in (0, 1, 2) for dx in (0, 1, 2))
        for bi in range(1, n_blocks))

    def kernel(*refs):
        it = iter(refs)
        x_ref = next(it)                                    # (1, C0, L0)
        w_refs = [next(it) for _ in range(n_layers)]        # (Cout, 9*Cin) bf16
        b_refs = [next(it) for _ in range(n_layers)]        # (Cout, 1) f32
        cmask_refs = [next(it) for _ in range(n_blocks)]    # (9, L0) f32
        pmask_refs = [next(it) for _ in range(n_pools)]     # (9, L0) f32
        mean_ref = next(it)                                 # (1, L0) f32
        hw_ref = next(it)                                   # (2*latent, Cf) f32
        hb_ref = next(it)                                   # (2*latent, 1) f32
        eps_ref = next(it)                                  # (1, latent, 1) f32
        z_ref = next(it)                                    # (1, latent, 1) f32
        pad_ref = next(it)                                  # (Cmax, L0 + 2*Mpad) f32
        stk_ref = next(it)                                  # (9*Cmax, L0) f32

        # Zero once per image so the halo columns of the shift buffer read 0.
        pad_ref[...] = jnp.zeros_like(pad_ref)

        x = x_ref[0]                                        # (C0, L0) f32
        li = 0
        for bi in range(n_blocks):
            if bi > 0:
                # AvgPool2d(3, 2, ceil_mode=True): 9 dilated taps weighted by
                # precomputed (validity / clipped-count) -- VPU only, no matrix.
                c = layer_cfg[bi][0][0]
                pad_ref[0:c, Mpad:Mpad + L0] = x
                acc = None
                for t, off in enumerate(pool_offs[bi - 1]):
                    xs = pad_ref[0:c, Mpad + off:Mpad + off + L0]
                    term = xs * pmask_refs[bi - 1][t:t + 1, :]
                    acc = term if acc is None else acc + term
                x = acc
            for (cin, cout) in layer_cfg[bi]:
                # 3x3 conv as ONE MXU matmul with K = 9*cin (bf16 in, f32 acc):
                # stack the 9 shifted+masked taps along sublanes.
                pad_ref[0:cin, Mpad:Mpad + L0] = x
                for t, off in enumerate(conv_offs[bi]):
                    xs = pad_ref[0:cin, Mpad + off:Mpad + off + L0]
                    stk_ref[t * cin:(t + 1) * cin, :] = xs * cmask_refs[bi][t:t + 1, :]
                stacked = stk_ref[0:9 * cin, :].astype(jnp.bfloat16)
                acc = jnp.dot(w_refs[li][...], stacked,
                              preferred_element_type=jnp.float32)
                x = jnp.maximum(acc + b_refs[li][...], 0.0)  # (cout, L0) f32
                li += 1

        # Head: project channels first (lane-dense MXU matmul), then the strided
        # spatial mean is a masked lane reduction; split mu / log_sigma; sample.
        y = jnp.dot(hw_ref[...], x, preferred_element_type=jnp.float32)   # (2L, L0)
        mls = jnp.sum(y * mean_ref[...], axis=1, keepdims=True) + hb_ref[...]
        mu = mls[0:latent_dim, :]
        log_sigma = mls[latent_dim:2 * latent_dim, :]
        z = eps_ref[0] * jnp.exp(0.5 * log_sigma) + mu                     # (latent, 1)
        z_ref[0] = z

    return kernel


# -------------------------------- wrapper ------------------------------------

@jax.jit
def _forward_impl(params, x_nchw, eps):
    N, C0, H0, W0 = x_nchw.shape
    L0 = H0 * W0
    latent_dim = params["b_mu"].shape[0]
    n_blocks = len(params["conv_w"])

    # Static per-block geometry: true pooled grid dims + a-trous dilations.
    dils, Hs, Ws = [], [], []
    H, W = H0, W0
    for bi in range(n_blocks):
        if bi > 0:
            H, W = _pool_out_dim(H), _pool_out_dim(W)
        dils.append(2 ** bi)
        Hs.append(H)
        Ws.append(W)

    # Fused conv weights (Cout, 9*Cin) bf16 (tap-major, matching kernel order)
    # and f32 biases.
    layer_cfg, w_args, b_args = [], [], []
    for ws_b, bs_b in zip(params["conv_w"], params["conv_b"]):
        cfg = []
        for w, b in zip(ws_b, bs_b):
            _, _, cin, cout = w.shape
            cin, cout = int(cin), int(cout)
            cfg.append((cin, cout))
            wf = jnp.transpose(w, (3, 0, 1, 2)).reshape(cout, 9 * cin)
            w_args.append(wf.astype(jnp.bfloat16))
            b_args.append(b.reshape(cout, 1).astype(jnp.float32))
        layer_cfg.append(tuple(cfg))
    layer_cfg = tuple(layer_cfg)
    cf = layer_cfg[-1][-1][1]

    # Host-precomputed tap masks / pool weights / strided-mean mask (static).
    cmask_args = [jnp.asarray(_conv_tap_masks(H0, W0, dils[bi], Hs[bi], Ws[bi]))
                  for bi in range(n_blocks)]
    pmask_args = [jnp.asarray(_pool_tap_weights(H0, W0, dils[bi - 1], Hs[bi - 1], Ws[bi - 1]))
                  for bi in range(1, n_blocks)]
    mean_arg = jnp.asarray(_mean_mask(H0, W0, dils[-1], Hs[-1], Ws[-1]))

    # Merged Gaussian head: one (2*latent, Cf) projection + bias.
    w_head = jnp.concatenate([params["w_mu"].T, params["w_ls"].T], axis=0).astype(jnp.float32)
    b_head = jnp.concatenate([params["b_mu"], params["b_ls"]]).reshape(2 * latent_dim, 1).astype(jnp.float32)

    x_arg = x_nchw.reshape(N, C0, L0).astype(jnp.float32)
    eps_arg = eps.reshape(N, latent_dim, 1).astype(jnp.float32)

    # Shift-buffer halo and scratch sizes (static).
    Mpad = 0
    for bi in range(n_blocks):
        Mpad = max(Mpad, dils[bi] * (W0 + 1))
        if bi > 0:
            Mpad = max(Mpad, dils[bi - 1] * (2 * W0 + 2))
    max_cin = max(cin for blk in layer_cfg for (cin, _) in blk)

    def bcast(shape):  # batch-invariant operand: full-array block, constant index
        assert len(shape) == 2
        return pl.BlockSpec(shape, lambda b: (0, 0))

    args = [x_arg]
    in_specs = [pl.BlockSpec((1, C0, L0), lambda b: (b, 0, 0))]
    for a in list(w_args) + list(b_args) + list(cmask_args) + list(pmask_args) \
             + [mean_arg, w_head, b_head]:
        args.append(a)
        in_specs.append(bcast(a.shape))
    args.append(eps_arg)
    in_specs.append(pl.BlockSpec((1, latent_dim, 1), lambda b: (b, 0, 0)))

    kernel = _build_kernel(layer_cfg, tuple(dils), W0, L0, Mpad, latent_dim)

    # Advisory cost estimate for the XLA scheduler.
    flops = 0
    for bi, blk in enumerate(layer_cfg):
        if bi > 0:
            flops += 18 * blk[0][0] * L0
        for (cin, cout) in blk:
            flops += 2 * cout * (9 * cin) * L0 + 2 * cout * L0
    flops += 2 * (2 * latent_dim) * cf * L0 + 4 * latent_dim * L0
    flops *= N
    bytes_accessed = sum(int(np.prod(a.shape)) * a.dtype.itemsize for a in args)
    bytes_accessed += N * latent_dim * 4

    z = pl.pallas_call(
        kernel,
        out_shape=jax.ShapeDtypeStruct((N, latent_dim, 1), jnp.float32),
        grid=(N,),
        in_specs=in_specs,
        out_specs=pl.BlockSpec((1, latent_dim, 1), lambda b: (b, 0, 0)),
        scratch_shapes=[pltpu.VMEM((max_cin, L0 + 2 * Mpad), jnp.float32),
                        pltpu.VMEM((9 * max_cin, L0), jnp.float32)],
        compiler_params=pltpu.CompilerParams(
            dimension_semantics=("parallel",),
            vmem_limit_bytes=32 * 1024 * 1024),
        cost_estimate=pl.CostEstimate(flops=int(flops),
                                      transcendentals=int(N * latent_dim),
                                      bytes_accessed=int(bytes_accessed)),
    )(*args)
    return z.reshape(N, latent_dim)


def isotropic_gaussian_forward(params, x_nchw, eps):
    """Prior path (segm is None)."""
    return _forward_impl(params, x_nchw, eps)


# --------------------------- params / reference -----------------------------

def init_params(key, input_channels, num_filters, no_convs_per_block, latent_dim):
    conv_w, conv_b = [], []
    for i, cout in enumerate(num_filters):
        ws, bs = [], []
        c_prev = input_channels if i == 0 else num_filters[i - 1]
        for j in range(no_convs_per_block):
            cinj = c_prev if j == 0 else cout
            key, kw, kb = jax.random.split(key, 3)
            scale = (2.0 / (9 * cinj)) ** 0.5
            ws.append(scale * jax.random.normal(kw, (3, 3, cinj, cout), jnp.float32))
            bs.append(0.05 * jax.random.normal(kb, (cout,), jnp.float32))
        conv_w.append(ws)
        conv_b.append(bs)
    cf = num_filters[-1]
    key, k1, k2, k3, k4 = jax.random.split(key, 5)
    # 1x1 conv (cf -> 2*latent_dim); columns pre-split into mu / log_sigma halves.
    w_mu = (1.0 / cf) ** 0.5 * jax.random.normal(k1, (cf, latent_dim), jnp.float32)
    w_ls = (1.0 / cf) ** 0.5 * jax.random.normal(k2, (cf, latent_dim), jnp.float32)
    b_mu = 0.05 * jax.random.normal(k3, (latent_dim,), jnp.float32)
    b_ls = 0.05 * jax.random.normal(k4, (latent_dim,), jnp.float32)
    return dict(conv_w=conv_w, conv_b=conv_b,
                w_mu=w_mu, b_mu=b_mu, w_ls=w_ls, b_ls=b_ls)


def _ref_avg_pool(x, k=3, s=2):
    N, H, W, C = x.shape
    Hout, Wout = _pool_out_dim(H, k, s), _pool_out_dim(W, k, s)
    rows = []
    for oh in range(Hout):
        hs, he = oh * s, min(oh * s + k, H)
        cols = []
        for ow in range(Wout):
            ws, we = ow * s, min(ow * s + k, W)
            cols.append(jnp.mean(x[:, hs:he, ws:we, :], axis=(1, 2)))
        rows.append(jnp.stack(cols, axis=1))
    return jnp.stack(rows, axis=1)


def reference_forward(params, x_nchw, eps):
    x = jnp.transpose(x_nchw, (0, 2, 3, 1))
    h = x
    for i in range(len(params["conv_w"])):
        if i != 0:
            h = _ref_avg_pool(h)
        for j in range(len(params["conv_w"][i])):
            w, b = params["conv_w"][i][j], params["conv_b"][i][j]
            h = lax.conv_general_dilated(h, w, (1, 1), "SAME",
                                         dimension_numbers=("NHWC", "HWIO", "NHWC"))
            h = jnp.maximum(h + b, 0.0)
    pooled = jnp.mean(h, axis=(1, 2))
    mu = pooled @ params["w_mu"] + params["b_mu"]
    log_sigma = pooled @ params["w_ls"] + params["b_ls"]
    return eps * jnp.exp(0.5 * log_sigma) + mu


# ----------------------------------- main ------------------------------------

if __name__ == "__main__":
    input_channels = 4
    num_filters = [8, 16]
    no_convs_per_block = 2
    latent_dim = 6
    N, H, W = 2, 16, 16

    key = jax.random.PRNGKey(0)
    kx, keps, kp = jax.random.split(key, 3)
    x = jax.random.normal(kx, (N, input_channels, H, W), jnp.float32)  # NCHW like torch
    # torch.rand_like(std) -> Uniform[0, 1) noise (fidelity with the PyTorch source).
    eps = jax.random.uniform(keps, (N, latent_dim), jnp.float32)
    params = init_params(kp, input_channels, num_filters, no_convs_per_block, latent_dim)

    z = jax.block_until_ready(isotropic_gaussian_forward(params, x, eps))

    z_ref = reference_forward(params, x, eps)
    # bf16 MXU conv operands (f32 accumulation) vs pure-f32 reference.
    np.testing.assert_allclose(np.asarray(z), np.asarray(z_ref), rtol=2e-2, atol=2e-2)
    assert z.shape == (N, latent_dim)
    print("KERNEL_OK")
</pallas_src>

<mosaic_0001>
module attributes {stable_mosaic.version = 11 : i64} {
  func.func @kernel(%arg0: i32, %arg1: memref<1x4x256xf32, #tpu.memory_space<vmem>>, %arg2: memref<8x36xbf16, #tpu.memory_space<vmem>>, %arg3: memref<8x72xbf16, #tpu.memory_space<vmem>>, %arg4: memref<16x72xbf16, #tpu.memory_space<vmem>>, %arg5: memref<16x144xbf16, #tpu.memory_space<vmem>>, %arg6: memref<8x1xf32, #tpu.memory_space<vmem>>, %arg7: memref<8x1xf32, #tpu.memory_space<vmem>>, %arg8: memref<16x1xf32, #tpu.memory_space<vmem>>, %arg9: memref<16x1xf32, #tpu.memory_space<vmem>>, %arg10: memref<9x256xf32, #tpu.memory_space<vmem>>, %arg11: memref<9x256xf32, #tpu.memory_space<vmem>>, %arg12: memref<9x256xf32, #tpu.memory_space<vmem>>, %arg13: memref<1x256xf32, #tpu.memory_space<vmem>>, %arg14: memref<12x16xf32, #tpu.memory_space<vmem>>, %arg15: memref<12x1xf32, #tpu.memory_space<vmem>>, %arg16: memref<1x6x1xf32, #tpu.memory_space<vmem>>, %arg17: memref<1x6x1xf32, #tpu.memory_space<vmem>>, %arg18: memref<16x324xf32, #tpu.memory_space<vmem>>, %arg19: memref<144x256xf32, #tpu.memory_space<vmem>>) attributes {dimension_semantics = [#tpu.dimension_semantics<parallel>], iteration_bounds = array<i64: 2>, scalar_prefetch = 0 : i64, scratch_operands = 2 : i64, tpu.core_type = #tpu.core_type<tc>, window_params = [{transform_indices = @transform_0, window_bounds = array<i64: 1, 4, 256>}, {pipeline_mode = #tpu.pipeline_mode<synchronous>, transform_indices = @transform_1, window_bounds = array<i64: 8, 36>}, {pipeline_mode = #tpu.pipeline_mode<synchronous>, transform_indices = @transform_2, window_bounds = array<i64: 8, 72>}, {pipeline_mode = #tpu.pipeline_mode<synchronous>, transform_indices = @transform_3, window_bounds = array<i64: 16, 72>}, {pipeline_mode = #tpu.pipeline_mode<synchronous>, transform_indices = @transform_4, window_bounds = array<i64: 16, 144>}, {pipeline_mode = #tpu.pipeline_mode<synchronous>, transform_indices = @transform_5, window_bounds = array<i64: 8, 1>}, {pipeline_mode = #tpu.pipeline_mode<synchronous>, transform_indices = @transform_6, window_bounds = array<i64: 8, 1>}, {pipeline_mode = #tpu.pipeline_mode<synchronous>, transform_indices = @transform_7, window_bounds = array<i64: 16, 1>}, {pipeline_mode = #tpu.pipeline_mode<synchronous>, transform_indices = @transform_8, window_bounds = array<i64: 16, 1>}, {pipeline_mode = #tpu.pipeline_mode<synchronous>, transform_indices = @transform_9, window_bounds = array<i64: 9, 256>}, {pipeline_mode = #tpu.pipeline_mode<synchronous>, transform_indices = @transform_10, window_bounds = array<i64: 9, 256>}, {pipeline_mode = #tpu.pipeline_mode<synchronous>, transform_indices = @transform_11, window_bounds = array<i64: 9, 256>}, {pipeline_mode = #tpu.pipeline_mode<synchronous>, transform_indices = @transform_12, window_bounds = array<i64: 1, 256>}, {pipeline_mode = #tpu.pipeline_mode<synchronous>, transform_indices = @transform_13, window_bounds = array<i64: 12, 16>}, {pipeline_mode = #tpu.pipeline_mode<synchronous>, transform_indices = @transform_14, window_bounds = array<i64: 12, 1>}, {transform_indices = @transform_15, window_bounds = array<i64: 1, 6, 1>}, {transform_indices = @transform_16, window_bounds = array<i64: 1, 6, 1>}]} {
    %cst = arith.constant 0.000000e+00 : f32
    %0 = vector.broadcast %cst : f32 to vector<16x324xf32>
    %c0 = arith.constant 0 : index
    %c0_0 = arith.constant 0 : index
    %1 = vector.load %arg18[%c0, %c0_0] : memref<16x324xf32, #tpu.memory_space<vmem>>, vector<16x324xf32>
    tpu.vector_store %arg18[%c0, %c0_0], %0 {strides = array<i32>} : memref<16x324xf32, #tpu.memory_space<vmem>>, vector<16x324xf32>,
    %c0_1 = arith.constant 0 : index
    %c0_2 = arith.constant 0 : index
    %c0_3 = arith.constant 0 : index
    %2 = vector.load %arg1[%c0_1, %c0_2, %c0_3] : memref<1x4x256xf32, #tpu.memory_space<vmem>>, vector<1x4x256xf32>
    %3 = vector.shape_cast %2 : vector<1x4x256xf32> to vector<4x256xf32>
    %c0_4 = arith.constant 0 : index
    %c34 = arith.constant 34 : index
    %4 = vector.load %arg18[%c0_4, %c34] : memref<16x324xf32, #tpu.memory_space<vmem>>, vector<4x256xf32>
    tpu.vector_store %arg18[%c0_4, %c34], %3 {strides = array<i32>} : memref<16x324xf32, #tpu.memory_space<vmem>>, vector<4x256xf32>,
    %c0_5 = arith.constant 0 : index
    %c17 = arith.constant 17 : index
    %5 = vector.load %arg18[%c0_5, %c17] : memref<16x324xf32, #tpu.memory_space<vmem>>, vector<4x256xf32>
    %c0_6 = arith.constant 0 : index
    %c0_7 = arith.constant 0 : index
    %6 = vector.load %arg10[%c0_6, %c0_7] : memref<9x256xf32, #tpu.memory_space<vmem>>, vector<1x256xf32>
    %7 = vector.broadcast %6 : vector<1x256xf32> to vector<4x256xf32>
    %8 = arith.mulf %5, %7 : vector<4x256xf32>
    %c0_8 = arith.constant 0 : index
    %c0_9 = arith.constant 0 : index
    %9 = vector.load %arg19[%c0_8, %c0_9] : memref<144x256xf32, #tpu.memory_space<vmem>>, vector<4x256xf32>
    tpu.vector_store %arg19[%c0_8, %c0_9], %8 {strides = array<i32>} : memref<144x256xf32, #tpu.memory_space<vmem>>, vector<4x256xf32>,
    %c0_10 = arith.constant 0 : index
    %c18 = arith.constant 18 : index
    %10 = vector.load %arg18[%c0_10, %c18] : memref<16x324xf32, #tpu.memory_space<vmem>>, vector<4x256xf32>
    %c1 = arith.constant 1 : index
    %c0_11 = arith.constant 0 : index
    %11 = vector.load %arg10[%c1, %c0_11] : memref<9x256xf32, #tpu.memory_space<vmem>>, vector<1x256xf32>
    %12 = vector.broadcast %11 : vector<1x256xf32> to vector<4x256xf32>
    %13 = arith.mulf %10, %12 : vector<4x256xf32>
    %c4 = arith.constant 4 : index
    %c0_12 = arith.constant 0 : index
    %14 = vector.load %arg19[%c4, %c0_12] : memref<144x256xf32, #tpu.memory_space<vmem>>, vector<4x256xf32>
    tpu.vector_store %arg19[%c4, %c0_12], %13 {strides = array<i32>} : memref<144x256xf32, #tpu.memory_space<vmem>>, vector<4x256xf32>,
    %c0_13 = arith.constant 0 : index
    %c19 = arith.constant 19 : index
    %15 = vector.load %arg18[%c0_13, %c19] : memref<16x324xf32, #tpu.memory_space<vmem>>, vector<4x256xf32>
    %c2 = arith.constant 2 : index
    %c0_14 = arith.constant 0 : index
    %16 = vector.load %arg10[%c2, %c0_14] : memref<9x256xf32, #tpu.memory_space<vmem>>, vector<1x256xf32>
    %17 = vector.broadcast %16 : vector<1x256xf32> to vector<4x256xf32>
    %18 = arith.mulf %15, %17 : vector<4x256xf32>
    %c8 = arith.constant 8 : index
    %c0_15 = arith.constant 0 : index
    %19 = vector.load %arg19[%c8, %c0_15] : memref<144x256xf32, #tpu.memory_space<vmem>>, vector<4x256xf32>
    tpu.vector_store %arg19[%c8, %c0_15], %18 {strides = array<i32>} : memref<144x256xf32, #tpu.memory_space<vmem>>, vector<4x256xf32>,
    %c0_16 = arith.constant 0 : index
    %c33 = arith.constant 33 : index
    %20 = vector.load %arg18[%c0_16, %c33] : memref<16x324xf32, #tpu.memory_space<vmem>>, vector<4x256xf32>
    %c3 = arith.constant 3 : index
    %c0_17 = arith.constant 0 : index
    %21 = vector.load %arg10[%c3, %c0_17] : memref<9x256xf32, #tpu.memory_space<vmem>>, vector<1x256xf32>
    %22 = vector.broadcast %21 : vector<1x256xf32> to vector<4x256xf32>
    %23 = arith.mulf %20, %22 : vector<4x256xf32>
    %c12 = arith.constant 12 : index
    %c0_18 = arith.constant 0 : index
    %24 = vector.load %arg19[%c12, %c0_18] : memref<144x256xf32, #tpu.memory_space<vmem>>, vector<4x256xf32>
    tpu.vector_store %arg19[%c12, %c0_18], %23 {strides = array<i32>} : memref<144x256xf32, #tpu.memory_space<vmem>>, vector<4x256xf32>,
    %c0_19 = arith.constant 0 : index
    %c34_20 = arith.constant 34 : index
    %25 = vector.load %arg18[%c0_19, %c34_20] : memref<16x324xf32, #tpu.memory_space<vmem>>, vector<4x256xf32>
    %c4_21 = arith.constant 4 : index
    %c0_22 = arith.constant 0 : index
    %26 = vector.load %arg10[%c4_21, %c0_22] : memref<9x256xf32, #tpu.memory_space<vmem>>, vector<1x256xf32>
    %27 = vector.broadcast %26 : vector<1x256xf32> to vector<4x256xf32>
    %28 = arith.mulf %25, %27 : vector<4x256xf32>
    %c16 = arith.constant 16 : index
    %c0_23 = arith.constant 0 : index
    %29 = vector.load %arg19[%c16, %c0_23] : memref<144x256xf32, #tpu.memory_space<vmem>>, vector<4x256xf32>
    tpu.vector_store %arg19[%c16, %c0_23], %28 {strides = array<i32>} : memref<144x256xf32, #tpu.memory_space<vmem>>, vector<4x256xf32>,
    %c0_24 = arith.constant 0 : index
    %c35 = arith.constant 35 : index
    %30 = vector.load %arg18[%c0_24, %c35] : memref<16x324xf32, #tpu.memory_space<vmem>>, vector<4x256xf32>
    %c5 = arith.constant 5 : index
    %c0_25 = arith.constant 0 : index
    %31 = vector.load %arg10[%c5, %c0_25] : memref<9x256xf32, #tpu.memory_space<vmem>>, vector<1x256xf32>
    %32 = vector.broadcast %31 : vector<1x256xf32> to vector<4x256xf32>
    %33 = arith.mulf %30, %32 : vector<4x256xf32>
    %c20 = arith.constant 20 : index
    %c0_26 = arith.constant 0 : index
    %34 = vector.load %arg19[%c20, %c0_26] : memref<144x256xf32, #tpu.memory_space<vmem>>, vector<4x256xf32>
    tpu.vector_store %arg19[%c20, %c0_26], %33 {strides = array<i32>} : memref<144x256xf32, #tpu.memory_space<vmem>>, vector<4x256xf32>,
    %c0_27 = arith.constant 0 : index
    %c49 = arith.constant 49 : index
    %35 = vector.load %arg18[%c0_27, %c49] : memref<16x324xf32, #tpu.memory_space<vmem>>, vector<4x256xf32>
    %c6 = arith.constant 6 : index
    %c0_28 = arith.constant 0 : index
    %36 = vector.load %arg10[%c6, %c0_28] : memref<9x256xf32, #tpu.memory_space<vmem>>, vector<1x256xf32>
    %37 = vector.broadcast %36 : vector<1x256xf32> to vector<4x256xf32>
    %38 = arith.mulf %35, %37 : vector<4x256xf32>
    %c24 = arith.constant 24 : index
    %c0_29 = arith.constant 0 : index
    %39 = vector.load %arg19[%c24, %c0_29] : memref<144x256xf32, #tpu.memory_space<vmem>>, vector<4x256xf32>
    tpu.vector_store %arg19[%c24, %c0_29], %38 {strides = array<i32>} : memref<144x256xf32, #tpu.memory_space<vmem>>, vector<4x256xf32>,
    %c0_30 = arith.constant 0 : index
    %c50 = arith.constant 50 : index
    %40 = vector.load %arg18[%c0_30, %c50] : memref<16x324xf32, #tpu.memory_space<vmem>>, vector<4x256xf32>
    %c7 = arith.constant 7 : index
    %c0_31 = arith.constant 0 : index
    %41 = vector.load %arg10[%c7, %c0_31] : memref<9x256xf32, #tpu.memory_space<vmem>>, vector<1x256xf32>
    %42 = vector.broadcast %41 : vector<1x256xf32> to vector<4x256xf32>
    %43 = arith.mulf %40, %42 : vector<4x256xf32>
    %c28 = arith.constant 28 : index
    %c0_32 = arith.constant 0 : index
    %44 = vector.load %arg19[%c28, %c0_32] : memref<144x256xf32, #tpu.memory_space<vmem>>, vector<4x256xf32>
    tpu.vector_store %arg19[%c28, %c0_32], %43 {strides = array<i32>} : memref<144x256xf32, #tpu.memory_space<vmem>>, vector<4x256xf32>,
    %c0_33 = arith.constant 0 : index
    %c51 = arith.constant 51 : index
    %45 = vector.load %arg18[%c0_33, %c51] : memref<16x324xf32, #tpu.memory_space<vmem>>, vector<4x256xf32>
    %c8_34 = arith.constant 8 : index
    %c0_35 = arith.constant 0 : index
    %46 = vector.load %arg10[%c8_34, %c0_35] : memref<9x256xf32, #tpu.memory_space<vmem>>, vector<1x256xf32>
    %47 = vector.broadcast %46 : vector<1x256xf32> to vector<4x256xf32>
    %48 = arith.mulf %45, %47 : vector<4x256xf32>
    %c32 = arith.constant 32 : index
    %c0_36 = arith.constant 0 : index
    %49 = vector.load %arg19[%c32, %c0_36] : memref<144x256xf32, #tpu.memory_space<vmem>>, vector<4x256xf32>
    tpu.vector_store %arg19[%c32, %c0_36], %48 {strides = array<i32>} : memref<144x256xf32, #tpu.memory_space<vmem>>, vector<4x256xf32>,
    %c0_37 = arith.constant 0 : index
    %c0_38 = arith.constant 0 : index
    %50 = vector.load %arg19[%c0_37, %c0_38] : memref<144x256xf32, #tpu.memory_space<vmem>>, vector<36x256xf32>
    %51 = arith.truncf %50 : vector<36x256xf32> to vector<36x256xbf16>
    %c0_39 = arith.constant 0 : index
    %c0_40 = arith.constant 0 : index
    %52 = vector.load %arg2[%c0_39, %c0_40] : memref<8x36xbf16, #tpu.memory_space<vmem>>, vector<8x36xbf16>
    %cst_41 = arith.constant dense<0.000000e+00> : vector<8x256xf32>
    %53 = tpu.matmul %52, %51, %cst_41 {dimension_numbers = #tpu.dot_dimension_numbers<[1], [0], [0], [1], [0, 0, 1, 1], [], []>} : vector<8x36xbf16>, vector<36x256xbf16>, vector<8x256xf32> -> vector<8x256xf32>
    %c0_42 = arith.constant 0 : index
    %c0_43 = arith.constant 0 : index
    %54 = vector.load %arg6[%c0_42, %c0_43] : memref<8x1xf32, #tpu.memory_space<vmem>>, vector<8x1xf32>
    %55 = vector.broadcast %54 : vector<8x1xf32> to vector<8x256xf32>
    %56 = arith.addf %53, %55 : vector<8x256xf32>
    %cst_44 = arith.constant 0.000000e+00 : f32
    %57 = vector.broadcast %cst_44 : f32 to vector<8x256xf32>
    %58 = arith.maximumf %56, %57 : vector<8x256xf32>
    %c0_45 = arith.constant 0 : index
    %c34_46 = arith.constant 34 : index
    %59 = vector.load %arg18[%c0_45, %c34_46] : memref<16x324xf32, #tpu.memory_space<vmem>>, vector<8x256xf32>
    tpu.vector_store %arg18[%c0_45, %c34_46], %58 {strides = array<i32>} : memref<16x324xf32, #tpu.memory_space<vmem>>, vector<8x256xf32>,
    %c0_47 = arith.constant 0 : index
    %c17_48 = arith.constant 17 : index
    %60 = vector.load %arg18[%c0_47, %c17_48] : memref<16x324xf32, #tpu.memory_space<vmem>>, vector<8x256xf32>
    %c0_49 = arith.constant 0 : index
    %c0_50 = arith.constant 0 : index
    %61 = vector.load %arg10[%c0_49, %c0_50] : memref<9x256xf32, #tpu.memory_space<vmem>>, vector<1x256xf32>
    %62 = vector.broadcast %61 : vector<1x256xf32> to vector<8x256xf32>
    %63 = arith.mulf %60, %62 : vector<8x256xf32>
    %c0_51 = arith.constant 0 : index
    %c0_52 = arith.constant 0 : index
    %64 = vector.load %arg19[%c0_51, %c0_52] : memref<144x256xf32, #tpu.memory_space<vmem>>, vector<8x256xf32>
    tpu.vector_store %arg19[%c0_51, %c0_52], %63 {strides = array<i32>} : memref<144x256xf32, #tpu.memory_space<vmem>>, vector<8x256xf32>,
    %c0_53 = arith.constant 0 : index
    %c18_54 = arith.constant 18 : index
    %65 = vector.load %arg18[%c0_53, %c18_54] : memref<16x324xf32, #tpu.memory_space<vmem>>, vector<8x256xf32>
    %c1_55 = arith.constant 1 : index
    %c0_56 = arith.constant 0 : index
    %66 = vector.load %arg10[%c1_55, %c0_56] : memref<9x256xf32, #tpu.memory_space<vmem>>, vector<1x256xf32>
    %67 = vector.broadcast %66 : vector<1x256xf32> to vector<8x256xf32>
    %68 = arith.mulf %65, %67 : vector<8x256xf32>
    %c8_57 = arith.constant 8 : index
    %c0_58 = arith.constant 0 : index
    %69 = vector.load %arg19[%c8_57, %c0_58] : memref<144x256xf32, #tpu.memory_space<vmem>>, vector<8x256xf32>
    tpu.vector_store %arg19[%c8_57, %c0_58], %68 {strides = array<i32>} : memref<144x256xf32, #tpu.memory_space<vmem>>, vector<8x256xf32>,
    %c0_59 = arith.constant 0 : index
    %c19_60 = arith.constant 19 : index
    %70 = vector.load %arg18[%c0_59, %c19_60] : memref<16x324xf32, #tpu.memory_space<vmem>>, vector<8x256xf32>
    %c2_61 = arith.constant 2 : index
    %c0_62 = arith.constant 0 : index
    %71 = vector.load %arg10[%c2_61, %c0_62] : memref<9x256xf32, #tpu.memory_space<vmem>>, vector<1x256xf32>
    %72 = vector.broadcast %71 : vector<1x256xf32> to vector<8x256xf32>
    %73 = arith.mulf %70, %72 : vector<8x256xf32>
    %c16_63 = arith.constant 16 : index
    %c0_64 = arith.constant 0 : index
    %74 = vector.load %arg19[%c16_63, %c0_64] : memref<144x256xf32, #tpu.memory_space<vmem>>, vector<8x256xf32>
    tpu.vector_store %arg19[%c16_63, %c0_64], %73 {strides = array<i32>} : memref<144x256xf32, #tpu.memory_space<vmem>>, vector<8x256xf32>,
    %c0_65 = arith.constant 0 : index
    %c33_66 = arith.constant 33 : index
    %75 = vector.load %arg18[%c0_65, %c33_66] : memref<16x324xf32, #tpu.memory_space<vmem>>, vector<8x256xf32>
    %c3_67 = arith.constant 3 : index
    %c0_68 = arith.constant 0 : index
    %76 = vector.load %arg10[%c3_67, %c0_68] : memref<9x256xf32, #tpu.memory_space<vmem>>, vector<1x256xf32>
    %77 = vector.broadcast %76 : vector<1x256xf32> to vector<8x256xf32>
    %78 = arith.mulf %75, %77 : vector<8x256xf32>
    %c24_69 = arith.constant 24 : index
    %c0_70 = arith.constant 0 : index
    %79 = vector.load %arg19[%c24_69, %c0_70] : memref<144x256xf32, #tpu.memory_space<vmem>>, vector<8x256xf32>
    tpu.vector_store %arg19[%c24_69, %c0_70], %78 {strides = array<i32>} : memref<144x256xf32, #tpu.memory_space<vmem>>, vector<8x256xf32>,
    %c0_71 = arith.constant 0 : index
    %c34_72 = arith.constant 34 : index
    %80 = vector.load %arg18[%c0_71, %c34_72] : memref<16x324xf32, #tpu.memory_space<vmem>>, vector<8x256xf32>
    %c4_73 = arith.constant 4 : index
    %c0_74 = arith.constant 0 : index
    %81 = vector.load %arg10[%c4_73, %c0_74] : memref<9x256xf32, #tpu.memory_space<vmem>>, vector<1x256xf32>
    %82 = vector.broadcast %81 : vector<1x256xf32> to vector<8x256xf32>
    %83 = arith.mulf %80, %82 : vector<8x256xf32>
    %c32_75 = arith.constant 32 : index
    %c0_76 = arith.constant 0 : index
    %84 = vector.load %arg19[%c32_75, %c0_76] : memref<144x256xf32, #tpu.memory_space<vmem>>, vector<8x256xf32>
    tpu.vector_store %arg19[%c32_75, %c0_76], %83 {strides = array<i32>} : memref<144x256xf32, #tpu.memory_space<vmem>>, vector<8x256xf32>,
    %c0_77 = arith.constant 0 : index
    %c35_78 = arith.constant 35 : index
    %85 = vector.load %arg18[%c0_77, %c35_78] : memref<16x324xf32, #tpu.memory_space<vmem>>, vector<8x256xf32>
    %c5_79 = arith.constant 5 : index
    %c0_80 = arith.constant 0 : index
    %86 = vector.load %arg10[%c5_79, %c0_80] : memref<9x256xf32, #tpu.memory_space<vmem>>, vector<1x256xf32>
    %87 = vector.broadcast %86 : vector<1x256xf32> to vector<8x256xf32>
    %88 = arith.mulf %85, %87 : vector<8x256xf32>
    %c40 = arith.constant 40 : index
    %c0_81 = arith.constant 0 : index
    %89 = vector.load %arg19[%c40, %c0_81] : memref<144x256xf32, #tpu.memory_space<vmem>>, vector<8x256xf32>
    tpu.vector_store %arg19[%c40, %c0_81], %88 {strides = array<i32>} : memref<144x256xf32, #tpu.memory_space<vmem>>, vector<8x256xf32>,
    %c0_82 = arith.constant 0 : index
    %c49_83 = arith.constant 49 : index
    %90 = vector.load %arg18[%c0_82, %c49_83] : memref<16x324xf32, #tpu.memory_space<vmem>>, vector<8x256xf32>
    %c6_84 = arith.constant 6 : index
    %c0_85 = arith.constant 0 : index
    %91 = vector.load %arg10[%c6_84, %c0_85] : memref<9x256xf32, #tpu.memory_space<vmem>>, vector<1x256xf32>
    %92 = vector.broadcast %91 : vector<1x256xf32> to vector<8x256xf32>
    %93 = arith.mulf %90, %92 : vector<8x256xf32>
    %c48 = arith.constant 48 : index
    %c0_86 = arith.constant 0 : index
    %94 = vector.load %arg19[%c48, %c0_86] : memref<144x256xf32, #tpu.memory_space<vmem>>, vector<8x256xf32>
    tpu.vector_store %arg19[%c48, %c0_86], %93 {strides = array<i32>} : memref<144x256xf32, #tpu.memory_space<vmem>>, vector<8x256xf32>,
    %c0_87 = arith.constant 0 : index
    %c50_88 = arith.constant 50 : index
    %95 = vector.load %arg18[%c0_87, %c50_88] : memref<16x324xf32, #tpu.memory_space<vmem>>, vector<8x256xf32>
    %c7_89 = arith.constant 7 : index
    %c0_90 = arith.constant 0 : index
    %96 = vector.load %arg10[%c7_89, %c0_90] : memref<9x256xf32, #tpu.memory_space<vmem>>, vector<1x256xf32>
    %97 = vector.broadcast %96 : vector<1x256xf32> to vector<8x256xf32>
    %98 = arith.mulf %95, %97 : vector<8x256xf32>
    %c56 = arith.constant 56 : index
    %c0_91 = arith.constant 0 : index
    %99 = vector.load %arg19[%c56, %c0_91] : memref<144x256xf32, #tpu.memory_space<vmem>>, vector<8x256xf32>
    tpu.vector_store %arg19[%c56, %c0_91], %98 {strides = array<i32>} : memref<144x256xf32, #tpu.memory_space<vmem>>, vector<8x256xf32>,
    %c0_92 = arith.constant 0 : index
    %c51_93 = arith.constant 51 : index
    %100 = vector.load %arg18[%c0_92, %c51_93] : memref<16x324xf32, #tpu.memory_space<vmem>>, vector<8x256xf32>
    %c8_94 = arith.constant 8 : index
    %c0_95 = arith.constant 0 : index
    %101 = vector.load %arg10[%c8_94, %c0_95] : memref<9x256xf32, #tpu.memory_space<vmem>>, vector<1x256xf32>
    %102 = vector.broadcast %101 : vector<1x256xf32> to vector<8x256xf32>
    %103 = arith.mulf %100, %102 : vector<8x256xf32>
    %c64 = arith.constant 64 : index
    %c0_96 = arith.constant 0 : index
    %104 = vector.load %arg19[%c64, %c0_96] : memref<144x256xf32, #tpu.memory_space<vmem>>, vector<8x256xf32>
    tpu.vector_store %arg19[%c64, %c0_96], %103 {strides = array<i32>} : memref<144x256xf32, #tpu.memory_space<vmem>>, vector<8x256xf32>,
    %c0_97 = arith.constant 0 : index
    %c0_98 = arith.constant 0 : index
    %105 = vector.load %arg19[%c0_97, %c0_98] : memref<144x256xf32, #tpu.memory_space<vmem>>, vector<72x256xf32>
    %106 = arith.truncf %105 : vector<72x256xf32> to vector<72x256xbf16>
    %c0_99 = arith.constant 0 : index
    %c0_100 = arith.constant 0 : index
    %107 = vector.load %arg3[%c0_99, %c0_100] : memref<8x72xbf16, #tpu.memory_space<vmem>>, vector<8x72xbf16>
    %cst_101 = arith.constant dense<0.000000e+00> : vector<8x256xf32>
    %108 = tpu.matmul %107, %106, %cst_101 {dimension_numbers = #tpu.dot_dimension_numbers<[1], [0], [0], [1], [0, 0, 1, 1], [], []>} : vector<8x72xbf16>, vector<72x256xbf16>, vector<8x256xf32> -> vector<8x256xf32>
    %c0_102 = arith.constant 0 : index
    %c0_103 = arith.constant 0 : index
    %109 = vector.load %arg7[%c0_102, %c0_103] : memref<8x1xf32, #tpu.memory_space<vmem>>, vector<8x1xf32>
    %110 = vector.broadcast %109 : vector<8x1xf32> to vector<8x256xf32>
    %111 = arith.addf %108, %110 : vector<8x256xf32>
    %cst_104 = arith.constant 0.000000e+00 : f32
    %112 = vector.broadcast %cst_104 : f32 to vector<8x256xf32>
    %113 = arith.maximumf %111, %112 : vector<8x256xf32>
    %c0_105 = arith.constant 0 : index
    %c34_106 = arith.constant 34 : index
    %114 = vector.load %arg18[%c0_105, %c34_106] : memref<16x324xf32, #tpu.memory_space<vmem>>, vector<8x256xf32>
    tpu.vector_store %arg18[%c0_105, %c34_106], %113 {strides = array<i32>} : memref<16x324xf32, #tpu.memory_space<vmem>>, vector<8x256xf32>,
    %c0_107 = arith.constant 0 : index
    %c34_108 = arith.constant 34 : index
    %115 = vector.load %arg18[%c0_107, %c34_108] : memref<16x324xf32, #tpu.memory_space<vmem>>, vector<8x256xf32>
    %c0_109 = arith.constant 0 : index
    %c0_110 = arith.constant 0 : index
    %116 = vector.load %arg12[%c0_109, %c0_110] : memref<9x256xf32, #tpu.memory_space<vmem>>, vector<1x256xf32>
    %117 = vector.broadcast %116 : vector<1x256xf32> to vector<8x256xf32>
    %118 = arith.mulf %115, %117 : vector<8x256xf32>
    %c0_111 = arith.constant 0 : index
    %c35_112 = arith.constant 35 : index
    %119 = vector.load %arg18[%c0_111, %c35_112] : memref<16x324xf32, #tpu.memory_space<vmem>>, vector<8x256xf32>
    %c1_113 = arith.constant 1 : index
    %c0_114 = arith.constant 0 : index
    %120 = vector.load %arg12[%c1_113, %c0_114] : memref<9x256xf32, #tpu.memory_space<vmem>>, vector<1x256xf32>
    %121 = vector.broadcast %120 : vector<1x256xf32> to vector<8x256xf32>
    %122 = arith.mulf %119, %121 : vector<8x256xf32>
    %123 = arith.addf %118, %122 : vector<8x256xf32>
    %c0_115 = arith.constant 0 : index
    %c36 = arith.constant 36 : index
    %124 = vector.load %arg18[%c0_115, %c36] : memref<16x324xf32, #tpu.memory_space<vmem>>, vector<8x256xf32>
    %c2_116 = arith.constant 2 : index
    %c0_117 = arith.constant 0 : index
    %125 = vector.load %arg12[%c2_116, %c0_117] : memref<9x256xf32, #tpu.memory_space<vmem>>, vector<1x256xf32>
    %126 = vector.broadcast %125 : vector<1x256xf32> to vector<8x256xf32>
    %127 = arith.mulf %124, %126 : vector<8x256xf32>
    %128 = arith.addf %123, %127 : vector<8x256xf32>
    %c0_118 = arith.constant 0 : index
    %c50_119 = arith.constant 50 : index
    %129 = vector.load %arg18[%c0_118, %c50_119] : memref<16x324xf32, #tpu.memory_space<vmem>>, vector<8x256xf32>
    %c3_120 = arith.constant 3 : index
    %c0_121 = arith.constant 0 : index
    %130 = vector.load %arg12[%c3_120, %c0_121] : memref<9x256xf32, #tpu.memory_space<vmem>>, vector<1x256xf32>
    %131 = vector.broadcast %130 : vector<1x256xf32> to vector<8x256xf32>
    %132 = arith.mulf %129, %131 : vector<8x256xf32>
    %133 = arith.addf %128, %132 : vector<8x256xf32>
    %c0_122 = arith.constant 0 : index
    %c51_123 = arith.constant 51 : index
    %134 = vector.load %arg18[%c0_122, %c51_123] : memref<16x324xf32, #tpu.memory_space<vmem>>, vector<8x256xf32>
    %c4_124 = arith.constant 4 : index
    %c0_125 = arith.constant 0 : index
    %135 = vector.load %arg12[%c4_124, %c0_125] : memref<9x256xf32, #tpu.memory_space<vmem>>, vector<1x256xf32>
    %136 = vector.broadcast %135 : vector<1x256xf32> to vector<8x256xf32>
    %137 = arith.mulf %134, %136 : vector<8x256xf32>
    %138 = arith.addf %133, %137 : vector<8x256xf32>
    %c0_126 = arith.constant 0 : index
    %c52 = arith.constant 52 : index
    %139 = vector.load %arg18[%c0_126, %c52] : memref<16x324xf32, #tpu.memory_space<vmem>>, vector<8x256xf32>
    %c5_127 = arith.constant 5 : index
    %c0_128 = arith.constant 0 : index
    %140 = vector.load %arg12[%c5_127, %c0_128] : memref<9x256xf32, #tpu.memory_space<vmem>>, vector<1x256xf32>
    %141 = vector.broadcast %140 : vector<1x256xf32> to vector<8x256xf32>
    %142 = arith.mulf %139, %141 : vector<8x256xf32>
    %143 = arith.addf %138, %142 : vector<8x256xf32>
    %c0_129 = arith.constant 0 : index
    %c66 = arith.constant 66 : index
    %144 = vector.load %arg18[%c0_129, %c66] : memref<16x324xf32, #tpu.memory_space<vmem>>, vector<8x256xf32>
    %c6_130 = arith.constant 6 : index
    %c0_131 = arith.constant 0 : index
    %145 = vector.load %arg12[%c6_130, %c0_131] : memref<9x256xf32, #tpu.memory_space<vmem>>, vector<1x256xf32>
    %146 = vector.broadcast %145 : vector<1x256xf32> to vector<8x256xf32>
    %147 = arith.mulf %144, %146 : vector<8x256xf32>
    %148 = arith.addf %143, %147 : vector<8x256xf32>
    %c0_132 = arith.constant 0 : index
    %c67 = arith.constant 67 : index
    %149 = vector.load %arg18[%c0_132, %c67] : memref<16x324xf32, #tpu.memory_space<vmem>>, vector<8x256xf32>
    %c7_133 = arith.constant 7 : index
    %c0_134 = arith.constant 0 : index
    %150 = vector.load %arg12[%c7_133, %c0_134] : memref<9x256xf32, #tpu.memory_space<vmem>>, vector<1x256xf32>
    %151 = vector.broadcast %150 : vector<1x256xf32> to vector<8x256xf32>
    %152 = arith.mulf %149, %151 : vector<8x256xf32>
    %153 = arith.addf %148, %152 : vector<8x256xf32>
    %c0_135 = arith.constant 0 : index
    %c68 = arith.constant 68 : index
    %154 = vector.load %arg18[%c0_135, %c68] : memref<16x324xf32, #tpu.memory_space<vmem>>, vector<8x256xf32>
    %c8_136 = arith.constant 8 : index
    %c0_137 = arith.constant 0 : index
    %155 = vector.load %arg12[%c8_136, %c0_137] : memref<9x256xf32, #tpu.memory_space<vmem>>, vector<1x256xf32>
    %156 = vector.broadcast %155 : vector<1x256xf32> to vector<8x256xf32>
    %157 = arith.mulf %154, %156 : vector<8x256xf32>
    %158 = arith.addf %153, %157 : vector<8x256xf32>
    %c0_138 = arith.constant 0 : index
    %c34_139 = arith.constant 34 : index
    %159 = vector.load %arg18[%c0_138, %c34_139] : memref<16x324xf32, #tpu.memory_space<vmem>>, vector<8x256xf32>
    tpu.vector_store %arg18[%c0_138, %c34_139], %158 {strides = array<i32>} : memref<16x324xf32, #tpu.memory_space<vmem>>, vector<8x256xf32>,
    %c0_140 = arith.constant 0 : index
    %c0_141 = arith.constant 0 : index
    %160 = vector.load %arg18[%c0_140, %c0_141] : memref<16x324xf32, #tpu.memory_space<vmem>>, vector<8x256xf32>
    %c0_142 = arith.constant 0 : index
    %c0_143 = arith.constant 0 : index
    %161 = vector.load %arg11[%c0_142, %c0_143] : memref<9x256xf32, #tpu.memory_space<vmem>>, vector<1x256xf32>
    %162 = vector.broadcast %161 : vector<1x256xf32> to vector<8x256xf32>
    %163 = arith.mulf %160, %162 : vector<8x256xf32>
    %c0_144 = arith.constant 0 : index
    %c0_145 = arith.constant 0 : index
    %164 = vector.load %arg19[%c0_144, %c0_145] : memref<144x256xf32, #tpu.memory_space<vmem>>, vector<8x256xf32>
    tpu.vector_store %arg19[%c0_144, %c0_145], %163 {strides = array<i32>} : memref<144x256xf32, #tpu.memory_space<vmem>>, vector<8x256xf32>,
    %c0_146 = arith.constant 0 : index
    %c2_147 = arith.constant 2 : index
    %165 = vector.load %arg18[%c0_146, %c2_147] : memref<16x324xf32, #tpu.memory_space<vmem>>, vector<8x256xf32>
    %c1_148 = arith.constant 1 : index
    %c0_149 = arith.constant 0 : index
    %166 = vector.load %arg11[%c1_148, %c0_149] : memref<9x256xf32, #tpu.memory_space<vmem>>, vector<1x256xf32>
    %167 = vector.broadcast %166 : vector<1x256xf32> to vector<8x256xf32>
    %168 = arith.mulf %165, %167 : vector<8x256xf32>
    %c8_150 = arith.constant 8 : index
    %c0_151 = arith.constant 0 : index
    %169 = vector.load %arg19[%c8_150, %c0_151] : memref<144x256xf32, #tpu.memory_space<vmem>>, vector<8x256xf32>
    tpu.vector_store %arg19[%c8_150, %c0_151], %168 {strides = array<i32>} : memref<144x256xf32, #tpu.memory_space<vmem>>, vector<8x256xf32>,
    %c0_152 = arith.constant 0 : index
    %c4_153 = arith.constant 4 : index
    %170 = vector.load %arg18[%c0_152, %c4_153] : memref<16x324xf32, #tpu.memory_space<vmem>>, vector<8x256xf32>
    %c2_154 = arith.constant 2 : index
    %c0_155 = arith.constant 0 : index
    %171 = vector.load %arg11[%c2_154, %c0_155] : memref<9x256xf32, #tpu.memory_space<vmem>>, vector<1x256xf32>
    %172 = vector.broadcast %171 : vector<1x256xf32> to vector<8x256xf32>
    %173 = arith.mulf %170, %172 : vector<8x256xf32>
    %c16_156 = arith.constant 16 : index
    %c0_157 = arith.constant 0 : index
    %174 = vector.load %arg19[%c16_156, %c0_157] : memref<144x256xf32, #tpu.memory_space<vmem>>, vector<8x256xf32>
    tpu.vector_store %arg19[%c16_156, %c0_157], %173 {strides = array<i32>} : memref<144x256xf32, #tpu.memory_space<vmem>>, vector<8x256xf32>,
    %c0_158 = arith.constant 0 : index
    %c32_159 = arith.constant 32 : index
    %175 = vector.load %arg18[%c0_158, %c32_159] : memref<16x324xf32, #tpu.memory_space<vmem>>, vector<8x256xf32>
    %c3_160 = arith.constant 3 : index
    %c0_161 = arith.constant 0 : index
    %176 = vector.load %arg11[%c3_160, %c0_161] : memref<9x256xf32, #tpu.memory_space<vmem>>, vector<1x256xf32>
    %177 = vector.broadcast %176 : vector<1x256xf32> to vector<8x256xf32>
    %178 = arith.mulf %175, %177 : vector<8x256xf32>
    %c24_162 = arith.constant 24 : index
    %c0_163 = arith.constant 0 : index
    %179 = vector.load %arg19[%c24_162, %c0_163] : memref<144x256xf32, #tpu.memory_space<vmem>>, vector<8x256xf32>
    tpu.vector_store %arg19[%c24_162, %c0_163], %178 {strides = array<i32>} : memref<144x256xf32, #tpu.memory_space<vmem>>, vector<8x256xf32>,
    %c0_164 = arith.constant 0 : index
    %c34_165 = arith.constant 34 : index
    %180 = vector.load %arg18[%c0_164, %c34_165] : memref<16x324xf32, #tpu.memory_space<vmem>>, vector<8x256xf32>
    %c4_166 = arith.constant 4 : index
    %c0_167 = arith.constant 0 : index
    %181 = vector.load %arg11[%c4_166, %c0_167] : memref<9x256xf32, #tpu.memory_space<vmem>>, vector<1x256xf32>
    %182 = vector.broadcast %181 : vector<1x256xf32> to vector<8x256xf32>
    %183 = arith.mulf %180, %182 : vector<8x256xf32>
    %c32_168 = arith.constant 32 : index
    %c0_169 = arith.constant 0 : index
    %184 = vector.load %arg19[%c32_168, %c0_169] : memref<144x256xf32, #tpu.memory_space<vmem>>, vector<8x256xf32>
    tpu.vector_store %arg19[%c32_168, %c0_169], %183 {strides = array<i32>} : memref<144x256xf32, #tpu.memory_space<vmem>>, vector<8x256xf32>,
    %c0_170 = arith.constant 0 : index
    %c36_171 = arith.constant 36 : index
    %185 = vector.load %arg18[%c0_170, %c36_171] : memref<16x324xf32, #tpu.memory_space<vmem>>, vector<8x256xf32>
    %c5_172 = arith.constant 5 : index
    %c0_173 = arith.constant 0 : index
    %186 = vector.load %arg11[%c5_172, %c0_173] : memref<9x256xf32, #tpu.memory_space<vmem>>, vector<1x256xf32>
    %187 = vector.broadcast %186 : vector<1x256xf32> to vector<8x256xf32>
    %188 = arith.mulf %185, %187 : vector<8x256xf32>
    %c40_174 = arith.constant 40 : index
    %c0_175 = arith.constant 0 : index
    %189 = vector.load %arg19[%c40_174, %c0_175] : memref<144x256xf32, #tpu.memory_space<vmem>>, vector<8x256xf32>
    tpu.vector_store %arg19[%c40_174, %c0_175], %188 {strides = array<i32>} : memref<144x256xf32, #tpu.memory_space<vmem>>, vector<8x256xf32>,
    %c0_176 = arith.constant 0 : index
    %c64_177 = arith.constant 64 : index
    %190 = vector.load %arg18[%c0_176, %c64_177] : memref<16x324xf32, #tpu.memory_space<vmem>>, vector<8x256xf32>
    %c6_178 = arith.constant 6 : index
    %c0_179 = arith.constant 0 : index
    %191 = vector.load %arg11[%c6_178, %c0_179] : memref<9x256xf32, #tpu.memory_space<vmem>>, vector<1x256xf32>
    %192 = vector.broadcast %191 : vector<1x256xf32> to vector<8x256xf32>
    %193 = arith.mulf %190, %192 : vector<8x256xf32>
    %c48_180 = arith.constant 48 : index
    %c0_181 = arith.constant 0 : index
    %194 = vector.load %arg19[%c48_180, %c0_181] : memref<144x256xf32, #tpu.memory_space<vmem>>, vector<8x256xf32>
    tpu.vector_store %arg19[%c48_180, %c0_181], %193 {strides = array<i32>} : memref<144x256xf32, #tpu.memory_space<vmem>>, vector<8x256xf32>,
    %c0_182 = arith.constant 0 : index
    %c66_183 = arith.constant 66 : index
    %195 = vector.load %arg18[%c0_182, %c66_183] : memref<16x324xf32, #tpu.memory_space<vmem>>, vector<8x256xf32>
    %c7_184 = arith.constant 7 : index
    %c0_185 = arith.constant 0 : index
    %196 = vector.load %arg11[%c7_184, %c0_185] : memref<9x256xf32, #tpu.memory_space<vmem>>, vector<1x256xf32>
    %197 = vector.broadcast %196 : vector<1x256xf32> to vector<8x256xf32>
    %198 = arith.mulf %195, %197 : vector<8x256xf32>
    %c56_186 = arith.constant 56 : index
    %c0_187 = arith.constant 0 : index
    %199 = vector.load %arg19[%c56_186, %c0_187] : memref<144x256xf32, #tpu.memory_space<vmem>>, vector<8x256xf32>
    tpu.vector_store %arg19[%c56_186, %c0_187], %198 {strides = array<i32>} : memref<144x256xf32, #tpu.memory_space<vmem>>, vector<8x256xf32>,
    %c0_188 = arith.constant 0 : index
    %c68_189 = arith.constant 68 : index
    %200 = vector.load %arg18[%c0_188, %c68_189] : memref<16x324xf32, #tpu.memory_space<vmem>>, vector<8x256xf32>
    %c8_190 = arith.constant 8 : index
    %c0_191 = arith.constant 0 : index
    %201 = vector.load %arg11[%c8_190, %c0_191] : memref<9x256xf32, #tpu.memory_space<vmem>>, vector<1x256xf32>
    %202 = vector.broadcast %201 : vector<1x256xf32> to vector<8x256xf32>
    %203 = arith.mulf %200, %202 : vector<8x256xf32>
    %c64_192 = arith.constant 64 : index
    %c0_193 = arith.constant 0 : index
    %204 = vector.load %arg19[%c64_192, %c0_193] : memref<144x256xf32, #tpu.memory_space<vmem>>, vector<8x256xf32>
    tpu.vector_store %arg19[%c64_192, %c0_193], %203 {strides = array<i32>} : memref<144x256xf32, #tpu.memory_space<vmem>>, vector<8x256xf32>,
    %c0_194 = arith.constant 0 : index
    %c0_195 = arith.constant 0 : index
    %205 = vector.load %arg19[%c0_194, %c0_195] : memref<144x256xf32, #tpu.memory_space<vmem>>, vector<72x256xf32>
    %206 = arith.truncf %205 : vector<72x256xf32> to vector<72x256xbf16>
    %c0_196 = arith.constant 0 : index
    %c0_197 = arith.constant 0 : index
    %207 = vector.load %arg4[%c0_196, %c0_197] : memref<16x72xbf16, #tpu.memory_space<vmem>>, vector<16x72xbf16>
    %cst_198 = arith.constant dense<0.000000e+00> : vector<16x256xf32>
    %208 = tpu.matmul %207, %206, %cst_198 {dimension_numbers = #tpu.dot_dimension_numbers<[1], [0], [0], [1], [0, 0, 1, 1], [], []>} : vector<16x72xbf16>, vector<72x256xbf16>, vector<16x256xf32> -> vector<16x256xf32>
    %c0_199 = arith.constant 0 : index
    %c0_200 = arith.constant 0 : index
    %209 = vector.load %arg8[%c0_199, %c0_200] : memref<16x1xf32, #tpu.memory_space<vmem>>, vector<16x1xf32>
    %210 = vector.broadcast %209 : vector<16x1xf32> to vector<16x256xf32>
    %211 = arith.addf %208, %210 : vector<16x256xf32>
    %cst_201 = arith.constant 0.000000e+00 : f32
    %212 = vector.broadcast %cst_201 : f32 to vector<16x256xf32>
    %213 = arith.maximumf %211, %212 : vector<16x256xf32>
    %c0_202 = arith.constant 0 : index
    %c34_203 = arith.constant 34 : index
    %214 = vector.load %arg18[%c0_202, %c34_203] : memref<16x324xf32, #tpu.memory_space<vmem>>, vector<16x256xf32>
    tpu.vector_store %arg18[%c0_202, %c34_203], %213 {strides = array<i32>} : memref<16x324xf32, #tpu.memory_space<vmem>>, vector<16x256xf32>,
    %c0_204 = arith.constant 0 : index
    %c0_205 = arith.constant 0 : index
    %215 = vector.load %arg18[%c0_204, %c0_205] : memref<16x324xf32, #tpu.memory_space<vmem>>, vector<16x256xf32>
    %c0_206 = arith.constant 0 : index
    %c0_207 = arith.constant 0 : index
    %216 = vector.load %arg11[%c0_206, %c0_207] : memref<9x256xf32, #tpu.memory_space<vmem>>, vector<1x256xf32>
    %217 = vector.broadcast %216 : vector<1x256xf32> to vector<16x256xf32>
    %218 = arith.mulf %215, %217 : vector<16x256xf32>
    %c0_208 = arith.constant 0 : index
    %c0_209 = arith.constant 0 : index
    %219 = vector.load %arg19[%c0_208, %c0_209] : memref<144x256xf32, #tpu.memory_space<vmem>>, vector<16x256xf32>
    tpu.vector_store %arg19[%c0_208, %c0_209], %218 {strides = array<i32>} : memref<144x256xf32, #tpu.memory_space<vmem>>, vector<16x256xf32>,
    %c0_210 = arith.constant 0 : index
    %c2_211 = arith.constant 2 : index
    %220 = vector.load %arg18[%c0_210, %c2_211] : memref<16x324xf32, #tpu.memory_space<vmem>>, vector<16x256xf32>
    %c1_212 = arith.constant 1 : index
    %c0_213 = arith.constant 0 : index
    %221 = vector.load %arg11[%c1_212, %c0_213] : memref<9x256xf32, #tpu.memory_space<vmem>>, vector<1x256xf32>
    %222 = vector.broadcast %221 : vector<1x256xf32> to vector<16x256xf32>
    %223 = arith.mulf %220, %222 : vector<16x256xf32>
    %c16_214 = arith.constant 16 : index
    %c0_215 = arith.constant 0 : index
    %224 = vector.load %arg19[%c16_214, %c0_215] : memref<144x256xf32, #tpu.memory_space<vmem>>, vector<16x256xf32>
    tpu.vector_store %arg19[%c16_214, %c0_215], %223 {strides = array<i32>} : memref<144x256xf32, #tpu.memory_space<vmem>>, vector<16x256xf32>,
    %c0_216 = arith.constant 0 : index
    %c4_217 = arith.constant 4 : index
    %225 = vector.load %arg18[%c0_216, %c4_217] : memref<16x324xf32, #tpu.memory_space<vmem>>, vector<16x256xf32>
    %c2_218 = arith.constant 2 : index
    %c0_219 = arith.constant 0 : index
    %226 = vector.load %arg11[%c2_218, %c0_219] : memref<9x256xf32, #tpu.memory_space<vmem>>, vector<1x256xf32>
    %227 = vector.broadcast %226 : vector<1x256xf32> to vector<16x256xf32>
    %228 = arith.mulf %225, %227 : vector<16x256xf32>
    %c32_220 = arith.constant 32 : index
    %c0_221 = arith.constant 0 : index
    %229 = vector.load %arg19[%c32_220, %c0_221] : memref<144x256xf32, #tpu.memory_space<vmem>>, vector<16x256xf32>
    tpu.vector_store %arg19[%c32_220, %c0_221], %228 {strides = array<i32>} : memref<144x256xf32, #tpu.memory_space<vmem>>, vector<16x256xf32>,
    %c0_222 = arith.constant 0 : index
    %c32_223 = arith.constant 32 : index
    %230 = vector.load %arg18[%c0_222, %c32_223] : memref<16x324xf32, #tpu.memory_space<vmem>>, vector<16x256xf32>
    %c3_224 = arith.constant 3 : index
    %c0_225 = arith.constant 0 : index
    %231 = vector.load %arg11[%c3_224, %c0_225] : memref<9x256xf32, #tpu.memory_space<vmem>>, vector<1x256xf32>
    %232 = vector.broadcast %231 : vector<1x256xf32> to vector<16x256xf32>
    %233 = arith.mulf %230, %232 : vector<16x256xf32>
    %c48_226 = arith.constant 48 : index
    %c0_227 = arith.constant 0 : index
    %234 = vector.load %arg19[%c48_226, %c0_227] : memref<144x256xf32, #tpu.memory_space<vmem>>, vector<16x256xf32>
    tpu.vector_store %arg19[%c48_226, %c0_227], %233 {strides = array<i32>} : memref<144x256xf32, #tpu.memory_space<vmem>>, vector<16x256xf32>,
    %c0_228 = arith.constant 0 : index
    %c34_229 = arith.constant 34 : index
    %235 = vector.load %arg18[%c0_228, %c34_229] : memref<16x324xf32, #tpu.memory_space<vmem>>, vector<16x256xf32>
    %c4_230 = arith.constant 4 : index
    %c0_231 = arith.constant 0 : index
    %236 = vector.load %arg11[%c4_230, %c0_231] : memref<9x256xf32, #tpu.memory_space<vmem>>, vector<1x256xf32>
    %237 = vector.broadcast %236 : vector<1x256xf32> to vector<16x256xf32>
    %238 = arith.mulf %235, %237 : vector<16x256xf32>
    %c64_232 = arith.constant 64 : index
    %c0_233 = arith.constant 0 : index
    %239 = vector.load %arg19[%c64_232, %c0_233] : memref<144x256xf32, #tpu.memory_space<vmem>>, vector<16x256xf32>
    tpu.vector_store %arg19[%c64_232, %c0_233], %238 {strides = array<i32>} : memref<144x256xf32, #tpu.memory_space<vmem>>, vector<16x256xf32>,
    %c0_234 = arith.constant 0 : index
    %c36_235 = arith.constant 36 : index
    %240 = vector.load %arg18[%c0_234, %c36_235] : memref<16x324xf32, #tpu.memory_space<vmem>>, vector<16x256xf32>
    %c5_236 = arith.constant 5 : index
    %c0_237 = arith.constant 0 : index
    %241 = vector.load %arg11[%c5_236, %c0_237] : memref<9x256xf32, #tpu.memory_space<vmem>>, vector<1x256xf32>
    %242 = vector.broadcast %241 : vector<1x256xf32> to vector<16x256xf32>
    %243 = arith.mulf %240, %242 : vector<16x256xf32>
    %c80 = arith.constant 80 : index
    %c0_238 = arith.constant 0 : index
    %244 = vector.load %arg19[%c80, %c0_238] : memref<144x256xf32, #tpu.memory_space<vmem>>, vector<16x256xf32>
    tpu.vector_store %arg19[%c80, %c0_238], %243 {strides = array<i32>} : memref<144x256xf32, #tpu.memory_space<vmem>>, vector<16x256xf32>,
    %c0_239 = arith.constant 0 : index
    %c64_240 = arith.constant 64 : index
    %245 = vector.load %arg18[%c0_239, %c64_240] : memref<16x324xf32, #tpu.memory_space<vmem>>, vector<16x256xf32>
    %c6_241 = arith.constant 6 : index
    %c0_242 = arith.constant 0 : index
    %246 = vector.load %arg11[%c6_241, %c0_242] : memref<9x256xf32, #tpu.memory_space<vmem>>, vector<1x256xf32>
    %247 = vector.broadcast %246 : vector<1x256xf32> to vector<16x256xf32>
    %248 = arith.mulf %245, %247 : vector<16x256xf32>
    %c96 = arith.constant 96 : index
    %c0_243 = arith.constant 0 : index
    %249 = vector.load %arg19[%c96, %c0_243] : memref<144x256xf32, #tpu.memory_space<vmem>>, vector<16x256xf32>
    tpu.vector_store %arg19[%c96, %c0_243], %248 {strides = array<i32>} : memref<144x256xf32, #tpu.memory_space<vmem>>, vector<16x256xf32>,
    %c0_244 = arith.constant 0 : index
    %c66_245 = arith.constant 66 : index
    %250 = vector.load %arg18[%c0_244, %c66_245] : memref<16x324xf32, #tpu.memory_space<vmem>>, vector<16x256xf32>
    %c7_246 = arith.constant 7 : index
    %c0_247 = arith.constant 0 : index
    %251 = vector.load %arg11[%c7_246, %c0_247] : memref<9x256xf32, #tpu.memory_space<vmem>>, vector<1x256xf32>
    %252 = vector.broadcast %251 : vector<1x256xf32> to vector<16x256xf32>
    %253 = arith.mulf %250, %252 : vector<16x256xf32>
    %c112 = arith.constant 112 : index
    %c0_248 = arith.constant 0 : index
    %254 = vector.load %arg19[%c112, %c0_248] : memref<144x256xf32, #tpu.memory_space<vmem>>, vector<16x256xf32>
    tpu.vector_store %arg19[%c112, %c0_248], %253 {strides = array<i32>} : memref<144x256xf32, #tpu.memory_space<vmem>>, vector<16x256xf32>,
    %c0_249 = arith.constant 0 : index
    %c68_250 = arith.constant 68 : index
    %255 = vector.load %arg18[%c0_249, %c68_250] : memref<16x324xf32, #tpu.memory_space<vmem>>, vector<16x256xf32>
    %c8_251 = arith.constant 8 : index
    %c0_252 = arith.constant 0 : index
    %256 = vector.load %arg11[%c8_251, %c0_252] : memref<9x256xf32, #tpu.memory_space<vmem>>, vector<1x256xf32>
    %257 = vector.broadcast %256 : vector<1x256xf32> to vector<16x256xf32>
    %258 = arith.mulf %255, %257 : vector<16x256xf32>
    %c128 = arith.constant 128 : index
    %c0_253 = arith.constant 0 : index
    %259 = vector.load %arg19[%c128, %c0_253] : memref<144x256xf32, #tpu.memory_space<vmem>>, vector<16x256xf32>
    tpu.vector_store %arg19[%c128, %c0_253], %258 {strides = array<i32>} : memref<144x256xf32, #tpu.memory_space<vmem>>, vector<16x256xf32>,
    %c0_254 = arith.constant 0 : index
    %c0_255 = arith.constant 0 : index
    %260 = vector.load %arg19[%c0_254, %c0_255] : memref<144x256xf32, #tpu.memory_space<vmem>>, vector<144x256xf32>
    %261 = arith.truncf %260 : vector<144x256xf32> to vector<144x256xbf16>
    %c0_256 = arith.constant 0 : index
    %c0_257 = arith.constant 0 : index
    %262 = vector.load %arg5[%c0_256, %c0_257] : memref<16x144xbf16, #tpu.memory_space<vmem>>, vector<16x144xbf16>
    %cst_258 = arith.constant dense<0.000000e+00> : vector<16x256xf32>
    %263 = tpu.matmul %262, %261, %cst_258 {dimension_numbers = #tpu.dot_dimension_numbers<[1], [0], [0], [1], [0, 0, 1, 1], [], []>} : vector<16x144xbf16>, vector<144x256xbf16>, vector<16x256xf32> -> vector<16x256xf32>
    %c0_259 = arith.constant 0 : index
    %c0_260 = arith.constant 0 : index
    %264 = vector.load %arg9[%c0_259, %c0_260] : memref<16x1xf32, #tpu.memory_space<vmem>>, vector<16x1xf32>
    %265 = vector.broadcast %264 : vector<16x1xf32> to vector<16x256xf32>
    %266 = arith.addf %263, %265 : vector<16x256xf32>
    %cst_261 = arith.constant 0.000000e+00 : f32
    %267 = vector.broadcast %cst_261 : f32 to vector<16x256xf32>
    %268 = arith.maximumf %266, %267 : vector<16x256xf32>
    %c0_262 = arith.constant 0 : index
    %c0_263 = arith.constant 0 : index
    %269 = vector.load %arg14[%c0_262, %c0_263] : memref<12x16xf32, #tpu.memory_space<vmem>>, vector<12x16xf32>
    %cst_264 = arith.constant dense<0.000000e+00> : vector<12x256xf32>
    %270 = tpu.matmul %269, %268, %cst_264 {dimension_numbers = #tpu.dot_dimension_numbers<[1], [0], [0], [1], [0, 0, 1, 1], [], []>} : vector<12x16xf32>, vector<16x256xf32>, vector<12x256xf32> -> vector<12x256xf32>
    %c0_265 = arith.constant 0 : index
    %c0_266 = arith.constant 0 : index
    %271 = vector.load %arg13[%c0_265, %c0_266] : memref<1x256xf32, #tpu.memory_space<vmem>>, vector<1x256xf32>
    %272 = vector.broadcast %271 : vector<1x256xf32> to vector<12x256xf32>
    %273 = arith.mulf %270, %272 : vector<12x256xf32>
    %cst_267 = arith.constant dense<0.000000e+00> : vector<12xf32>
    %274 = vector.multi_reduction <add>, %273, %cst_267 [1] : vector<12x256xf32> to vector<12xf32>
    %275 = vector.shape_cast %274 : vector<12xf32> to vector<12x1xf32>
    %c0_268 = arith.constant 0 : index
    %c0_269 = arith.constant 0 : index
    %276 = vector.load %arg15[%c0_268, %c0_269] : memref<12x1xf32, #tpu.memory_space<vmem>>, vector<12x1xf32>
    %277 = arith.addf %275, %276 : vector<12x1xf32>
    %278 = vector.extract_strided_slice %277 {offsets = [0, 0], sizes = [6, 1], strides = [1, 1]} : vector<12x1xf32> to vector<6x1xf32>
    %279 = vector.extract_strided_slice %277 {offsets = [6, 0], sizes = [6, 1], strides = [1, 1]} : vector<12x1xf32> to vector<6x1xf32>
    %c0_270 = arith.constant 0 : index
    %c0_271 = arith.constant 0 : index
    %c0_272 = arith.constant 0 : index
    %280 = vector.load %arg16[%c0_270, %c0_271, %c0_272] : memref<1x6x1xf32, #tpu.memory_space<vmem>>, vector<1x6x1xf32>
    %281 = vector.shape_cast %280 : vector<1x6x1xf32> to vector<6x1xf32>
    %cst_273 = arith.constant 5.000000e-01 : f32
    %282 = vector.broadcast %cst_273 : f32 to vector<6x1xf32>
    %283 = arith.mulf %282, %279 : vector<6x1xf32>
    %284 = math.exp %283 : vector<6x1xf32>
    %285 = arith.mulf %281, %284 : vector<6x1xf32>
    %286 = arith.addf %285, %278 : vector<6x1xf32>
    %c0_274 = arith.constant 0 : index
    %c0_275 = arith.constant 0 : index
    %c0_276 = arith.constant 0 : index
    %287 = vector.load %arg17[%c0_274, %c0_275, %c0_276] : memref<1x6x1xf32, #tpu.memory_space<vmem>>, vector<1x6x1xf32>
    %288 = vector.shape_cast %287 : vector<1x6x1xf32> to vector<6x1xf32>
    %289 = vector.shape_cast %286 : vector<6x1xf32> to vector<1x6x1xf32>
    tpu.vector_store %arg17[%c0_274, %c0_275, %c0_276], %289 {strides = array<i32>} : memref<1x6x1xf32, #tpu.memory_space<vmem>>, vector<1x6x1xf32>,
    return
  }
  func.func @transform_0(%arg0: i32) -> (i32, i32, i32) {
    %c0_i32 = arith.constant 0 : i32
    %c0_i32_0 = arith.constant 0 : i32
    %c0_i32_1 = arith.constant 0 : i32
    return %arg0, %c0_i32, %c0_i32_0 : i32, i32, i32
  }
  func.func @transform_1(%arg0: i32) -> (i32, i32) {
    %c0_i32 = arith.constant 0 : i32
    %c0_i32_0 = arith.constant 0 : i32
    %c0_i32_1 = arith.constant 0 : i32
    return %c0_i32, %c0_i32_0 : i32, i32
  }
  func.func @transform_2(%arg0: i32) -> (i32, i32) {
    %c0_i32 = arith.constant 0 : i32
    %c0_i32_0 = arith.constant 0 : i32
    %c0_i32_1 = arith.constant 0 : i32
    return %c0_i32, %c0_i32_0 : i32, i32
  }
  func.func @transform_3(%arg0: i32) -> (i32, i32) {
    %c0_i32 = arith.constant 0 : i32
    %c0_i32_0 = arith.constant 0 : i32
    %c0_i32_1 = arith.constant 0 : i32
    return %c0_i32, %c0_i32_0 : i32, i32
  }
  func.func @transform_4(%arg0: i32) -> (i32, i32) {
    %c0_i32 = arith.constant 0 : i32
    %c0_i32_0 = arith.constant 0 : i32
    %c0_i32_1 = arith.constant 0 : i32
    return %c0_i32, %c0_i32_0 : i32, i32
  }
  func.func @transform_5(%arg0: i32) -> (i32, i32) {
    %c0_i32 = arith.constant 0 : i32
    %c0_i32_0 = arith.constant 0 : i32
    %c0_i32_1 = arith.constant 0 : i32
    return %c0_i32, %c0_i32_0 : i32, i32
  }
  func.func @transform_6(%arg0: i32) -> (i32, i32) {
    %c0_i32 = arith.constant 0 : i32
    %c0_i32_0 = arith.constant 0 : i32
    %c0_i32_1 = arith.constant 0 : i32
    return %c0_i32, %c0_i32_0 : i32, i32
  }
  func.func @transform_7(%arg0: i32) -> (i32, i32) {
    %c0_i32 = arith.constant 0 : i32
    %c0_i32_0 = arith.constant 0 : i32
    %c0_i32_1 = arith.constant 0 : i32
    return %c0_i32, %c0_i32_0 : i32, i32
  }
  func.func @transform_8(%arg0: i32) -> (i32, i32) {
    %c0_i32 = arith.constant 0 : i32
    %c0_i32_0 = arith.constant 0 : i32
    %c0_i32_1 = arith.constant 0 : i32
    return %c0_i32, %c0_i32_0 : i32, i32
  }
  func.func @transform_9(%arg0: i32) -> (i32, i32) {
    %c0_i32 = arith.constant 0 : i32
    %c0_i32_0 = arith.constant 0 : i32
    %c0_i32_1 = arith.constant 0 : i32
    return %c0_i32, %c0_i32_0 : i32, i32
  }
  func.func @transform_10(%arg0: i32) -> (i32, i32) {
    %c0_i32 = arith.constant 0 : i32
    %c0_i32_0 = arith.constant 0 : i32
    %c0_i32_1 = arith.constant 0 : i32
    return %c0_i32, %c0_i32_0 : i32, i32
  }
  func.func @transform_11(%arg0: i32) -> (i32, i32) {
    %c0_i32 = arith.constant 0 : i32
    %c0_i32_0 = arith.constant 0 : i32
    %c0_i32_1 = arith.constant 0 : i32
    return %c0_i32, %c0_i32_0 : i32, i32
  }
  func.func @transform_12(%arg0: i32) -> (i32, i32) {
    %c0_i32 = arith.constant 0 : i32
    %c0_i32_0 = arith.constant 0 : i32
    %c0_i32_1 = arith.constant 0 : i32
    return %c0_i32, %c0_i32_0 : i32, i32
  }
  func.func @transform_13(%arg0: i32) -> (i32, i32) {
    %c0_i32 = arith.constant 0 : i32
    %c0_i32_0 = arith.constant 0 : i32
    %c0_i32_1 = arith.constant 0 : i32
    return %c0_i32, %c0_i32_0 : i32, i32
  }
  func.func @transform_14(%arg0: i32) -> (i32, i32) {
    %c0_i32 = arith.constant 0 : i32
    %c0_i32_0 = arith.constant 0 : i32
    %c0_i32_1 = arith.constant 0 : i32
    return %c0_i32, %c0_i32_0 : i32, i32
  }
  func.func @transform_15(%arg0: i32) -> (i32, i32, i32) {
    %c0_i32 = arith.constant 0 : i32
    %c0_i32_0 = arith.constant 0 : i32
    %c0_i32_1 = arith.constant 0 : i32
    return %arg0, %c0_i32, %c0_i32_0 : i32, i32, i32
  }
  func.func @transform_16(%arg0: i32) -> (i32, i32, i32) {
    %c0_i32 = arith.constant 0 : i32
    %c0_i32_0 = arith.constant 0 : i32
    %c0_i32_1 = arith.constant 0 : i32
    return %arg0, %c0_i32, %c0_i32_0 : i32, i32, i32
  }
}

</mosaic_0001>

<llo_original>
// kernel: _forward_impl.1
$region0: #{_forward_impl.1}
  #allocation0 [shape = 'u32[]', space=smem, size = 0x4, offset = 0x4, fixed_abs, tag = 'smem constant byte address 0x4 - core index']
  #allocation1 [shape = 'u32[72,128]{1,0:T(1,128)}', space=vmem, size = 0x9000, scoped, tag = 'internal scratch']
  #allocation2 [shape = 'f32[16,324]{1,0:T(8,128)}', space=vmem, size = 0x6000, scoped, tag = 'scratch operand']
  #allocation3 [shape = 'f32[144,256]{1,0:T(8,128)}', space=vmem, size = 0x24000, scoped, tag = 'scratch operand']
  %s0 = inlined_call_operand.vmem [shape: f32[2,4,256], index: 0, kind: input, shape index: {}]
  %s1 = inlined_call_operand.vmem [shape: bf16[8,36], index: 1, kind: input, shape index: {}]
  %s2 = inlined_call_operand.vmem [shape: bf16[8,72], index: 2, kind: input, shape index: {}]
  %s3 = inlined_call_operand.vmem [shape: bf16[16,72], index: 3, kind: input, shape index: {}]
  %s4 = inlined_call_operand.vmem [shape: bf16[16,144], index: 4, kind: input, shape index: {}]
  %s5 = inlined_call_operand.vmem [shape: f32[8,1], index: 5, kind: input, shape index: {}]
  %s6 = inlined_call_operand.vmem [shape: f32[8,1], index: 6, kind: input, shape index: {}]
  %s7 = inlined_call_operand.vmem [shape: f32[16,1], index: 7, kind: input, shape index: {}]
  %s8 = inlined_call_operand.vmem [shape: f32[16,1], index: 8, kind: input, shape index: {}]
  %s9 = inlined_call_operand.vmem [shape: f32[9,256], index: 9, kind: input, shape index: {}]
  %s10 = inlined_call_operand.vmem [shape: f32[9,256], index: 10, kind: input, shape index: {}]
  %s11 = inlined_call_operand.vmem [shape: f32[9,256], index: 11, kind: input, shape index: {}]
  %s12 = inlined_call_operand.vmem [shape: f32[1,256], index: 12, kind: input, shape index: {}]
  %s13 = inlined_call_operand.vmem [shape: f32[12,16], index: 13, kind: input, shape index: {}]
  %s14 = inlined_call_operand.vmem [shape: f32[12,1], index: 14, kind: input, shape index: {}]
  %s15 = inlined_call_operand.vmem [shape: f32[2,6,1], index: 15, kind: input, shape index: {}]
  %s16 = inlined_call_operand.vmem [shape: f32[2,6,1], index: 16, kind: output, shape index: {}]
  %s17 = sld [smem:[#allocation0]]
  $region97: #{_forward_impl.1} parent=0
    _
  %s19 = ssub.s32 1, %s17
  %s20 = scalar_select 0, %s19, %s17
  loop: start=0, step=1, limit=4
  $region2: #{_forward_impl.1} parent=0 // loop_pre_header
    _
  $region3: #{_forward_impl.1} parent=0 // loop_header
    %s22 = sphi 0, %s26
    %p23 = scmp.ge.s32.totalorder %s22, 4
    %s32 = sphi 0, %s34
    %s35 = sphi 0, %s32
    %s36 = sphi 0, %s35
    %s52 = sphi 0, %s36
    %s56 = sphi 0, %s56
    %s58 = sphi 0, %s56
    %s59 = sphi 0, %s58
    %s73 = sphi 0, %s59
    %s77 = sphi 0, %s77
    %s79 = sphi 0, %s77
    %s80 = sphi 0, %s79
    %s94 = sphi 0, %s80
    %s98 = sphi 0, %s98
    %s100 = sphi 0, %s98
    %s101 = sphi 0, %s100
    %s115 = sphi 0, %s101
    %s119 = sphi 0, %s119
    %s121 = sphi 0, %s119
    %s122 = sphi 0, %s121
    %s136 = sphi 0, %s122
    %s140 = sphi 0, %s140
    %s142 = sphi 0, %s140
    %s143 = sphi 0, %s142
    %s157 = sphi 0, %s143
    %s161 = sphi 0, %s161
    %s163 = sphi 0, %s161
    %s164 = sphi 0, %s163
    %s178 = sphi 0, %s164
    %s182 = sphi 0, %s182
    %s184 = sphi 0, %s182
    %s185 = sphi 0, %s184
    %s199 = sphi 0, %s185
    %s203 = sphi 0, %s203
    %s205 = sphi 0, %s203
    %s206 = sphi 0, %s205
    %s220 = sphi 0, %s206
    %s224 = sphi 0, %s224
    %s226 = sphi 0, %s224
    %s227 = sphi 0, %s226
    %s241 = sphi 0, %s227
    %s245 = sphi 0, %s245
    %s247 = sphi 0, %s245
    %s248 = sphi 0, %s247
    %s262 = sphi 0, %s248
    %s266 = sphi 0, %s266
    %s268 = sphi 0, %s266
    %s269 = sphi 0, %s268
    %s283 = sphi 0, %s269
    %s287 = sphi 0, %s287
    %s289 = sphi 0, %s287
    %s290 = sphi 0, %s289
    %s304 = sphi 0, %s290
    %s308 = sphi 0, %s308
    %s310 = sphi 0, %s308
    %s311 = sphi 0, %s310
    %s325 = sphi 0, %s311
    %s329 = sphi 0, %s329
    %s331 = sphi 0, %s329
    %s332 = sphi 0, %s331
    %s346 = sphi 0, %s332
    %s352 = sphi 0, %s354
    %s355 = sphi 0, %s352
    %s356 = sphi 0, %s355
    %s372 = sphi 0, %s356
    %s378 = sphi 0, %s380
    %s381 = sphi 0, %s378
    %s382 = sphi 0, %s381
    %s398 = sphi 0, %s382
  $region4: #{_forward_impl.1} parent=0 // loop_header_branch
    %25 = sbr.rel (%p23) target = $region8
  $region5: #{_forward_impl.1} parent=0 // loop_body
    %s27 = ssub.s32 %s22, 1
    %s28 = ssub.s32 %s22, 2
    %s29 = sadd.s32 %s22, 1
    %s30 = ssub.s32 %s22, %s29
    %p31 = scmp.eq.s32.totalorder %s30, 0
    %s33 = sadd.s32 %s32, 1
    %s34 = scalar_select %p31, %s32, %s33
    %p37 = pneg %p31
    %p38 = scmp.eq.s32.totalorder %s22, 1
    %p39 = por %p37, %p38
    %p40 = scmp.ne.s32.totalorder %s32, %s35
    %p41 = scmp.eq.s32.totalorder %s22, 0
    %p42 = por %p40, %p41
    %p43 = scmp.ne.s32.totalorder %s32, %s35
    %p44 = scmp.eq.s32.totalorder %s27, 1
    %p45 = por %p43, %p44
    %p46 = scmp.ne.s32.totalorder %s35, %s36
    %p47 = scmp.eq.s32.totalorder %s27, 0
    %p48 = por %p46, %p47
    %p49 = scmp.ne.s32.totalorder %s35, %s36
    %p50 = scmp.eq.s32.totalorder %s28, 1
    %p51 = por %p49, %p50
    %p53 = scmp.ne.s32.totalorder %s36, %s52
    %p54 = scmp.eq.s32.totalorder %s28, 0
    %p55 = por %p53, %p54
    %s57 = sadd.s32 %s56, 1
    %p60 = scmp.eq.s32.totalorder %s22, 1
    %p61 = scmp.ne.s32.totalorder %s56, %s58
    %p62 = scmp.eq.s32.totalorder %s22, 0
    %p63 = por %p61, %p62
    %p64 = scmp.ne.s32.totalorder %s56, %s58
    %p65 = scmp.eq.s32.totalorder %s27, 1
    %p66 = por %p64, %p65
    %p67 = scmp.ne.s32.totalorder %s58, %s59
    %p68 = scmp.eq.s32.totalorder %s27, 0
    %p69 = por %p67, %p68
    %p70 = scmp.ne.s32.totalorder %s58, %s59
    %p71 = scmp.eq.s32.totalorder %s28, 1
    %p72 = por %p70, %p71
    %p74 = scmp.ne.s32.totalorder %s59, %s73
    %p75 = scmp.eq.s32.totalorder %s28, 0
    %p76 = por %p74, %p75
    %s78 = sadd.s32 %s77, 1
    %p81 = scmp.eq.s32.totalorder %s22, 1
    %p82 = scmp.ne.s32.totalorder %s77, %s79
    %p83 = scmp.eq.s32.totalorder %s22, 0
    %p84 = por %p82, %p83
    %p85 = scmp.ne.s32.totalorder %s77, %s79
    %p86 = scmp.eq.s32.totalorder %s27, 1
    %p87 = por %p85, %p86
    %p88 = scmp.ne.s32.totalorder %s79, %s80
    %p89 = scmp.eq.s32.totalorder %s27, 0
    %p90 = por %p88, %p89
    %p91 = scmp.ne.s32.totalorder %s79, %s80
    %p92 = scmp.eq.s32.totalorder %s28, 1
    %p93 = por %p91, %p92
    %p95 = scmp.ne.s32.totalorder %s80, %s94
    %p96 = scmp.eq.s32.totalorder %s28, 0
    %p97 = por %p95, %p96
    %s99 = sadd.s32 %s98, 1
    %p102 = scmp.eq.s32.totalorder %s22, 1
    %p103 = scmp.ne.s32.totalorder %s98, %s100
    %p104 = scmp.eq.s32.totalorder %s22, 0
    %p105 = por %p103, %p104
    %p106 = scmp.ne.s32.totalorder %s98, %s100
    %p107 = scmp.eq.s32.totalorder %s27, 1
    %p108 = por %p106, %p107
    %p109 = scmp.ne.s32.totalorder %s100, %s101
    %p110 = scmp.eq.s32.totalorder %s27, 0
    %p111 = por %p109, %p110
    %p112 = scmp.ne.s32.totalorder %s100, %s101
    %p113 = scmp.eq.s32.totalorder %s28, 1
    %p114 = por %p112, %p113
    %p116 = scmp.ne.s32.totalorder %s101, %s115
    %p117 = scmp.eq.s32.totalorder %s28, 0
    %p118 = por %p116, %p117
    %s120 = sadd.s32 %s119, 1
    %p123 = scmp.eq.s32.totalorder %s22, 1
    %p124 = scmp.ne.s32.totalorder %s119, %s121
    %p125 = scmp.eq.s32.totalorder %s22, 0
    %p126 = por %p124, %p125
    %p127 = scmp.ne.s32.totalorder %s119, %s121
    %p128 = scmp.eq.s32.totalorder %s27, 1
    %p129 = por %p127, %p128
    %p130 = scmp.ne.s32.totalorder %s121, %s122
    %p131 = scmp.eq.s32.totalorder %s27, 0
    %p132 = por %p130, %p131
    %p133 = scmp.ne.s32.totalorder %s121, %s122
    %p134 = scmp.eq.s32.totalorder %s28, 1
    %p135 = por %p133, %p134
    %p137 = scmp.ne.s32.totalorder %s122, %s136
    %p138 = scmp.eq.s32.totalorder %s28, 0
    %p139 = por %p137, %p138
    %s141 = sadd.s32 %s140, 1
    %p144 = scmp.eq.s32.totalorder %s22, 1
    %p145 = scmp.ne.s32.totalorder %s140, %s142
    %p146 = scmp.eq.s32.totalorder %s22, 0
    %p147 = por %p145, %p146
    %p148 = scmp.ne.s32.totalorder %s140, %s142
    %p149 = scmp.eq.s32.totalorder %s27, 1
    %p150 = por %p148, %p149
    %p151 = scmp.ne.s32.totalorder %s142, %s143
    %p152 = scmp.eq.s32.totalorder %s27, 0
    %p153 = por %p151, %p152
    %p154 = scmp.ne.s32.totalorder %s142, %s143
    %p155 = scmp.eq.s32.totalorder %s28, 1
    %p156 = por %p154, %p155
    %p158 = scmp.ne.s32.totalorder %s143, %s157
    %p159 = scmp.eq.s32.totalorder %s28, 0
    %p160 = por %p158, %p159
    %s162 = sadd.s32 %s161, 1
    %p165 = scmp.eq.s32.totalorder %s22, 1
    %p166 = scmp.ne.s32.totalorder %s161, %s163
    %p167 = scmp.eq.s32.totalorder %s22, 0
    %p168 = por %p166, %p167
    %p169 = scmp.ne.s32.totalorder %s161, %s163
    %p170 = scmp.eq.s32.totalorder %s27, 1
    %p171 = por %p169, %p170
    %p172 = scmp.ne.s32.totalorder %s163, %s164
    %p173 = scmp.eq.s32.totalorder %s27, 0
    %p174 = por %p172, %p173
    %p175 = scmp.ne.s32.totalorder %s163, %s164
    %p176 = scmp.eq.s32.totalorder %s28, 1
    %p177 = por %p175, %p176
    %p179 = scmp.ne.s32.totalorder %s164, %s178
    %p180 = scmp.eq.s32.totalorder %s28, 0
    %p181 = por %p179, %p180
    %s183 = sadd.s32 %s182, 1
    %p186 = scmp.eq.s32.totalorder %s22, 1
    %p187 = scmp.ne.s32.totalorder %s182, %s184
    %p188 = scmp.eq.s32.totalorder %s22, 0
    %p189 = por %p187, %p188
    %p190 = scmp.ne.s32.totalorder %s182, %s184
    %p191 = scmp.eq.s32.totalorder %s27, 1
    %p192 = por %p190, %p191
    %p193 = scmp.ne.s32.totalorder %s184, %s185
    %p194 = scmp.eq.s32.totalorder %s27, 0
    %p195 = por %p193, %p194
    %p196 = scmp.ne.s32.totalorder %s184, %s185
    %p197 = scmp.eq.s32.totalorder %s28, 1
    %p198 = por %p196, %p197
    %p200 = scmp.ne.s32.totalorder %s185, %s199
    %p201 = scmp.eq.s32.totalorder %s28, 0
    %p202 = por %p200, %p201
    %s204 = sadd.s32 %s203, 1
    %p207 = scmp.eq.s32.totalorder %s22, 1
    %p208 = scmp.ne.s32.totalorder %s203, %s205
    %p209 = scmp.eq.s32.totalorder %s22, 0
    %p210 = por %p208, %p209
    %p211 = scmp.ne.s32.totalorder %s203, %s205
    %p212 = scmp.eq.s32.totalorder %s27, 1
    %p213 = por %p211, %p212
    %p214 = scmp.ne.s32.totalorder %s205, %s206
    %p215 = scmp.eq.s32.totalorder %s27, 0
    %p216 = por %p214, %p215
    %p217 = scmp.ne.s32.totalorder %s205, %s206
    %p218 = scmp.eq.s32.totalorder %s28, 1
    %p219 = por %p217, %p218
    %p221 = scmp.ne.s32.totalorder %s206, %s220
    %p222 = scmp.eq.s32.totalorder %s28, 0
    %p223 = por %p221, %p222
    %s225 = sadd.s32 %s224, 1
    %p228 = scmp.eq.s32.totalorder %s22, 1
    %p229 = scmp.ne.s32.totalorder %s224, %s226
    %p230 = scmp.eq.s32.totalorder %s22, 0
    %p231 = por %p229, %p230
    %p232 = scmp.ne.s32.totalorder %s224, %s226
    %p233 = scmp.eq.s32.totalorder %s27, 1
    %p234 = por %p232, %p233
    %p235 = scmp.ne.s32.totalorder %s226, %s227
    %p236 = scmp.eq.s32.totalorder %s27, 0
    %p237 = por %p235, %p236
    %p238 = scmp.ne.s32.totalorder %s226, %s227
    %p239 = scmp.eq.s32.totalorder %s28, 1
    %p240 = por %p238, %p239
    %p242 = scmp.ne.s32.totalorder %s227, %s241
    %p243 = scmp.eq.s32.totalorder %s28, 0
    %p244 = por %p242, %p243
    %s246 = sadd.s32 %s245, 1
    %p249 = scmp.eq.s32.totalorder %s22, 1
    %p250 = scmp.ne.s32.totalorder %s245, %s247
    %p251 = scmp.eq.s32.totalorder %s22, 0
    %p252 = por %p250, %p251
    %p253 = scmp.ne.s32.totalorder %s245, %s247
    %p254 = scmp.eq.s32.totalorder %s27, 1
    %p255 = por %p253, %p254
    %p256 = scmp.ne.s32.totalorder %s247, %s248
    %p257 = scmp.eq.s32.totalorder %s27, 0
    %p258 = por %p256, %p257
    %p259 = scmp.ne.s32.totalorder %s247, %s248
    %p260 = scmp.eq.s32.totalorder %s28, 1
    %p261 = por %p259, %p260
    %p263 = scmp.ne.s32.totalorder %s248, %s262
    %p264 = scmp.eq.s32.totalorder %s28, 0
    %p265 = por %p263, %p264
    %s267 = sadd.s32 %s266, 1
    %p270 = scmp.eq.s32.totalorder %s22, 1
    %p271 = scmp.ne.s32.totalorder %s266, %s268
    %p272 = scmp.eq.s32.totalorder %s22, 0
    %p273 = por %p271, %p272
    %p274 = scmp.ne.s32.totalorder %s266, %s268
    %p275 = scmp.eq.s32.totalorder %s27, 1
    %p276 = por %p274, %p275
    %p277 = scmp.ne.s32.totalorder %s268, %s269
    %p278 = scmp.eq.s32.totalorder %s27, 0
    %p279 = por %p277, %p278
    %p280 = scmp.ne.s32.totalorder %s268, %s269
    %p281 = scmp.eq.s32.totalorder %s28, 1
    %p282 = por %p280, %p281
    %p284 = scmp.ne.s32.totalorder %s269, %s283
    %p285 = scmp.eq.s32.totalorder %s28, 0
    %p286 = por %p284, %p285
    %s288 = sadd.s32 %s287, 1
    %p291 = scmp.eq.s32.totalorder %s22, 1
    %p292 = scmp.ne.s32.totalorder %s287, %s289
    %p293 = scmp.eq.s32.totalorder %s22, 0
    %p294 = por %p292, %p293
    %p295 = scmp.ne.s32.totalorder %s287, %s289
    %p296 = scmp.eq.s32.totalorder %s27, 1
    %p297 = por %p295, %p296
    %p298 = scmp.ne.s32.totalorder %s289, %s290
    %p299 = scmp.eq.s32.totalorder %s27, 0
    %p300 = por %p298, %p299
    %p301 = scmp.ne.s32.totalorder %s289, %s290
    %p302 = scmp.eq.s32.totalorder %s28, 1
    %p303 = por %p301, %p302
    %p305 = scmp.ne.s32.totalorder %s290, %s304
    %p306 = scmp.eq.s32.totalorder %s28, 0
    %p307 = por %p305, %p306
    %s309 = sadd.s32 %s308, 1
    %p312 = scmp.eq.s32.totalorder %s22, 1
    %p313 = scmp.ne.s32.totalorder %s308, %s310
    %p314 = scmp.eq.s32.totalorder %s22, 0
    %p315 = por %p313, %p314
    %p316 = scmp.ne.s32.totalorder %s308, %s310
    %p317 = scmp.eq.s32.totalorder %s27, 1
    %p318 = por %p316, %p317
    %p319 = scmp.ne.s32.totalorder %s310, %s311
    %p320 = scmp.eq.s32.totalorder %s27, 0
    %p321 = por %p319, %p320
    %p322 = scmp.ne.s32.totalorder %s310, %s311
    %p323 = scmp.eq.s32.totalorder %s28, 1
    %p324 = por %p322, %p323
    %p326 = scmp.ne.s32.totalorder %s311, %s325
    %p327 = scmp.eq.s32.totalorder %s28, 0
    %p328 = por %p326, %p327
    %s330 = sadd.s32 %s329, 1
    %p333 = scmp.eq.s32.totalorder %s22, 1
    %p334 = scmp.ne.s32.totalorder %s329, %s331
    %p335 = scmp.eq.s32.totalorder %s22, 0
    %p336 = por %p334, %p335
    %p337 = scmp.ne.s32.totalorder %s329, %s331
    %p338 = scmp.eq.s32.totalorder %s27, 1
    %p339 = por %p337, %p338
    %p340 = scmp.ne.s32.totalorder %s331, %s332
    %p341 = scmp.eq.s32.totalorder %s27, 0
    %p342 = por %p340, %p341
    %p343 = scmp.ne.s32.totalorder %s331, %s332
    %p344 = scmp.eq.s32.totalorder %s28, 1
    %p345 = por %p343, %p344
    %p347 = scmp.ne.s32.totalorder %s332, %s346
    %p348 = scmp.eq.s32.totalorder %s28, 0
    %p349 = por %p347, %p348
    %s350 = ssub.s32 %s22, %s29
    %p351 = scmp.eq.s32.totalorder %s350, 0
    %s353 = sadd.s32 %s352, 1
    %s354 = scalar_select %p351, %s352, %s353
    %p357 = pneg %p351
    %p358 = scmp.eq.s32.totalorder %s22, 1
    %p359 = por %p357, %p358
    %p360 = scmp.ne.s32.totalorder %s352, %s355
    %p361 = scmp.eq.s32.totalorder %s22, 0
    %p362 = por %p360, %p361
    %p363 = scmp.ne.s32.totalorder %s352, %s355
    %p364 = scmp.eq.s32.totalorder %s27, 1
    %p365 = por %p363, %p364
    %p366 = scmp.ne.s32.totalorder %s355, %s356
    %p367 = scmp.eq.s32.totalorder %s27, 0
    %p368 = por %p366, %p367
    %p369 = scmp.ne.s32.totalorder %s355, %s356
    %p370 = scmp.eq.s32.totalorder %s28, 1
    %p371 = por %p369, %p370
    %p373 = scmp.ne.s32.totalorder %s356, %s372
    %p374 = scmp.eq.s32.totalorder %s28, 0
    %p375 = por %p373, %p374
    %s376 = ssub.s32 %s22, %s29
    %p377 = scmp.eq.s32.totalorder %s376, 0
    %s379 = sadd.s32 %s378, 1
    %s380 = scalar_select %p377, %s378, %s379
    %p383 = pneg %p377
    %p384 = scmp.eq.s32.totalorder %s22, 1
    %p385 = por %p383, %p384
    %p386 = scmp.ne.s32.totalorder %s378, %s381
    %p387 = scmp.eq.s32.totalorder %s22, 0
    %p388 = por %p386, %p387
    %p389 = scmp.ne.s32.totalorder %s378, %s381
    %p390 = scmp.eq.s32.totalorder %s27, 1
    %p391 = por %p389, %p390
    %p392 = scmp.ne.s32.totalorder %s381, %s382
    %p393 = scmp.eq.s32.totalorder %s27, 0
    %p394 = por %p392, %p393
    %p395 = scmp.ne.s32.totalorder %s381, %s382
    %p396 = scmp.eq.s32.totalorder %s28, 1
    %p397 = por %p395, %p396
    %p399 = scmp.ne.s32.totalorder %s382, %s398
    %p400 = scmp.eq.s32.totalorder %s28, 0
    %p401 = por %p399, %p400
    %p402 = scmp.le.s32.totalorder 1, %s22
    %p403 = scmp.lt.s32.totalorder %s22, 3
    %p404 = pnand %p402, %p403
    %p405 = pneg %p404
    // Predicated region
    $region9: #{_forward_impl.1} parent=5 // pred_check
      _
    $region10: #{_forward_impl.1} parent=5 // pred_check_branch
      %407 = sbr.rel (%p404) target = $region12
    $region11: #{_forward_impl.1} parent=5 // pred_region
      %s408 = ssub.s32 %s22, 1
      // Predicated region
      $region13: #{_forward_impl.1} parent=11 // pred_check
        %p409 = pneg %p69
      $region14: #{_forward_impl.1} parent=11 // pred_check_branch
        %411 = sbr.rel (%p409) target = $region16
      $region15: #{_forward_impl.1} parent=11 // pred_region
        _
      $region16: #{_forward_impl.1} parent=11 // pred_fallthru
        _
      // Predicated region
      $region17: #{_forward_impl.1} parent=11 // pred_check
        %p412 = pneg %p90
      $region18: #{_forward_impl.1} parent=11 // pred_check_branch
        %414 = sbr.rel (%p412) target = $region20
      $region19: #{_forward_impl.1} parent=11 // pred_region
        _
      $region20: #{_forward_impl.1} parent=11 // pred_fallthru
        _
      // Predicated region
      $region21: #{_forward_impl.1} parent=11 // pred_check
        %p415 = pneg %p111
      $region22: #{_forward_impl.1} parent=11 // pred_check_branch
        %417 = sbr.rel (%p415) target = $region24
      $region23: #{_forward_impl.1} parent=11 // pred_region
        _
      $region24: #{_forward_impl.1} parent=11 // pred_fallthru
        _
      // Predicated region
      $region25: #{_forward_impl.1} parent=11 // pred_check
        %p418 = pneg %p132
      $region26: #{_forward_impl.1} parent=11 // pred_check_branch
        %420 = sbr.rel (%p418) target = $region28
      $region27: #{_forward_impl.1} parent=11 // pred_region
        _
      $region28: #{_forward_impl.1} parent=11 // pred_fallthru
        _
      // Predicated region
      $region29: #{_forward_impl.1} parent=11 // pred_check
        %p421 = pneg %p153
      $region30: #{_forward_impl.1} parent=11 // pred_check_branch
        %423 = sbr.rel (%p421) target = $region32
      $region31: #{_forward_impl.1} parent=11 // pred_region
        _
      $region32: #{_forward_impl.1} parent=11 // pred_fallthru
        _
      // Predicated region
      $region33: #{_forward_impl.1} parent=11 // pred_check
        %p424 = pneg %p174
      $region34: #{_forward_impl.1} parent=11 // pred_check_branch
        %426 = sbr.rel (%p424) target = $region36
      $region35: #{_forward_impl.1} parent=11 // pred_region
        _
      $region36: #{_forward_impl.1} parent=11 // pred_fallthru
        _
      // Predicated region
      $region37: #{_forward_impl.1} parent=11 // pred_check
        %p427 = pneg %p195
      $region38: #{_forward_impl.1} parent=11 // pred_check_branch
        %429 = sbr.rel (%p427) target = $region40
      $region39: #{_forward_impl.1} parent=11 // pred_region
        _
      $region40: #{_forward_impl.1} parent=11 // pred_fallthru
        _
      // Predicated region
      $region41: #{_forward_impl.1} parent=11 // pred_check
        %p430 = pneg %p216
      $region42: #{_forward_impl.1} parent=11 // pred_check_branch
        %432 = sbr.rel (%p430) target = $region44
      $region43: #{_forward_impl.1} parent=11 // pred_region
        _
      $region44: #{_forward_impl.1} parent=11 // pred_fallthru
        _
      // Predicated region
      $region45: #{_forward_impl.1} parent=11 // pred_check
        %p433 = pneg %p237
      $region46: #{_forward_impl.1} parent=11 // pred_check_branch
        %435 = sbr.rel (%p433) target = $region48
      $region47: #{_forward_impl.1} parent=11 // pred_region
        _
      $region48: #{_forward_impl.1} parent=11 // pred_fallthru
        _
      // Predicated region
      $region49: #{_forward_impl.1} parent=11 // pred_check
        %p436 = pneg %p258
      $region50: #{_forward_impl.1} parent=11 // pred_check_branch
        %438 = sbr.rel (%p436) target = $region52
      $region51: #{_forward_impl.1} parent=11 // pred_region
        _
      $region52: #{_forward_impl.1} parent=11 // pred_fallthru
        _
      // Predicated region
      $region53: #{_forward_impl.1} parent=11 // pred_check
        %p439 = pneg %p279
      $region54: #{_forward_impl.1} parent=11 // pred_check_branch
        %441 = sbr.rel (%p439) target = $region56
      $region55: #{_forward_impl.1} parent=11 // pred_region
        _
      $region56: #{_forward_impl.1} parent=11 // pred_fallthru
        _
      // Predicated region
      $region57: #{_forward_impl.1} parent=11 // pred_check
        %p442 = pneg %p300
      $region58: #{_forward_impl.1} parent=11 // pred_check_branch
        %444 = sbr.rel (%p442) target = $region60
      $region59: #{_forward_impl.1} parent=11 // pred_region
        _
      $region60: #{_forward_impl.1} parent=11 // pred_fallthru
        _
      // Predicated region
      $region61: #{_forward_impl.1} parent=11 // pred_check
        %p445 = pneg %p321
      $region62: #{_forward_impl.1} parent=11 // pred_check_branch
        %447 = sbr.rel (%p445) target = $region64
      $region63: #{_forward_impl.1} parent=11 // pred_region
        _
      $region64: #{_forward_impl.1} parent=11 // pred_fallthru
        _
      // Predicated region
      $region65: #{_forward_impl.1} parent=11 // pred_check
        %p448 = pneg %p342
      $region66: #{_forward_impl.1} parent=11 // pred_check_branch
        %450 = sbr.rel (%p448) target = $region68
      $region67: #{_forward_impl.1} parent=11 // pred_region
        _
      $region68: #{_forward_impl.1} parent=11 // pred_fallthru
        _
    $region12: #{_forward_impl.1} parent=5 // pred_fallthru
      _
    %p451 = scmp.lt.s32.totalorder %s22, 2
    // Predicated region
    $region69: #{_forward_impl.1} parent=5 // pred_check
      %p452 = pneg %p451
    $region70: #{_forward_impl.1} parent=5 // pred_check_branch
      %454 = sbr.rel (%p452) target = $region72
    $region71: #{_forward_impl.1} parent=5 // pred_region
      // Predicated region
      $region73: #{_forward_impl.1} parent=71 // pred_check
        %p455 = pneg %p42
      $region74: #{_forward_impl.1} parent=71 // pred_check_branch
        %457 = sbr.rel (%p455) target = $region76
      $region75: #{_forward_impl.1} parent=71 // pred_region
        %p458 = scmp.lt.s32.totalorder %s22, 1
        %s459 = scalar_select %p458, %s22, 1
        %s460 = smul.addr %s459, 2
        %s461 = smul.addr %s460, 4
        %s462 = scalar_lea.vmem %s0, %s461
      $region76: #{_forward_impl.1} parent=71 // pred_fallthru
        _
      // Predicated region
      $region77: #{_forward_impl.1} parent=71 // pred_check
        %p463 = pneg %p362
      $region78: #{_forward_impl.1} parent=71 // pred_check_branch
        %465 = sbr.rel (%p463) target = $region80
      $region79: #{_forward_impl.1} parent=71 // pred_region
        %p466 = scmp.lt.s32.totalorder %s22, 1
        %s467 = scalar_select %p466, %s22, 1
        %s468 = smul.addr %s467, 8
        %s469 = scalar_lea.vmem %s15, %s468
      $region80: #{_forward_impl.1} parent=71 // pred_fallthru
        _
    $region72: #{_forward_impl.1} parent=5 // pred_fallthru
      _
    %p470 = scmp.le.s32.totalorder 1, %s22
    %p471 = scmp.lt.s32.totalorder %s22, 3
    %p472 = pnand %p470, %p471
    %p473 = pneg %p472
    // Predicated region
    $region81: #{_forward_impl.1} parent=5 // pred_check
      _
    $region82: #{_forward_impl.1} parent=5 // pred_check_branch
      %475 = sbr.rel (%p472) target = $region84
    $region83: #{_forward_impl.1} parent=5 // pred_region
      %s476 = ssub.s32 %s22, 1
      %p477 = scmp.lt.s32.totalorder %s27, 1
      %s478 = scalar_select %p477, %s27, 1
      %s479 = smul.addr %s478, 2
      %s480 = smul.addr %s479, 4
      %s481 = scalar_lea.vmem %s0, %s480
      %p482 = pneg %p48
      %p483 = pneg %p45
      %p484 = pneg %p69
      %p485 = pneg %p66
      %p486 = pneg %p90
      %p487 = pneg %p87
      %p488 = pneg %p111
      %p489 = pneg %p108
      %p490 = pneg %p132
      %p491 = pneg %p129
      %p492 = pneg %p153
      %p493 = pneg %p150
      %p494 = pneg %p174
      %p495 = pneg %p171
      %p496 = pneg %p195
      %p497 = pneg %p192
      %p498 = pneg %p216
      %p499 = pneg %p213
      %p500 = pneg %p237
      %p501 = pneg %p234
      %p502 = pneg %p258
      %p503 = pneg %p255
      %p504 = pneg %p279
      %p505 = pneg %p276
      %p506 = pneg %p300
      %p507 = pneg %p297
      %p508 = pneg %p321
      %p509 = pneg %p318
      %p510 = pneg %p342
      %p511 = pneg %p339
      %p512 = scmp.lt.s32.totalorder %s27, 1
      %s513 = scalar_select %p512, %s27, 1
      %s514 = smul.addr %s513, 8
      %s515 = scalar_lea.vmem %s15, %s514
      %p516 = pneg %p368
      %p517 = pneg %p365
      %p518 = pneg %p394
      %p519 = pneg %p391
      %p520 = scmp.lt.s32.totalorder %s27, 1
      %s521 = scalar_select %p520, %s27, 1
      %s522 = smul.addr %s521, 8
      %s523 = scalar_lea.vmem %s16, %s522
      %p524 = scmp.lt.s32.totalorder %s27, 1
      %s525 = scalar_select %p524, %s27, 1
      %s526 = smul.addr %s525, 2
      %s527 = smul.addr %s526, 4
      %s528 = scalar_lea.vmem %s0, %s527
      %p529 = scmp.lt.s32.totalorder %s27, 1
      %s530 = scalar_select %p529, %s27, 1
      %s531 = smul.addr %s530, 8
      %s532 = scalar_lea.vmem %s15, %s531
      %p533 = scmp.lt.s32.totalorder %s27, 1
      %s534 = scalar_select %p533, %s27, 1
      %s535 = smul.addr %s534, 8
      %s536 = scalar_lea.vmem %s16, %s535
      %538 = vst [vmem:[#allocation2] sm:$0xff] 0.0
      %539 = vst [vmem:[#allocation2 + $0x8] sm:$0xff] 0.0
      %vm540 = vcmask 556032
      %541 = vst.msk [vmem:[#allocation2 + $0x10] sm:$0xff] %vm540, 0.0
      %542 = vst [vmem:[#allocation2 + $0x18] sm:$0xff] 0.0
      %543 = vst [vmem:[#allocation2 + $0x20] sm:$0xff] 0.0
      %544 = vst.msk [vmem:[#allocation2 + $0x28] sm:$0xff] %vm540, 0.0
      %v545 = vld [vmem:[%s528] sm:$0xff]
      %547 = vst [vmem:[#allocation1] ss:$2 sm:$0xff] %v545
      %v548 = vld.sshfl [vmem:[#allocation1] sm:$0xff pattern:$0x75316420]
      %v549 = vld.sshfl [vmem:[#allocation1 + $0x8] sm:$0xff pattern:$0x75316420]
      %550 = vrot.lane.b32.xlu0 %v548, 34
      %v551 = vpop.permute.xlu0 %550
      %552 = vrot.lane.b32.xlu0 %v549, 34
      %v553 = vpop.permute.xlu0 %552
      %vm554 = vcmask 277504
      %v555 = vsel %vm554, %v551, %v553
      %vm559 = vcmask 1043728
      %560 = vst.msk [vmem:[#allocation2] sm:$0xf] %vm559, %v551
      %561 = vst [vmem:[#allocation2 + $0x8] sm:$0xf] %v555
      %vm562 = vcmask 273408
      %563 = vst.msk [vmem:[#allocation2 + $0x10] sm:$0xf] %vm562, %v553
      %v564 = vld [vmem:[#allocation2] sm:$0xf]
      %v565 = vld [vmem:[#allocation2 + $0x8] sm:$0xf]
      %v566 = vld [vmem:[#allocation2 + $0x10] sm:$0xf]
      %v567 = vld [vmem:[%s9] ss:$8 sm:$0x3]
      %v569 = vperm.slane %v567, 0
      %v570 = vperm.slane %v567, 1
      %571 = vrot.lane.b32.xlu0 %v569, 17
      %v572 = vpop.permute.xlu0 %571
      %573 = vrot.lane.b32.xlu0 %v570, 17
      %v574 = vpop.permute.xlu0 %573
      %vm575 = vcmask 138240
      %v576 = vsel %vm575, %v572, %v574
      %v580 = vmul.f32 %v564, %v572
      %v581 = vmul.f32 %v565, %v576
      %v582 = vmul.f32 %v566, %v574
      %586 = vrot.lane.b32.xlu0 %v580, 111
      %v587 = vpop.permute.xlu0 %586
      %588 = vrot.lane.b32.xlu0 %v581, 111
      %v589 = vpop.permute.xlu0 %588
      %590 = vrot.lane.b32.xlu0 %v582, 111
      %v591 = vpop.permute.xlu0 %590
      %vm592 = vcmask 908288
      %v593 = vsel %vm592, %v587, %v589
      %v594 = vsel %vm592, %v589, %v591
      %597 = vst [vmem:[#allocation3] sm:$0xf] %v593
      %598 = vst [vmem:[#allocation3 + $0x8] sm:$0xf] %v594
      %v599 = vld [vmem:[#allocation2] sm:$0xf]
      %v600 = vld [vmem:[#allocation2 + $0x8] sm:$0xf]
      %v601 = vld [vmem:[#allocation2 + $0x10] sm:$0xf]
      %s602 = scalar_lea.vmem %s9, 1
      %v603 = vld [vmem:[%s602] ss:$8 sm:$0x3]
      %v605 = vperm.slane %v603, 0
      %v606 = vperm.slane %v603, 1
      %607 = vrot.lane.b32.xlu0 %v605, 18
      %v608 = vpop.permute.xlu0 %607
      %609 = vrot.lane.b32.xlu0 %v606, 18
      %v610 = vpop.permute.xlu0 %609
      %vm611 = vcmask 146432
      %v612 = vsel %vm611, %v608, %v610
      %v616 = vmul.f32 %v599, %v608
      %v617 = vmul.f32 %v600, %v612
      %v618 = vmul.f32 %v601, %v610
      %v622 = vrot.slane %v616, 4
      %v623 = vrot.slane %v617, 4
      %v624 = vrot.slane %v618, 4
      %625 = vrot.lane.b32.xlu0 %v622, 110
      %v626 = vpop.permute.xlu0 %625
      %627 = vrot.lane.b32.xlu0 %v623, 110
      %v628 = vpop.permute.xlu0 %627
      %629 = vrot.lane.b32.xlu0 %v624, 110
      %v630 = vpop.permute.xlu0 %629
      %vm631 = vcmask 900096
      %v632 = vsel %vm631, %v626, %v628
      %v633 = vsel %vm631, %v628, %v630
      %636 = vst [vmem:[#allocation3] sm:$0xf0] %v632
      %637 = vst [vmem:[#allocation3 + $0x8] sm:$0xf0] %v633
      %v638 = vld [vmem:[#allocation2] sm:$0xf]
      %v639 = vld [vmem:[#allocation2 + $0x8] sm:$0xf]
      %v640 = vld [vmem:[#allocation2 + $0x10] sm:$0xf]
      %s641 = scalar_lea.vmem %s9, 2
      %v642 = vld [vmem:[%s641] ss:$8 sm:$0x3]
      %v644 = vperm.slane %v642, 0
      %v645 = vperm.slane %v642, 1
      %646 = vrot.lane.b32.xlu0 %v644, 19
      %v647 = vpop.permute.xlu0 %646
      %648 = vrot.lane.b32.xlu0 %v645, 19
      %v649 = vpop.permute.xlu0 %648
      %vm650 = vcmask 154624
      %v651 = vsel %vm650, %v647, %v649
      %v655 = vmul.f32 %v638, %v647
      %v656 = vmul.f32 %v639, %v651
      %v657 = vmul.f32 %v640, %v649
      %661 = vrot.lane.b32.xlu0 %v655, 109
      %v662 = vpop.permute.xlu0 %661
      %663 = vrot.lane.b32.xlu0 %v656, 109
      %v664 = vpop.permute.xlu0 %663
      %665 = vrot.lane.b32.xlu0 %v657, 109
      %v666 = vpop.permute.xlu0 %665
      %vm667 = vcmask 891904
      %v668 = vsel %vm667, %v662, %v664
      %v669 = vsel %vm667, %v664, %v666
      %672 = vst [vmem:[#allocation3 + $0x10] sm:$0xf] %v668
      %673 = vst [vmem:[#allocation3 + $0x18] sm:$0xf] %v669
      %v674 = vld [vmem:[#allocation2] sm:$0xf]
      %v675 = vld [vmem:[#allocation2 + $0x8] sm:$0xf]
      %v676 = vld [vmem:[#allocation2 + $0x10] sm:$0xf]
      %s677 = scalar_lea.vmem %s9, 3
      %v678 = vld [vmem:[%s677] ss:$8 sm:$0x3]
      %v680 = vperm.slane %v678, 0
      %v681 = vperm.slane %v678, 1
      %682 = vrot.lane.b32.xlu0 %v680, 33
      %v683 = vpop.permute.xlu0 %682
      %684 = vrot.lane.b32.xlu0 %v681, 33
      %v685 = vpop.permute.xlu0 %684
      %vm686 = vcmask 269312
      %v687 = vsel %vm686, %v683, %v685
      %v691 = vmul.f32 %v674, %v683
      %v692 = vmul.f32 %v675, %v687
      %v693 = vmul.f32 %v676, %v685
      %v697 = vrot.slane %v691, 4
      %v698 = vrot.slane %v692, 4
      %v699 = vrot.slane %v693, 4
      %700 = vrot.lane.b32.xlu0 %v697, 95
      %v701 = vpop.permute.xlu0 %700
      %702 = vrot.lane.b32.xlu0 %v698, 95
      %v703 = vpop.permute.xlu0 %702
      %704 = vrot.lane.b32.xlu0 %v699, 95
      %v705 = vpop.permute.xlu0 %704
      %vm706 = vcmask 777216
      %v707 = vsel %vm706, %v701, %v703
      %v708 = vsel %vm706, %v703, %v705
      %711 = vst [vmem:[#allocation3 + $0x10] sm:$0xf0] %v707
      %712 = vst [vmem:[#allocation3 + $0x18] sm:$0xf0] %v708
      %v713 = vld [vmem:[#allocation2] sm:$0xf]
      %v714 = vld [vmem:[#allocation2 + $0x8] sm:$0xf]
      %v715 = vld [vmem:[#allocation2 + $0x10] sm:$0xf]
      %s716 = scalar_lea.vmem %s9, 4
      %v717 = vld [vmem:[%s716] ss:$8 sm:$0x3]
      %v719 = vperm.slane %v717, 0
      %v720 = vperm.slane %v717, 1
      %721 = vrot.lane.b32.xlu0 %v719, 34
      %v722 = vpop.permute.xlu0 %721
      %723 = vrot.lane.b32.xlu0 %v720, 34
      %v724 = vpop.permute.xlu0 %723
      %v725 = vsel %vm554, %v722, %v724
      %v729 = vmul.f32 %v713, %v722
      %v730 = vmul.f32 %v714, %v725
      %v731 = vmul.f32 %v715, %v724
      %735 = vrot.lane.b32.xlu0 %v729, 94
      %v736 = vpop.permute.xlu0 %735
      %737 = vrot.lane.b32.xlu0 %v730, 94
      %v738 = vpop.permute.xlu0 %737
      %739 = vrot.lane.b32.xlu0 %v731, 94
      %v740 = vpop.permute.xlu0 %739
      %vm741 = vcmask 769024
      %v742 = vsel %vm741, %v736, %v738
      %v743 = vsel %vm741, %v738, %v740
      %746 = vst [vmem:[#allocation3 + $0x20] sm:$0xf] %v742
      %747 = vst [vmem:[#allocation3 + $0x28] sm:$0xf] %v743
      %v748 = vld [vmem:[#allocation2] sm:$0xf]
      %v749 = vld [vmem:[#allocation2 + $0x8] sm:$0xf]
      %v750 = vld [vmem:[#allocation2 + $0x10] sm:$0xf]
      %s751 = scalar_lea.vmem %s9, 5
      %v752 = vld [vmem:[%s751] ss:$8 sm:$0x3]
      %v754 = vperm.slane %v752, 0
      %v755 = vperm.slane %v752, 1
      %756 = vrot.lane.b32.xlu0 %v754, 35
      %v757 = vpop.permute.xlu0 %756
      %758 = vrot.lane.b32.xlu0 %v755, 35
      %v759 = vpop.permute.xlu0 %758
      %vm760 = vcmask 285696
      %v761 = vsel %vm760, %v757, %v759
      %v765 = vmul.f32 %v748, %v757
      %v766 = vmul.f32 %v749, %v761
      %v767 = vmul.f32 %v750, %v759
      %v771 = vrot.slane %v765, 4
      %v772 = vrot.slane %v766, 4
      %v773 = vrot.slane %v767, 4
      %774 = vrot.lane.b32.xlu0 %v771, 93
      %v775 = vpop.permute.xlu0 %774
      %776 = vrot.lane.b32.xlu0 %v772, 93
      %v777 = vpop.permute.xlu0 %776
      %778 = vrot.lane.b32.xlu0 %v773, 93
      %v779 = vpop.permute.xlu0 %778
      %vm780 = vcmask 760832
      %v781 = vsel %vm780, %v775, %v777
      %v782 = vsel %vm780, %v777, %v779
      %785 = vst [vmem:[#allocation3 + $0x20] sm:$0xf0] %v781
      %786 = vst [vmem:[#allocation3 + $0x28] sm:$0xf0] %v782
      %v787 = vld [vmem:[#allocation2] sm:$0xf]
      %v788 = vld [vmem:[#allocation2 + $0x8] sm:$0xf]
      %v789 = vld [vmem:[#allocation2 + $0x10] sm:$0xf]
      %s790 = scalar_lea.vmem %s9, 6
      %v791 = vld [vmem:[%s790] ss:$8 sm:$0x3]
      %v793 = vperm.slane %v791, 0
      %v794 = vperm.slane %v791, 1
      %795 = vrot.lane.b32.xlu0 %v793, 49
      %v796 = vpop.permute.xlu0 %795
      %797 = vrot.lane.b32.xlu0 %v794, 49
      %v798 = vpop.permute.xlu0 %797
      %vm799 = vcmask 400384
      %v800 = vsel %vm799, %v796, %v798
      %v804 = vmul.f32 %v787, %v796
      %v805 = vmul.f32 %v788, %v800
      %v806 = vmul.f32 %v789, %v798
      %810 = vrot.lane.b32.xlu0 %v804, 79
      %v811 = vpop.permute.xlu0 %810
      %812 = vrot.lane.b32.xlu0 %v805, 79
      %v813 = vpop.permute.xlu0 %812
      %814 = vrot.lane.b32.xlu0 %v806, 79
      %v815 = vpop.permute.xlu0 %814
      %vm816 = vcmask 646144
      %v817 = vsel %vm816, %v811, %v813
      %v818 = vsel %vm816, %v813, %v815
      %821 = vst [vmem:[#allocation3 + $0x30] sm:$0xf] %v817
      %822 = vst [vmem:[#allocation3 + $0x38] sm:$0xf] %v818
      %v823 = vld [vmem:[#allocation2] sm:$0xf]
      %v824 = vld [vmem:[#allocation2 + $0x8] sm:$0xf]
      %v825 = vld [vmem:[#allocation2 + $0x10] sm:$0xf]
      %s826 = scalar_lea.vmem %s9, 7
      %v827 = vld [vmem:[%s826] ss:$8 sm:$0x3]
      %v829 = vperm.slane %v827, 0
      %v830 = vperm.slane %v827, 1
      %831 = vrot.lane.b32.xlu0 %v829, 50
      %v832 = vpop.permute.xlu0 %831
      %833 = vrot.lane.b32.xlu0 %v830, 50
      %v834 = vpop.permute.xlu0 %833
      %vm835 = vcmask 408576
      %v836 = vsel %vm835, %v832, %v834
      %v840 = vmul.f32 %v823, %v832
      %v841 = vmul.f32 %v824, %v836
      %v842 = vmul.f32 %v825, %v834
      %v846 = vrot.slane %v840, 4
      %v847 = vrot.slane %v841, 4
      %v848 = vrot.slane %v842, 4
      %849 = vrot.lane.b32.xlu0 %v846, 78
      %v850 = vpop.permute.xlu0 %849
      %851 = vrot.lane.b32.xlu0 %v847, 78
      %v852 = vpop.permute.xlu0 %851
      %853 = vrot.lane.b32.xlu0 %v848, 78
      %v854 = vpop.permute.xlu0 %853
      %vm855 = vcmask 637952
      %v856 = vsel %vm855, %v850, %v852
      %v857 = vsel %vm855, %v852, %v854
      %860 = vst [vmem:[#allocation3 + $0x30] sm:$0xf0] %v856
      %861 = vst [vmem:[#allocation3 + $0x38] sm:$0xf0] %v857
      %v862 = vld [vmem:[#allocation2] sm:$0xf]
      %v863 = vld [vmem:[#allocation2 + $0x8] sm:$0xf]
      %v864 = vld [vmem:[#allocation2 + $0x10] sm:$0xf]
      %s865 = scalar_lea.vmem %s9, 16
      %v866 = vld [vmem:[%s865] ss:$8 sm:$0x3]
      %v868 = vperm.slane %v866, 0
      %v869 = vperm.slane %v866, 1
      %870 = vrot.lane.b32.xlu0 %v868, 51
      %v871 = vpop.permute.xlu0 %870
      %872 = vrot.lane.b32.xlu0 %v869, 51
      %v873 = vpop.permute.xlu0 %872
      %vm874 = vcmask 416768
      %v875 = vsel %vm874, %v871, %v873
      %v879 = vmul.f32 %v862, %v871
      %v880 = vmul.f32 %v863, %v875
      %v881 = vmul.f32 %v864, %v873
      %885 = vrot.lane.b32.xlu0 %v879, 77
      %v886 = vpop.permute.xlu0 %885
      %887 = vrot.lane.b32.xlu0 %v880, 77
      %v888 = vpop.permute.xlu0 %887
      %889 = vrot.lane.b32.xlu0 %v881, 77
      %v890 = vpop.permute.xlu0 %889
      %vm891 = vcmask 629760
      %v892 = vsel %vm891, %v886, %v888
      %v893 = vsel %vm891, %v888, %v890
      %896 = vst [vmem:[#allocation3 + $0x40] sm:$0xf] %v892
      %897 = vst [vmem:[#allocation3 + $0x48] sm:$0xf] %v893
      %v898 = vld [vmem:[#allocation3] sm:$0xff]
      %v899 = vld [vmem:[#allocation3 + $0x8] sm:$0xff]
      %v900 = vld [vmem:[#allocation3 + $0x10] sm:$0xff]
      %v901 = vld [vmem:[#allocation3 + $0x18] sm:$0xff]
      %v902 = vld [vmem:[#allocation3 + $0x20] sm:$0xff]
      %v903 = vld [vmem:[#allocation3 + $0x28] sm:$0xff]
      %v904 = vld [vmem:[#allocation3 + $0x30] sm:$0xff]
      %v905 = vld [vmem:[#allocation3 + $0x38] sm:$0xff]
      %v906 = vld [vmem:[#allocation3 + $0x40] sm:$0xf]
      %v907 = vld [vmem:[#allocation3 + $0x48] sm:$0xf]
      %v908 = vpack.c.bf16 %v900, %v898
      %v909 = vpack.c.bf16 %v901, %v899
      %v910 = vpack.c.bf16 %v904, %v902
      %v911 = vpack.c.bf16 %v905, %v903
      %v912 = vpack.c.bf16 %v906, %v906
      %v913 = vpack.c.bf16 %v907, %v907
      %v914 = vld [vmem:[%s1] sm:$0xf]
      %v915 = vld [vmem:[%s5] sm:$0xff]
      %917 = vset.pattern.permute.xlu0 0
      %918 = vperm.xlu0 %917, %v915
      %v919 = vpop.permute.xlu0 %918
      %vm921 = vcmask 293888
      %v923 = vsel %vm921, %v914, 0
      %vm925 = vcmask 1041408
      %v927 = vsel %vm925, %v912, 0
      %v930 = vsel %vm925, %v913, 0
      %932 = vmatpush.bf16.msra.mxu0 0
      %933 = vmatpush.bf16.msra.mxu0 0
      %934 = vmatpush.bf16.msra.mxu0 0
      %935 = vmatpush.bf16.msra.mxu0 0
      %936 = vmatpush.bf16.msra.mxu0 0
      %937 = vmatpush.bf16.msra.mxu0 %v927
      %938 = vmatpush.bf16.msra.mxu0 %v910
      %939 = vmatpush.bf16.msra.mxu0 %v908
      %940 = vmatmul.bf16.gmra.mxu0 %v923
      %v941 = vpop.f32.mrf.mxu0
      %v942 = vadd.f32 %v919, %v941
      %v943 = vpop.f32.mrf.mxu0
      %944 = vdwg.mxu0
      %945 = vmatpush.bf16.msra.mxu0 0
      %946 = vmatpush.bf16.msra.mxu0 0
      %947 = vmatpush.bf16.msra.mxu0 0
      %948 = vmatpush.bf16.msra.mxu0 0
      %949 = vmatpush.bf16.msra.mxu0 0
      %950 = vmatpush.bf16.msra.mxu0 %v930
      %951 = vmatpush.bf16.msra.mxu0 %v911
      %952 = vmatpush.bf16.msra.mxu0 %v909
      %953 = vmatmul.bf16.gmra.mxu0 %v923
      %v954 = vpop.f32.mrf.mxu0
      %v955 = vadd.f32 %v919, %v954
      %v956 = vpop.f32.mrf.mxu0
      %957 = vdwg.mxu0
      %v958 = vmax.f32 %v942, 0.0
      %v959 = vmax.f32 %v955, 0.0
      %962 = vrot.lane.b32.xlu0 %v958, 34
      %v963 = vpop.permute.xlu0 %962
      %964 = vrot.lane.b32.xlu0 %v959, 34
      %v965 = vpop.permute.xlu0 %964
      %v966 = vsel %vm554, %v963, %v965
      %vm970 = vcmask 1047824
      %971 = vst.msk [vmem:[#allocation2] sm:$0xff] %vm970, %v963
      %972 = vst [vmem:[#allocation2 + $0x8] sm:$0xff] %v966
      %973 = vst.msk [vmem:[#allocation2 + $0x10] sm:$0xff] %vm554, %v965
      %v974 = vld [vmem:[#allocation2] sm:$0xff]
      %v975 = vld [vmem:[#allocation2 + $0x8] sm:$0xff]
      %v976 = vld [vmem:[#allocation2 + $0x10] sm:$0xff]
      %v977 = vld [vmem:[%s9] ss:$8 sm:$0x3]
      %v979 = vperm.slane %v977, 0
      %v980 = vperm.slane %v977, 1
      %981 = vrot.lane.b32.xlu0 %v979, 17
      %v982 = vpop.permute.xlu0 %981
      %983 = vrot.lane.b32.xlu0 %v980, 17
      %v984 = vpop.permute.xlu0 %983
      %v985 = vsel %vm575, %v982, %v984
      %v989 = vmul.f32 %v974, %v982
      %v990 = vmul.f32 %v975, %v985
      %v991 = vmul.f32 %v976, %v984
      %995 = vrot.lane.b32.xlu0 %v989, 111
      %v996 = vpop.permute.xlu0 %995
      %997 = vrot.lane.b32.xlu0 %v990, 111
      %v998 = vpop.permute.xlu0 %997
      %999 = vrot.lane.b32.xlu0 %v991, 111
      %v1000 = vpop.permute.xlu0 %999
      %v1001 = vsel %vm592, %v996, %v998
      %v1002 = vsel %vm592, %v998, %v1000
      %1005 = vst [vmem:[#allocation3] sm:$0xff] %v1001
      %1006 = vst [vmem:[#allocation3 + $0x8] sm:$0xff] %v1002
      %v1007 = vld [vmem:[#allocation2] sm:$0xff]
      %v1008 = vld [vmem:[#allocation2 + $0x8] sm:$0xff]
      %v1009 = vld [vmem:[#allocation2 + $0x10] sm:$0xff]
      %v1010 = vld [vmem:[%s602] ss:$8 sm:$0x3]
      %v1012 = vperm.slane %v1010, 0
      %v1013 = vperm.slane %v1010, 1
      %1014 = vrot.lane.b32.xlu0 %v1012, 18
      %v1015 = vpop.permute.xlu0 %1014
      %1016 = vrot.lane.b32.xlu0 %v1013, 18
      %v1017 = vpop.permute.xlu0 %1016
      %v1018 = vsel %vm611, %v1015, %v1017
      %v1022 = vmul.f32 %v1007, %v1015
      %v1023 = vmul.f32 %v1008, %v1018
      %v1024 = vmul.f32 %v1009, %v1017
      %1028 = vrot.lane.b32.xlu0 %v1022, 110
      %v1029 = vpop.permute.xlu0 %1028
      %1030 = vrot.lane.b32.xlu0 %v1023, 110
      %v1031 = vpop.permute.xlu0 %1030
      %1032 = vrot.lane.b32.xlu0 %v1024, 110
      %v1033 = vpop.permute.xlu0 %1032
      %v1034 = vsel %vm631, %v1029, %v1031
      %v1035 = vsel %vm631, %v1031, %v1033
      %1038 = vst [vmem:[#allocation3 + $0x10] sm:$0xff] %v1034
      %1039 = vst [vmem:[#allocation3 + $0x18] sm:$0xff] %v1035
      %v1040 = vld [vmem:[#allocation2] sm:$0xff]
      %v1041 = vld [vmem:[#allocation2 + $0x8] sm:$0xff]
      %v1042 = vld [vmem:[#allocation2 + $0x10] sm:$0xff]
      %v1043 = vld [vmem:[%s641] ss:$8 sm:$0x3]
      %v1045 = vperm.slane %v1043, 0
      %v1046 = vperm.slane %v1043, 1
      %1047 = vrot.lane.b32.xlu0 %v1045, 19
      %v1048 = vpop.permute.xlu0 %1047
      %1049 = vrot.lane.b32.xlu0 %v1046, 19
      %v1050 = vpop.permute.xlu0 %1049
      %v1051 = vsel %vm650, %v1048, %v1050
      %v1055 = vmul.f32 %v1040, %v1048
      %v1056 = vmul.f32 %v1041, %v1051
      %v1057 = vmul.f32 %v1042, %v1050
      %1061 = vrot.lane.b32.xlu0 %v1055, 109
      %v1062 = vpop.permute.xlu0 %1061
      %1063 = vrot.lane.b32.xlu0 %v1056, 109
      %v1064 = vpop.permute.xlu0 %1063
      %1065 = vrot.lane.b32.xlu0 %v1057, 109
      %v1066 = vpop.permute.xlu0 %1065
      %v1067 = vsel %vm667, %v1062, %v1064
      %v1068 = vsel %vm667, %v1064, %v1066
      %1071 = vst [vmem:[#allocation3 + $0x20] sm:$0xff] %v1067
      %1072 = vst [vmem:[#allocation3 + $0x28] sm:$0xff] %v1068
      %v1073 = vld [vmem:[#allocation2] sm:$0xff]
      %v1074 = vld [vmem:[#allocation2 + $0x8] sm:$0xff]
      %v1075 = vld [vmem:[#allocation2 + $0x10] sm:$0xff]
      %v1076 = vld [vmem:[%s677] ss:$8 sm:$0x3]
      %v1078 = vperm.slane %v1076, 0
      %v1079 = vperm.slane %v1076, 1
      %1080 = vrot.lane.b32.xlu0 %v1078, 33
      %v1081 = vpop.permute.xlu0 %1080
      %1082 = vrot.lane.b32.xlu0 %v1079, 33
      %v1083 = vpop.permute.xlu0 %1082
      %v1084 = vsel %vm686, %v1081, %v1083
      %v1088 = vmul.f32 %v1073, %v1081
      %v1089 = vmul.f32 %v1074, %v1084
      %v1090 = vmul.f32 %v1075, %v1083
      %1094 = vrot.lane.b32.xlu0 %v1088, 95
      %v1095 = vpop.permute.xlu0 %1094
      %1096 = vrot.lane.b32.xlu0 %v1089, 95
      %v1097 = vpop.permute.xlu0 %1096
      %1098 = vrot.lane.b32.xlu0 %v1090, 95
      %v1099 = vpop.permute.xlu0 %1098
      %v1100 = vsel %vm706, %v1095, %v1097
      %v1101 = vsel %vm706, %v1097, %v1099
      %1104 = vst [vmem:[#allocation3 + $0x30] sm:$0xff] %v1100
      %1105 = vst [vmem:[#allocation3 + $0x38] sm:$0xff] %v1101
      %v1106 = vld [vmem:[#allocation2] sm:$0xff]
      %v1107 = vld [vmem:[#allocation2 + $0x8] sm:$0xff]
      %v1108 = vld [vmem:[#allocation2 + $0x10] sm:$0xff]
      %v1109 = vld [vmem:[%s716] ss:$8 sm:$0x3]
      %v1111 = vperm.slane %v1109, 0
      %v1112 = vperm.slane %v1109, 1
      %1113 = vrot.lane.b32.xlu0 %v1111, 34
      %v1114 = vpop.permute.xlu0 %1113
      %1115 = vrot.lane.b32.xlu0 %v1112, 34
      %v1116 = vpop.permute.xlu0 %1115
      %v1117 = vsel %vm554, %v1114, %v1116
      %v1121 = vmul.f32 %v1106, %v1114
      %v1122 = vmul.f32 %v1107, %v1117
      %v1123 = vmul.f32 %v1108, %v1116
      %1127 = vrot.lane.b32.xlu0 %v1121, 94
      %v1128 = vpop.permute.xlu0 %1127
      %1129 = vrot.lane.b32.xlu0 %v1122, 94
      %v1130 = vpop.permute.xlu0 %1129
      %1131 = vrot.lane.b32.xlu0 %v1123, 94
      %v1132 = vpop.permute.xlu0 %1131
      %v1133 = vsel %vm741, %v1128, %v1130
      %v1134 = vsel %vm741, %v1130, %v1132
      %1137 = vst [vmem:[#allocation3 + $0x40] sm:$0xff] %v1133
      %1138 = vst [vmem:[#allocation3 + $0x48] sm:$0xff] %v1134
      %v1139 = vld [vmem:[#allocation2] sm:$0xff]
      %v1140 = vld [vmem:[#allocation2 + $0x8] sm:$0xff]
      %v1141 = vld [vmem:[#allocation2 + $0x10] sm:$0xff]
      %v1142 = vld [vmem:[%s751] ss:$8 sm:$0x3]
      %v1144 = vperm.slane %v1142, 0
      %v1145 = vperm.slane %v1142, 1
      %1146 = vrot.lane.b32.xlu0 %v1144, 35
      %v1147 = vpop.permute.xlu0 %1146
      %1148 = vrot.lane.b32.xlu0 %v1145, 35
      %v1149 = vpop.permute.xlu0 %1148
      %v1150 = vsel %vm760, %v1147, %v1149
      %v1154 = vmul.f32 %v1139, %v1147
      %v1155 = vmul.f32 %v1140, %v1150
      %v1156 = vmul.f32 %v1141, %v1149
      %1160 = vrot.lane.b32.xlu0 %v1154, 93
      %v1161 = vpop.permute.xlu0 %1160
      %1162 = vrot.lane.b32.xlu0 %v1155, 93
      %v1163 = vpop.permute.xlu0 %1162
      %1164 = vrot.lane.b32.xlu0 %v1156, 93
      %v1165 = vpop.permute.xlu0 %1164
      %v1166 = vsel %vm780, %v1161, %v1163
      %v1167 = vsel %vm780, %v1163, %v1165
      %1170 = vst [vmem:[#allocation3 + $0x50] sm:$0xff] %v1166
      %1171 = vst [vmem:[#allocation3 + $0x58] sm:$0xff] %v1167
      %v1172 = vld [vmem:[#allocation2] sm:$0xff]
      %v1173 = vld [vmem:[#allocation2 + $0x8] sm:$0xff]
      %v1174 = vld [vmem:[#allocation2 + $0x10] sm:$0xff]
      %v1175 = vld [vmem:[%s790] ss:$8 sm:$0x3]
      %v1177 = vperm.slane %v1175, 0
      %v1178 = vperm.slane %v1175, 1
      %1179 = vrot.lane.b32.xlu0 %v1177, 49
      %v1180 = vpop.permute.xlu0 %1179
      %1181 = vrot.lane.b32.xlu0 %v1178, 49
      %v1182 = vpop.permute.xlu0 %1181
      %v1183 = vsel %vm799, %v1180, %v1182
      %v1187 = vmul.f32 %v1172, %v1180
      %v1188 = vmul.f32 %v1173, %v1183
      %v1189 = vmul.f32 %v1174, %v1182
      %1193 = vrot.lane.b32.xlu0 %v1187, 79
      %v1194 = vpop.permute.xlu0 %1193
      %1195 = vrot.lane.b32.xlu0 %v1188, 79
      %v1196 = vpop.permute.xlu0 %1195
      %1197 = vrot.lane.b32.xlu0 %v1189, 79
      %v1198 = vpop.permute.xlu0 %1197
      %v1199 = vsel %vm816, %v1194, %v1196
      %v1200 = vsel %vm816, %v1196, %v1198
      %1203 = vst [vmem:[#allocation3 + $0x60] sm:$0xff] %v1199
      %1204 = vst [vmem:[#allocation3 + $0x68] sm:$0xff] %v1200
      %v1205 = vld [vmem:[#allocation2] sm:$0xff]
      %v1206 = vld [vmem:[#allocation2 + $0x8] sm:$0xff]
      %v1207 = vld [vmem:[#allocation2 + $0x10] sm:$0xff]
      %v1208 = vld [vmem:[%s826] ss:$8 sm:$0x3]
      %v1210 = vperm.slane %v1208, 0
      %v1211 = vperm.slane %v1208, 1
      %1212 = vrot.lane.b32.xlu0 %v1210, 50
      %v1213 = vpop.permute.xlu0 %1212
      %1214 = vrot.lane.b32.xlu0 %v1211, 50
      %v1215 = vpop.permute.xlu0 %1214
      %v1216 = vsel %vm835, %v1213, %v1215
      %v1220 = vmul.f32 %v1205, %v1213
      %v1221 = vmul.f32 %v1206, %v1216
      %v1222 = vmul.f32 %v1207, %v1215
      %1226 = vrot.lane.b32.xlu0 %v1220, 78
      %v1227 = vpop.permute.xlu0 %1226
      %1228 = vrot.lane.b32.xlu0 %v1221, 78
      %v1229 = vpop.permute.xlu0 %1228
      %1230 = vrot.lane.b32.xlu0 %v1222, 78
      %v1231 = vpop.permute.xlu0 %1230
      %v1232 = vsel %vm855, %v1227, %v1229
      %v1233 = vsel %vm855, %v1229, %v1231
      %1236 = vst [vmem:[#allocation3 + $0x70] sm:$0xff] %v1232
      %1237 = vst [vmem:[#allocation3 + $0x78] sm:$0xff] %v1233
      %v1238 = vld [vmem:[#allocation2] sm:$0xff]
      %v1239 = vld [vmem:[#allocation2 + $0x8] sm:$0xff]
      %v1240 = vld [vmem:[#allocation2 + $0x10] sm:$0xff]
      %v1241 = vld [vmem:[%s865] ss:$8 sm:$0x3]
      %v1243 = vperm.slane %v1241, 0
      %v1244 = vperm.slane %v1241, 1
      %1245 = vrot.lane.b32.xlu0 %v1243, 51
      %v1246 = vpop.permute.xlu0 %1245
      %1247 = vrot.lane.b32.xlu0 %v1244, 51
      %v1248 = vpop.permute.xlu0 %1247
      %v1249 = vsel %vm874, %v1246, %v1248
      %v1253 = vmul.f32 %v1238, %v1246
      %v1254 = vmul.f32 %v1239, %v1249
      %v1255 = vmul.f32 %v1240, %v1248
      %1259 = vrot.lane.b32.xlu0 %v1253, 77
      %v1260 = vpop.permute.xlu0 %1259
      %1261 = vrot.lane.b32.xlu0 %v1254, 77
      %v1262 = vpop.permute.xlu0 %1261
      %1263 = vrot.lane.b32.xlu0 %v1255, 77
      %v1264 = vpop.permute.xlu0 %1263
      %v1265 = vsel %vm891, %v1260, %v1262
      %v1266 = vsel %vm891, %v1262, %v1264
      %1269 = vst [vmem:[#allocation3 + $0x80] sm:$0xff] %v1265
      %1270 = vst [vmem:[#allocation3 + $0x88] sm:$0xff] %v1266
      %v1271 = vld [vmem:[#allocation3] sm:$0xff]
      %v1272 = vld [vmem:[#allocation3 + $0x8] sm:$0xff]
      %v1273 = vld [vmem:[#allocation3 + $0x10] sm:$0xff]
      %v1274 = vld [vmem:[#allocation3 + $0x18] sm:$0xff]
      %v1275 = vld [vmem:[#allocation3 + $0x20] sm:$0xff]
      %v1276 = vld [vmem:[#allocation3 + $0x28] sm:$0xff]
      %v1277 = vld [vmem:[#allocation3 + $0x30] sm:$0xff]
      %v1278 = vld [vmem:[#allocation3 + $0x38] sm:$0xff]
      %v1279 = vld [vmem:[#allocation3 + $0x40] sm:$0xff]
      %v1280 = vld [vmem:[#allocation3 + $0x48] sm:$0xff]
      %v1281 = vld [vmem:[#allocation3 + $0x50] sm:$0xff]
      %v1282 = vld [vmem:[#allocation3 + $0x58] sm:$0xff]
      %v1283 = vld [vmem:[#allocation3 + $0x60] sm:$0xff]
      %v1284 = vld [vmem:[#allocation3 + $0x68] sm:$0xff]
      %v1285 = vld [vmem:[#allocation3 + $0x70] sm:$0xff]
      %v1286 = vld [vmem:[#allocation3 + $0x78] sm:$0xff]
      %v1287 = vld [vmem:[#allocation3 + $0x80] sm:$0xff]
      %v1288 = vld [vmem:[#allocation3 + $0x88] sm:$0xff]
      %v1289 = vpack.c.bf16 %v1273, %v1271
      %v1290 = vpack.c.bf16 %v1274, %v1272
      %v1291 = vpack.c.bf16 %v1277, %v1275
      %v1292 = vpack.c.bf16 %v1278, %v1276
      %v1293 = vpack.c.bf16 %v1281, %v1279
      %v1294 = vpack.c.bf16 %v1282, %v1280
      %v1295 = vpack.c.bf16 %v1285, %v1283
      %v1296 = vpack.c.bf16 %v1286, %v1284
      %v1297 = vpack.c.bf16 %v1287, %v1287
      %v1298 = vpack.c.bf16 %v1288, %v1288
      %v1299 = vld [vmem:[%s2] sm:$0xf]
      %v1300 = vld [vmem:[%s6] sm:$0xff]
      %1302 = vset.pattern.permute.xlu0 0
      %1303 = vperm.xlu0 %1302, %v1300
      %v1304 = vpop.permute.xlu0 %1303
      %vm1306 = vcmask 588800
      %v1308 = vsel %vm1306, %v1299, 0
      %vm1310 = vcmask 1043456
      %v1312 = vsel %vm1310, %v1297, 0
      %v1315 = vsel %vm1310, %v1298, 0
      %1317 = vmatpush.bf16.msra.mxu0 0
      %1318 = vmatpush.bf16.msra.mxu0 0
      %1319 = vmatpush.bf16.msra.mxu0 0
      %1320 = vmatpush.bf16.msra.mxu0 %v1312
      %1321 = vmatpush.bf16.msra.mxu0 %v1295
      %1322 = vmatpush.bf16.msra.mxu0 %v1293
      %1323 = vmatpush.bf16.msra.mxu0 %v1291
      %1324 = vmatpush.bf16.msra.mxu0 %v1289
      %1325 = vmatmul.bf16.gmra.mxu0 %v1308
      %v1326 = vpop.f32.mrf.mxu0
      %v1327 = vadd.f32 %v1304, %v1326
      %v1328 = vpop.f32.mrf.mxu0
      %1329 = vdwg.mxu0
      %1330 = vmatpush.bf16.msra.mxu0 0
      %1331 = vmatpush.bf16.msra.mxu0 0
      %1332 = vmatpush.bf16.msra.mxu0 0
      %1333 = vmatpush.bf16.msra.mxu0 %v1315
      %1334 = vmatpush.bf16.msra.mxu0 %v1296
      %1335 = vmatpush.bf16.msra.mxu0 %v1294
      %1336 = vmatpush.bf16.msra.mxu0 %v1292
      %1337 = vmatpush.bf16.msra.mxu0 %v1290
      %1338 = vmatmul.bf16.gmra.mxu0 %v1308
      %v1339 = vpop.f32.mrf.mxu0
      %v1340 = vadd.f32 %v1304, %v1339
      %v1341 = vpop.f32.mrf.mxu0
      %1342 = vdwg.mxu0
      %v1343 = vmax.f32 %v1327, 0.0
      %v1344 = vmax.f32 %v1340, 0.0
      %1347 = vrot.lane.b32.xlu0 %v1343, 34
      %v1348 = vpop.permute.xlu0 %1347
      %1349 = vrot.lane.b32.xlu0 %v1344, 34
      %v1350 = vpop.permute.xlu0 %1349
      %v1351 = vsel %vm554, %v1348, %v1350
      %1355 = vst.msk [vmem:[#allocation2] sm:$0xff] %vm970, %v1348
      %1356 = vst [vmem:[#allocation2 + $0x8] sm:$0xff] %v1351
      %1357 = vst.msk [vmem:[#allocation2 + $0x10] sm:$0xff] %vm554, %v1350
      %v1358 = vld [vmem:[#allocation2] sm:$0xff]
      %v1359 = vld [vmem:[#allocation2 + $0x8] sm:$0xff]
      %v1360 = vld [vmem:[#allocation2 + $0x10] sm:$0xff]
      %v1361 = vld [vmem:[%s11] ss:$8 sm:$0x3]
      %v1363 = vperm.slane %v1361, 0
      %v1364 = vperm.slane %v1361, 1
      %1365 = vrot.lane.b32.xlu0 %v1363, 34
      %v1366 = vpop.permute.xlu0 %1365
      %1367 = vrot.lane.b32.xlu0 %v1364, 34
      %v1368 = vpop.permute.xlu0 %1367
      %v1369 = vsel %vm554, %v1366, %v1368
      %v1373 = vmul.f32 %v1358, %v1366
      %v1374 = vmul.f32 %v1359, %v1369
      %v1375 = vmul.f32 %v1360, %v1368
      %s1376 = scalar_lea.vmem %s11, 1
      %v1377 = vld [vmem:[%s1376] ss:$8 sm:$0x3]
      %v1379 = vperm.slane %v1377, 0
      %v1380 = vperm.slane %v1377, 1
      %1381 = vrot.lane.b32.xlu0 %v1379, 35
      %v1382 = vpop.permute.xlu0 %1381
      %1383 = vrot.lane.b32.xlu0 %v1380, 35
      %v1384 = vpop.permute.xlu0 %1383
      %v1385 = vsel %vm760, %v1382, %v1384
      %v1389 = vmul.f32 %v1358, %v1382
      %v1390 = vmul.f32 %v1359, %v1385
      %v1391 = vmul.f32 %v1360, %v1384
      %1395 = vrot.lane.b32.xlu0 %v1389, 127
      %v1396 = vpop.permute.xlu0 %1395
      %1397 = vrot.lane.b32.xlu0 %v1390, 127
      %v1398 = vpop.permute.xlu0 %1397
      %1399 = vrot.lane.b32.xlu0 %v1391, 127
      %v1400 = vpop.permute.xlu0 %1399
      %vm1401 = vcmask 1039360
      %v1402 = vsel %vm1401, %v1396, %v1398
      %v1403 = vsel %vm1401, %v1398, %v1400
      %v1407 = vadd.f32 %v1373, %v1402
      %v1408 = vadd.f32 %v1374, %v1403
      %v1409 = vadd.f32 %v1375, %v1400
      %s1410 = scalar_lea.vmem %s11, 2
      %v1411 = vld [vmem:[%s1410] ss:$8 sm:$0x3]
      %v1413 = vperm.slane %v1411, 0
      %v1414 = vperm.slane %v1411, 1
      %1415 = vrot.lane.b32.xlu0 %v1413, 36
      %v1416 = vpop.permute.xlu0 %1415
      %1417 = vrot.lane.b32.xlu0 %v1414, 36
      %v1418 = vpop.permute.xlu0 %1417
      %v1419 = vsel %vm921, %v1416, %v1418
      %v1423 = vmul.f32 %v1358, %v1416
      %v1424 = vmul.f32 %v1359, %v1419
      %v1425 = vmul.f32 %v1360, %v1418
      %1429 = vrot.lane.b32.xlu0 %v1423, 126
      %v1430 = vpop.permute.xlu0 %1429
      %1431 = vrot.lane.b32.xlu0 %v1424, 126
      %v1432 = vpop.permute.xlu0 %1431
      %1433 = vrot.lane.b32.xlu0 %v1425, 126
      %v1434 = vpop.permute.xlu0 %1433
      %vm1435 = vcmask 1031168
      %v1436 = vsel %vm1435, %v1430, %v1432
      %v1437 = vsel %vm1435, %v1432, %v1434
      %v1441 = vadd.f32 %v1407, %v1436
      %v1442 = vadd.f32 %v1408, %v1437
      %v1443 = vadd.f32 %v1409, %v1434
      %s1444 = scalar_lea.vmem %s11, 3
      %v1445 = vld [vmem:[%s1444] ss:$8 sm:$0x3]
      %v1447 = vperm.slane %v1445, 0
      %v1448 = vperm.slane %v1445, 1
      %1449 = vrot.lane.b32.xlu0 %v1447, 50
      %v1450 = vpop.permute.xlu0 %1449
      %1451 = vrot.lane.b32.xlu0 %v1448, 50
      %v1452 = vpop.permute.xlu0 %1451
      %v1453 = vsel %vm835, %v1450, %v1452
      %v1457 = vmul.f32 %v1358, %v1450
      %v1458 = vmul.f32 %v1359, %v1453
      %v1459 = vmul.f32 %v1360, %v1452
      %1463 = vrot.lane.b32.xlu0 %v1457, 112
      %v1464 = vpop.permute.xlu0 %1463
      %1465 = vrot.lane.b32.xlu0 %v1458, 112
      %v1466 = vpop.permute.xlu0 %1465
      %1467 = vrot.lane.b32.xlu0 %v1459, 112
      %v1468 = vpop.permute.xlu0 %1467
      %vm1469 = vcmask 916480
      %v1470 = vsel %vm1469, %v1464, %v1466
      %v1471 = vsel %vm1469, %v1466, %v1468
      %v1475 = vadd.f32 %v1441, %v1470
      %v1476 = vadd.f32 %v1442, %v1471
      %v1477 = vadd.f32 %v1443, %v1468
      %s1478 = scalar_lea.vmem %s11, 4
      %v1479 = vld [vmem:[%s1478] ss:$8 sm:$0x3]
      %v1481 = vperm.slane %v1479, 0
      %v1482 = vperm.slane %v1479, 1
      %1483 = vrot.lane.b32.xlu0 %v1481, 51
      %v1484 = vpop.permute.xlu0 %1483
      %1485 = vrot.lane.b32.xlu0 %v1482, 51
      %v1486 = vpop.permute.xlu0 %1485
      %v1487 = vsel %vm874, %v1484, %v1486
      %v1491 = vmul.f32 %v1358, %v1484
      %v1492 = vmul.f32 %v1359, %v1487
      %v1493 = vmul.f32 %v1360, %v1486
      %1497 = vrot.lane.b32.xlu0 %v1491, 111
      %v1498 = vpop.permute.xlu0 %1497
      %1499 = vrot.lane.b32.xlu0 %v1492, 111
      %v1500 = vpop.permute.xlu0 %1499
      %1501 = vrot.lane.b32.xlu0 %v1493, 111
      %v1502 = vpop.permute.xlu0 %1501
      %v1503 = vsel %vm592, %v1498, %v1500
      %v1504 = vsel %vm592, %v1500, %v1502
      %v1508 = vadd.f32 %v1475, %v1503
      %v1509 = vadd.f32 %v1476, %v1504
      %v1510 = vadd.f32 %v1477, %v1502
      %s1511 = scalar_lea.vmem %s11, 5
      %v1512 = vld [vmem:[%s1511] ss:$8 sm:$0x3]
      %v1514 = vperm.slane %v1512, 0
      %v1515 = vperm.slane %v1512, 1
      %1516 = vrot.lane.b32.xlu0 %v1514, 52
      %v1517 = vpop.permute.xlu0 %1516
      %1518 = vrot.lane.b32.xlu0 %v1515, 52
      %v1519 = vpop.permute.xlu0 %1518
      %vm1520 = vcmask 424960
      %v1521 = vsel %vm1520, %v1517, %v1519
      %v1525 = vmul.f32 %v1358, %v1517
      %v1526 = vmul.f32 %v1359, %v1521
      %v1527 = vmul.f32 %v1360, %v1519
      %1531 = vrot.lane.b32.xlu0 %v1525, 110
      %v1532 = vpop.permute.xlu0 %1531
      %1533 = vrot.lane.b32.xlu0 %v1526, 110
      %v1534 = vpop.permute.xlu0 %1533
      %1535 = vrot.lane.b32.xlu0 %v1527, 110
      %v1536 = vpop.permute.xlu0 %1535
      %v1537 = vsel %vm631, %v1532, %v1534
      %v1538 = vsel %vm631, %v1534, %v1536
      %v1542 = vadd.f32 %v1508, %v1537
      %v1543 = vadd.f32 %v1509, %v1538
      %v1544 = vadd.f32 %v1510, %v1536
      %s1545 = scalar_lea.vmem %s11, 6
      %v1546 = vld [vmem:[%s1545] ss:$8 sm:$0x3]
      %v1548 = vperm.slane %v1546, 0
      %v1549 = vperm.slane %v1546, 1
      %1550 = vrot.lane.b32.xlu0 %v1548, 66
      %v1551 = vpop.permute.xlu0 %1550
      %1552 = vrot.lane.b32.xlu0 %v1549, 66
      %v1553 = vpop.permute.xlu0 %1552
      %vm1554 = vcmask 539648
      %v1555 = vsel %vm1554, %v1551, %v1553
      %v1559 = vmul.f32 %v1358, %v1551
      %v1560 = vmul.f32 %v1359, %v1555
      %v1561 = vmul.f32 %v1360, %v1553
      %1565 = vrot.lane.b32.xlu0 %v1559, 96
      %v1566 = vpop.permute.xlu0 %1565
      %1567 = vrot.lane.b32.xlu0 %v1560, 96
      %v1568 = vpop.permute.xlu0 %1567
      %1569 = vrot.lane.b32.xlu0 %v1561, 96
      %v1570 = vpop.permute.xlu0 %1569
      %vm1571 = vcmask 785408
      %v1572 = vsel %vm1571, %v1566, %v1568
      %v1573 = vsel %vm1571, %v1568, %v1570
      %v1577 = vadd.f32 %v1542, %v1572
      %v1578 = vadd.f32 %v1543, %v1573
      %v1579 = vadd.f32 %v1544, %v1570
      %s1580 = scalar_lea.vmem %s11, 7
      %v1581 = vld [vmem:[%s1580] ss:$8 sm:$0x3]
      %v1583 = vperm.slane %v1581, 0
      %v1584 = vperm.slane %v1581, 1
      %1585 = vrot.lane.b32.xlu0 %v1583, 67
      %v1586 = vpop.permute.xlu0 %1585
      %1587 = vrot.lane.b32.xlu0 %v1584, 67
      %v1588 = vpop.permute.xlu0 %1587
      %vm1589 = vcmask 547840
      %v1590 = vsel %vm1589, %v1586, %v1588
      %v1594 = vmul.f32 %v1358, %v1586
      %v1595 = vmul.f32 %v1359, %v1590
      %v1596 = vmul.f32 %v1360, %v1588
      %1600 = vrot.lane.b32.xlu0 %v1594, 95
      %v1601 = vpop.permute.xlu0 %1600
      %1602 = vrot.lane.b32.xlu0 %v1595, 95
      %v1603 = vpop.permute.xlu0 %1602
      %1604 = vrot.lane.b32.xlu0 %v1596, 95
      %v1605 = vpop.permute.xlu0 %1604
      %v1606 = vsel %vm706, %v1601, %v1603
      %v1607 = vsel %vm706, %v1603, %v1605
      %v1611 = vadd.f32 %v1577, %v1606
      %v1612 = vadd.f32 %v1578, %v1607
      %v1613 = vadd.f32 %v1579, %v1605
      %s1614 = scalar_lea.vmem %s11, 16
      %v1615 = vld [vmem:[%s1614] ss:$8 sm:$0x3]
      %v1617 = vperm.slane %v1615, 0
      %v1618 = vperm.slane %v1615, 1
      %1619 = vrot.lane.b32.xlu0 %v1617, 68
      %v1620 = vpop.permute.xlu0 %1619
      %1621 = vrot.lane.b32.xlu0 %v1618, 68
      %v1622 = vpop.permute.xlu0 %1621
      %v1623 = vsel %vm540, %v1620, %v1622
      %v1627 = vmul.f32 %v1358, %v1620
      %v1628 = vmul.f32 %v1359, %v1623
      %v1629 = vmul.f32 %v1360, %v1622
      %1633 = vrot.lane.b32.xlu0 %v1627, 94
      %v1634 = vpop.permute.xlu0 %1633
      %1635 = vrot.lane.b32.xlu0 %v1628, 94
      %v1636 = vpop.permute.xlu0 %1635
      %1637 = vrot.lane.b32.xlu0 %v1629, 94
      %v1638 = vpop.permute.xlu0 %1637
      %v1639 = vsel %vm741, %v1634, %v1636
      %v1640 = vsel %vm741, %v1636, %v1638
      %v1644 = vadd.f32 %v1611, %v1639
      %v1645 = vadd.f32 %v1612, %v1640
      %v1646 = vadd.f32 %v1613, %v1638
      %1647 = vst.msk [vmem:[#allocation2] sm:$0xff] %vm970, %v1644
      %1648 = vst [vmem:[#allocation2 + $0x8] sm:$0xff] %v1645
      %1649 = vst.msk [vmem:[#allocation2 + $0x10] sm:$0xff] %vm554, %v1646
      %v1650 = vld [vmem:[#allocation2] sm:$0xff]
      %v1651 = vld [vmem:[#allocation2 + $0x8] sm:$0xff]
      %v1652 = vld [vmem:[%s10] ss:$8 sm:$0x3]
      %v1654 = vperm.slane %v1652, 0
      %v1655 = vperm.slane %v1652, 1
      %v1658 = vmul.f32 %v1650, %v1654
      %v1659 = vmul.f32 %v1651, %v1655
      %1660 = vst [vmem:[#allocation3] sm:$0xff] %v1658
      %1661 = vst [vmem:[#allocation3 + $0x8] sm:$0xff] %v1659
      %v1662 = vld [vmem:[#allocation2] sm:$0xff]
      %v1663 = vld [vmem:[#allocation2 + $0x8] sm:$0xff]
      %v1664 = vld [vmem:[#allocation2 + $0x10] sm:$0xff]
      %s1665 = scalar_lea.vmem %s10, 1
      %v1666 = vld [vmem:[%s1665] ss:$8 sm:$0x3]
      %v1668 = vperm.slane %v1666, 0
      %v1669 = vperm.slane %v1666, 1
      %1670 = vrot.lane.b32.xlu0 %v1668, 2
      %v1671 = vpop.permute.xlu0 %1670
      %1672 = vrot.lane.b32.xlu0 %v1669, 2
      %v1673 = vpop.permute.xlu0 %1672
      %vm1674 = vcmask 15360
      %v1675 = vsel %vm1674, %v1671, %v1673
      %v1679 = vmul.f32 %v1662, %v1671
      %v1680 = vmul.f32 %v1663, %v1675
      %v1681 = vmul.f32 %v1664, %v1673
      %1685 = vrot.lane.b32.xlu0 %v1679, 126
      %v1686 = vpop.permute.xlu0 %1685
      %1687 = vrot.lane.b32.xlu0 %v1680, 126
      %v1688 = vpop.permute.xlu0 %1687
      %1689 = vrot.lane.b32.xlu0 %v1681, 126
      %v1690 = vpop.permute.xlu0 %1689
      %v1691 = vsel %vm1435, %v1686, %v1688
      %v1692 = vsel %vm1435, %v1688, %v1690
      %1695 = vst [vmem:[#allocation3 + $0x10] sm:$0xff] %v1691
      %1696 = vst [vmem:[#allocation3 + $0x18] sm:$0xff] %v1692
      %v1697 = vld [vmem:[#allocation2] sm:$0xff]
      %v1698 = vld [vmem:[#allocation2 + $0x8] sm:$0xff]
      %v1699 = vld [vmem:[#allocation2 + $0x10] sm:$0xff]
      %s1700 = scalar_lea.vmem %s10, 2
      %v1701 = vld [vmem:[%s1700] ss:$8 sm:$0x3]
      %v1703 = vperm.slane %v1701, 0
      %v1704 = vperm.slane %v1701, 1
      %1705 = vrot.lane.b32.xlu0 %v1703, 4
      %v1706 = vpop.permute.xlu0 %1705
      %1707 = vrot.lane.b32.xlu0 %v1704, 4
      %v1708 = vpop.permute.xlu0 %1707
      %vm1709 = vcmask 31744
      %v1710 = vsel %vm1709, %v1706, %v1708
      %v1714 = vmul.f32 %v1697, %v1706
      %v1715 = vmul.f32 %v1698, %v1710
      %v1716 = vmul.f32 %v1699, %v1708
      %1720 = vrot.lane.b32.xlu0 %v1714, 124
      %v1721 = vpop.permute.xlu0 %1720
      %1722 = vrot.lane.b32.xlu0 %v1715, 124
      %v1723 = vpop.permute.xlu0 %1722
      %1724 = vrot.lane.b32.xlu0 %v1716, 124
      %v1725 = vpop.permute.xlu0 %1724
      %vm1726 = vcmask 1014784
      %v1727 = vsel %vm1726, %v1721, %v1723
      %v1728 = vsel %vm1726, %v1723, %v1725
      %1731 = vst [vmem:[#allocation3 + $0x20] sm:$0xff] %v1727
      %1732 = vst [vmem:[#allocation3 + $0x28] sm:$0xff] %v1728
      %v1733 = vld [vmem:[#allocation2] sm:$0xff]
      %v1734 = vld [vmem:[#allocation2 + $0x8] sm:$0xff]
      %v1735 = vld [vmem:[#allocation2 + $0x10] sm:$0xff]
      %s1736 = scalar_lea.vmem %s10, 3
      %v1737 = vld [vmem:[%s1736] ss:$8 sm:$0x3]
      %v1739 = vperm.slane %v1737, 0
      %v1740 = vperm.slane %v1737, 1
      %1741 = vrot.lane.b32.xlu0 %v1739, 32
      %v1742 = vpop.permute.xlu0 %1741
      %1743 = vrot.lane.b32.xlu0 %v1740, 32
      %v1744 = vpop.permute.xlu0 %1743
      %vm1745 = vcmask 261120
      %v1746 = vsel %vm1745, %v1742, %v1744
      %v1750 = vmul.f32 %v1733, %v1742
      %v1751 = vmul.f32 %v1734, %v1746
      %v1752 = vmul.f32 %v1735, %v1744
      %1756 = vrot.lane.b32.xlu0 %v1750, 96
      %v1757 = vpop.permute.xlu0 %1756
      %1758 = vrot.lane.b32.xlu0 %v1751, 96
      %v1759 = vpop.permute.xlu0 %1758
      %1760 = vrot.lane.b32.xlu0 %v1752, 96
      %v1761 = vpop.permute.xlu0 %1760
      %v1762 = vsel %vm1571, %v1757, %v1759
      %v1763 = vsel %vm1571, %v1759, %v1761
      %1766 = vst [vmem:[#allocation3 + $0x30] sm:$0xff] %v1762
      %1767 = vst [vmem:[#allocation3 + $0x38] sm:$0xff] %v1763
      %v1768 = vld [vmem:[#allocation2] sm:$0xff]
      %v1769 = vld [vmem:[#allocation2 + $0x8] sm:$0xff]
      %v1770 = vld [vmem:[#allocation2 + $0x10] sm:$0xff]
      %s1771 = scalar_lea.vmem %s10, 4
      %v1772 = vld [vmem:[%s1771] ss:$8 sm:$0x3]
      %v1774 = vperm.slane %v1772, 0
      %v1775 = vperm.slane %v1772, 1
      %1776 = vrot.lane.b32.xlu0 %v1774, 34
      %v1777 = vpop.permute.xlu0 %1776
      %1778 = vrot.lane.b32.xlu0 %v1775, 34
      %v1779 = vpop.permute.xlu0 %1778
      %v1780 = vsel %vm554, %v1777, %v1779
      %v1784 = vmul.f32 %v1768, %v1777
      %v1785 = vmul.f32 %v1769, %v1780
      %v1786 = vmul.f32 %v1770, %v1779
      %1790 = vrot.lane.b32.xlu0 %v1784, 94
      %v1791 = vpop.permute.xlu0 %1790
      %1792 = vrot.lane.b32.xlu0 %v1785, 94
      %v1793 = vpop.permute.xlu0 %1792
      %1794 = vrot.lane.b32.xlu0 %v1786, 94
      %v1795 = vpop.permute.xlu0 %1794
      %v1796 = vsel %vm741, %v1791, %v1793
      %v1797 = vsel %vm741, %v1793, %v1795
      %1800 = vst [vmem:[#allocation3 + $0x40] sm:$0xff] %v1796
      %1801 = vst [vmem:[#allocation3 + $0x48] sm:$0xff] %v1797
      %v1802 = vld [vmem:[#allocation2] sm:$0xff]
      %v1803 = vld [vmem:[#allocation2 + $0x8] sm:$0xff]
      %v1804 = vld [vmem:[#allocation2 + $0x10] sm:$0xff]
      %s1805 = scalar_lea.vmem %s10, 5
      %v1806 = vld [vmem:[%s1805] ss:$8 sm:$0x3]
      %v1808 = vperm.slane %v1806, 0
      %v1809 = vperm.slane %v1806, 1
      %1810 = vrot.lane.b32.xlu0 %v1808, 36
      %v1811 = vpop.permute.xlu0 %1810
      %1812 = vrot.lane.b32.xlu0 %v1809, 36
      %v1813 = vpop.permute.xlu0 %1812
      %v1814 = vsel %vm921, %v1811, %v1813
      %v1818 = vmul.f32 %v1802, %v1811
      %v1819 = vmul.f32 %v1803, %v1814
      %v1820 = vmul.f32 %v1804, %v1813
      %1824 = vrot.lane.b32.xlu0 %v1818, 92
      %v1825 = vpop.permute.xlu0 %1824
      %1826 = vrot.lane.b32.xlu0 %v1819, 92
      %v1827 = vpop.permute.xlu0 %1826
      %1828 = vrot.lane.b32.xlu0 %v1820, 92
      %v1829 = vpop.permute.xlu0 %1828
      %vm1830 = vcmask 752640
      %v1831 = vsel %vm1830, %v1825, %v1827
      %v1832 = vsel %vm1830, %v1827, %v1829
      %1835 = vst [vmem:[#allocation3 + $0x50] sm:$0xff] %v1831
      %1836 = vst [vmem:[#allocation3 + $0x58] sm:$0xff] %v1832
      %v1837 = vld [vmem:[#allocation2] sm:$0xff]
      %v1838 = vld [vmem:[#allocation2 + $0x8] sm:$0xff]
      %v1839 = vld [vmem:[#allocation2 + $0x10] sm:$0xff]
      %s1840 = scalar_lea.vmem %s10, 6
      %v1841 = vld [vmem:[%s1840] ss:$8 sm:$0x3]
      %v1843 = vperm.slane %v1841, 0
      %v1844 = vperm.slane %v1841, 1
      %1845 = vrot.lane.b32.xlu0 %v1843, 64
      %v1846 = vpop.permute.xlu0 %1845
      %1847 = vrot.lane.b32.xlu0 %v1844, 64
      %v1848 = vpop.permute.xlu0 %1847
      %vm1849 = vcmask 523264
      %v1850 = vsel %vm1849, %v1846, %v1848
      %v1854 = vmul.f32 %v1837, %v1846
      %v1855 = vmul.f32 %v1838, %v1850
      %v1856 = vmul.f32 %v1839, %v1848
      %1860 = vrot.lane.b32.xlu0 %v1854, 64
      %v1861 = vpop.permute.xlu0 %1860
      %1862 = vrot.lane.b32.xlu0 %v1855, 64
      %v1863 = vpop.permute.xlu0 %1862
      %1864 = vrot.lane.b32.xlu0 %v1856, 64
      %v1865 = vpop.permute.xlu0 %1864
      %v1866 = vsel %vm1849, %v1861, %v1863
      %v1867 = vsel %vm1849, %v1863, %v1865
      %1870 = vst [vmem:[#allocation3 + $0x60] sm:$0xff] %v1866
      %1871 = vst [vmem:[#allocation3 + $0x68] sm:$0xff] %v1867
      %v1872 = vld [vmem:[#allocation2] sm:$0xff]
      %v1873 = vld [vmem:[#allocation2 + $0x8] sm:$0xff]
      %v1874 = vld [vmem:[#allocation2 + $0x10] sm:$0xff]
      %s1875 = scalar_lea.vmem %s10, 7
      %v1876 = vld [vmem:[%s1875] ss:$8 sm:$0x3]
      %v1878 = vperm.slane %v1876, 0
      %v1879 = vperm.slane %v1876, 1
      %1880 = vrot.lane.b32.xlu0 %v1878, 66
      %v1881 = vpop.permute.xlu0 %1880
      %1882 = vrot.lane.b32.xlu0 %v1879, 66
      %v1883 = vpop.permute.xlu0 %1882
      %v1884 = vsel %vm1554, %v1881, %v1883
      %v1888 = vmul.f32 %v1872, %v1881
      %v1889 = vmul.f32 %v1873, %v1884
      %v1890 = vmul.f32 %v1874, %v1883
      %1894 = vrot.lane.b32.xlu0 %v1888, 62
      %v1895 = vpop.permute.xlu0 %1894
      %1896 = vrot.lane.b32.xlu0 %v1889, 62
      %v1897 = vpop.permute.xlu0 %1896
      %1898 = vrot.lane.b32.xlu0 %v1890, 62
      %v1899 = vpop.permute.xlu0 %1898
      %vm1900 = vcmask 506880
      %v1901 = vsel %vm1900, %v1895, %v1897
      %v1902 = vsel %vm1900, %v1897, %v1899
      %1905 = vst [vmem:[#allocation3 + $0x70] sm:$0xff] %v1901
      %1906 = vst [vmem:[#allocation3 + $0x78] sm:$0xff] %v1902
      %v1907 = vld [vmem:[#allocation2] sm:$0xff]
      %v1908 = vld [vmem:[#allocation2 + $0x8] sm:$0xff]
      %v1909 = vld [vmem:[#allocation2 + $0x10] sm:$0xff]
      %s1910 = scalar_lea.vmem %s10, 16
      %v1911 = vld [vmem:[%s1910] ss:$8 sm:$0x3]
      %v1913 = vperm.slane %v1911, 0
      %v1914 = vperm.slane %v1911, 1
      %1915 = vrot.lane.b32.xlu0 %v1913, 68
      %v1916 = vpop.permute.xlu0 %1915
      %1917 = vrot.lane.b32.xlu0 %v1914, 68
      %v1918 = vpop.permute.xlu0 %1917
      %v1919 = vsel %vm540, %v1916, %v1918
      %v1923 = vmul.f32 %v1907, %v1916
      %v1924 = vmul.f32 %v1908, %v1919
      %v1925 = vmul.f32 %v1909, %v1918
      %1929 = vrot.lane.b32.xlu0 %v1923, 60
      %v1930 = vpop.permute.xlu0 %1929
      %1931 = vrot.lane.b32.xlu0 %v1924, 60
      %v1932 = vpop.permute.xlu0 %1931
      %1933 = vrot.lane.b32.xlu0 %v1925, 60
      %v1934 = vpop.permute.xlu0 %1933
      %vm1935 = vcmask 490496
      %v1936 = vsel %vm1935, %v1930, %v1932
      %v1937 = vsel %vm1935, %v1932, %v1934
      %1940 = vst [vmem:[#allocation3 + $0x80] sm:$0xff] %v1936
      %1941 = vst [vmem:[#allocation3 + $0x88] sm:$0xff] %v1937
      %v1942 = vld [vmem:[#allocation3] sm:$0xff]
      %v1943 = vld [vmem:[#allocation3 + $0x8] sm:$0xff]
      %v1944 = vld [vmem:[#allocation3 + $0x10] sm:$0xff]
      %v1945 = vld [vmem:[#allocation3 + $0x18] sm:$0xff]
      %v1946 = vld [vmem:[#allocation3 + $0x20] sm:$0xff]
      %v1947 = vld [vmem:[#allocation3 + $0x28] sm:$0xff]
      %v1948 = vld [vmem:[#allocation3 + $0x30] sm:$0xff]
      %v1949 = vld [vmem:[#allocation3 + $0x38] sm:$0xff]
      %v1950 = vld [vmem:[#allocation3 + $0x40] sm:$0xff]
      %v1951 = vld [vmem:[#allocation3 + $0x48] sm:$0xff]
      %v1952 = vld [vmem:[#allocation3 + $0x50] sm:$0xff]
      %v1953 = vld [vmem:[#allocation3 + $0x58] sm:$0xff]
      %v1954 = vld [vmem:[#allocation3 + $0x60] sm:$0xff]
      %v1955 = vld [vmem:[#allocation3 + $0x68] sm:$0xff]
      %v1956 = vld [vmem:[#allocation3 + $0x70] sm:$0xff]
      %v1957 = vld [vmem:[#allocation3 + $0x78] sm:$0xff]
      %v1958 = vld [vmem:[#allocation3 + $0x80] sm:$0xff]
      %v1959 = vld [vmem:[#allocation3 + $0x88] sm:$0xff]
      %v1960 = vpack.c.bf16 %v1944, %v1942
      %v1961 = vpack.c.bf16 %v1945, %v1943
      %v1962 = vpack.c.bf16 %v1948, %v1946
      %v1963 = vpack.c.bf16 %v1949, %v1947
      %v1964 = vpack.c.bf16 %v1952, %v1950
      %v1965 = vpack.c.bf16 %v1953, %v1951
      %v1966 = vpack.c.bf16 %v1956, %v1954
      %v1967 = vpack.c.bf16 %v1957, %v1955
      %v1968 = vpack.c.bf16 %v1958, %v1958
      %v1969 = vpack.c.bf16 %v1959, %v1959
      %v1970 = vld [vmem:[%s3] sm:$0xf]
      %v1971 = vld [vmem:[%s3 + $0x4] sm:$0xf]
      %v1972 = vld [vmem:[%s7] sm:$0xff]
      %v1973 = vld [vmem:[%s7 + $0x8] sm:$0xff]
      %1975 = vset.pattern.permute.xlu0 0
      %1976 = vperm.xlu0 %1975, %v1972
      %v1977 = vpop.permute.xlu0 %1976
      %1980 = vset.pattern.permute.xlu0 0
      %1981 = vperm.xlu0 %1980, %v1973
      %v1982 = vpop.permute.xlu0 %1981
      %v1986 = vunpack.c.l.b16 %v1970
      %v1987 = vunpack.c.l.b16 %v1971
      %v1988 = vpack.c.b16 %v1987, %v1986
      %v1990 = vsel %vm1306, %v1988, 0
      %v1993 = vsel %vm1310, %v1968, 0
      %v1996 = vsel %vm1310, %v1969, 0
      %1998 = vmatpush.bf16.msra.mxu0 0
      %1999 = vmatpush.bf16.msra.mxu0 0
      %2000 = vmatpush.bf16.msra.mxu0 0
      %2001 = vmatpush.bf16.msra.mxu0 %v1993
      %2002 = vmatpush.bf16.msra.mxu0 %v1966
      %2003 = vmatpush.bf16.msra.mxu0 %v1964
      %2004 = vmatpush.bf16.msra.mxu0 %v1962
      %2005 = vmatpush.bf16.msra.mxu0 %v1960
      %2006 = vmatmul.bf16.gmra.mxu0 %v1990
      %v2007 = vpop.f32.mrf.mxu0
      %v2008 = vadd.f32 %v1977, %v2007
      %v2009 = vpop.f32.mrf.mxu0
      %v2010 = vadd.f32 %v1982, %v2009
      %2011 = vdwg.mxu0
      %2012 = vmatpush.bf16.msra.mxu0 0
      %2013 = vmatpush.bf16.msra.mxu0 0
      %2014 = vmatpush.bf16.msra.mxu0 0
      %2015 = vmatpush.bf16.msra.mxu0 %v1996
      %2016 = vmatpush.bf16.msra.mxu0 %v1967
      %2017 = vmatpush.bf16.msra.mxu0 %v1965
      %2018 = vmatpush.bf16.msra.mxu0 %v1963
      %2019 = vmatpush.bf16.msra.mxu0 %v1961
      %2020 = vmatmul.bf16.gmra.mxu0 %v1990
      %v2021 = vpop.f32.mrf.mxu0
      %v2022 = vadd.f32 %v1977, %v2021
      %v2023 = vpop.f32.mrf.mxu0
      %v2024 = vadd.f32 %v1982, %v2023
      %2025 = vdwg.mxu0
      %v2026 = vmax.f32 %v2008, 0.0
      %v2027 = vmax.f32 %v2022, 0.0
      %v2028 = vmax.f32 %v2010, 0.0
      %v2029 = vmax.f32 %v2024, 0.0
      %2034 = vrot.lane.b32.xlu0 %v2026, 34
      %v2035 = vpop.permute.xlu0 %2034
      %2036 = vrot.lane.b32.xlu0 %v2027, 34
      %v2037 = vpop.permute.xlu0 %2036
      %2038 = vrot.lane.b32.xlu0 %v2028, 34
      %v2039 = vpop.permute.xlu0 %2038
      %2040 = vrot.lane.b32.xlu0 %v2029, 34
      %v2041 = vpop.permute.xlu0 %2040
      %v2042 = vsel %vm554, %v2035, %v2037
      %v2043 = vsel %vm554, %v2039, %v2041
      %2050 = vst.msk [vmem:[#allocation2] sm:$0xff] %vm970, %v2035
      %2051 = vst [vmem:[#allocation2 + $0x8] sm:$0xff] %v2042
      %2052 = vst.msk [vmem:[#allocation2 + $0x10] sm:$0xff] %vm554, %v2037
      %2053 = vst.msk [vmem:[#allocation2 + $0x18] sm:$0xff] %vm970, %v2039
      %2054 = vst [vmem:[#allocation2 + $0x20] sm:$0xff] %v2043
      %2055 = vst.msk [vmem:[#allocation2 + $0x28] sm:$0xff] %vm554, %v2041
      %v2056 = vld [vmem:[#allocation2] sm:$0xff]
      %v2057 = vld [vmem:[#allocation2 + $0x8] sm:$0xff]
      %v2058 = vld [vmem:[#allocation2 + $0x18] sm:$0xff]
      %v2059 = vld [vmem:[#allocation2 + $0x20] sm:$0xff]
      %v2060 = vld [vmem:[%s10] ss:$8 sm:$0x3]
      %v2062 = vperm.slane %v2060, 0
      %v2063 = vperm.slane %v2060, 1
      %v2066 = vmul.f32 %v2056, %v2062
      %v2067 = vmul.f32 %v2057, %v2063
      %v2068 = vmul.f32 %v2058, %v2062
      %v2069 = vmul.f32 %v2059, %v2063
      %2070 = vst [vmem:[#allocation3] sm:$0xff] %v2066
      %2071 = vst [vmem:[#allocation3 + $0x8] sm:$0xff] %v2067
      %2072 = vst [vmem:[#allocation3 + $0x10] sm:$0xff] %v2068
      %2073 = vst [vmem:[#allocation3 + $0x18] sm:$0xff] %v2069
      %v2074 = vld [vmem:[#allocation2] sm:$0xff]
      %v2075 = vld [vmem:[#allocation2 + $0x8] sm:$0xff]
      %v2076 = vld [vmem:[#allocation2 + $0x10] sm:$0xff]
      %v2077 = vld [vmem:[#allocation2 + $0x18] sm:$0xff]
      %v2078 = vld [vmem:[#allocation2 + $0x20] sm:$0xff]
      %v2079 = vld [vmem:[#allocation2 + $0x28] sm:$0xff]
      %v2080 = vld [vmem:[%s1665] ss:$8 sm:$0x3]
      %v2082 = vperm.slane %v2080, 0
      %v2083 = vperm.slane %v2080, 1
      %2084 = vrot.lane.b32.xlu0 %v2082, 2
      %v2085 = vpop.permute.xlu0 %2084
      %2086 = vrot.lane.b32.xlu0 %v2083, 2
      %v2087 = vpop.permute.xlu0 %2086
      %v2088 = vsel %vm1674, %v2085, %v2087
      %v2092 = vmul.f32 %v2074, %v2085
      %v2093 = vmul.f32 %v2075, %v2088
      %v2094 = vmul.f32 %v2076, %v2087
      %v2095 = vmul.f32 %v2077, %v2085
      %v2096 = vmul.f32 %v2078, %v2088
      %v2097 = vmul.f32 %v2079, %v2087
      %2104 = vrot.lane.b32.xlu0 %v2092, 126
      %v2105 = vpop.permute.xlu0 %2104
      %2106 = vrot.lane.b32.xlu0 %v2093, 126
      %v2107 = vpop.permute.xlu0 %2106
      %2108 = vrot.lane.b32.xlu0 %v2094, 126
      %v2109 = vpop.permute.xlu0 %2108
      %2110 = vrot.lane.b32.xlu0 %v2095, 126
      %v2111 = vpop.permute.xlu0 %2110
      %2112 = vrot.lane.b32.xlu0 %v2096, 126
      %v2113 = vpop.permute.xlu0 %2112
      %2114 = vrot.lane.b32.xlu0 %v2097, 126
      %v2115 = vpop.permute.xlu0 %2114
      %v2116 = vsel %vm1435, %v2105, %v2107
      %v2117 = vsel %vm1435, %v2107, %v2109
      %v2118 = vsel %vm1435, %v2111, %v2113
      %v2119 = vsel %vm1435, %v2113, %v2115
      %2124 = vst [vmem:[#allocation3 + $0x20] sm:$0xff] %v2116
      %2125 = vst [vmem:[#allocation3 + $0x28] sm:$0xff] %v2117
      %2126 = vst [vmem:[#allocation3 + $0x30] sm:$0xff] %v2118
      %2127 = vst [vmem:[#allocation3 + $0x38] sm:$0xff] %v2119
      %v2128 = vld [vmem:[#allocation2] sm:$0xff]
      %v2129 = vld [vmem:[#allocation2 + $0x8] sm:$0xff]
      %v2130 = vld [vmem:[#allocation2 + $0x10] sm:$0xff]
      %v2131 = vld [vmem:[#allocation2 + $0x18] sm:$0xff]
      %v2132 = vld [vmem:[#allocation2 + $0x20] sm:$0xff]
      %v2133 = vld [vmem:[#allocation2 + $0x28] sm:$0xff]
      %v2134 = vld [vmem:[%s1700] ss:$8 sm:$0x3]
      %v2136 = vperm.slane %v2134, 0
      %v2137 = vperm.slane %v2134, 1
      %2138 = vrot.lane.b32.xlu0 %v2136, 4
      %v2139 = vpop.permute.xlu0 %2138
      %2140 = vrot.lane.b32.xlu0 %v2137, 4
      %v2141 = vpop.permute.xlu0 %2140
      %v2142 = vsel %vm1709, %v2139, %v2141
      %v2146 = vmul.f32 %v2128, %v2139
      %v2147 = vmul.f32 %v2129, %v2142
      %v2148 = vmul.f32 %v2130, %v2141
      %v2149 = vmul.f32 %v2131, %v2139
      %v2150 = vmul.f32 %v2132, %v2142
      %v2151 = vmul.f32 %v2133, %v2141
      %2158 = vrot.lane.b32.xlu0 %v2146, 124
      %v2159 = vpop.permute.xlu0 %2158
      %2160 = vrot.lane.b32.xlu0 %v2147, 124
      %v2161 = vpop.permute.xlu0 %2160
      %2162 = vrot.lane.b32.xlu0 %v2148, 124
      %v2163 = vpop.permute.xlu0 %2162
      %2164 = vrot.lane.b32.xlu0 %v2149, 124
      %v2165 = vpop.permute.xlu0 %2164
      %2166 = vrot.lane.b32.xlu0 %v2150, 124
      %v2167 = vpop.permute.xlu0 %2166
      %2168 = vrot.lane.b32.xlu0 %v2151, 124
      %v2169 = vpop.permute.xlu0 %2168
      %v2170 = vsel %vm1726, %v2159, %v2161
      %v2171 = vsel %vm1726, %v2161, %v2163
      %v2172 = vsel %vm1726, %v2165, %v2167
      %v2173 = vsel %vm1726, %v2167, %v2169
      %2178 = vst [vmem:[#allocation3 + $0x40] sm:$0xff] %v2170
      %2179 = vst [vmem:[#allocation3 + $0x48] sm:$0xff] %v2171
      %2180 = vst [vmem:[#allocation3 + $0x50] sm:$0xff] %v2172
      %2181 = vst [vmem:[#allocation3 + $0x58] sm:$0xff] %v2173
      %v2182 = vld [vmem:[#allocation2] sm:$0xff]
      %v2183 = vld [vmem:[#allocation2 + $0x8] sm:$0xff]
      %v2184 = vld [vmem:[#allocation2 + $0x10] sm:$0xff]
      %v2185 = vld [vmem:[#allocation2 + $0x18] sm:$0xff]
      %v2186 = vld [vmem:[#allocation2 + $0x20] sm:$0xff]
      %v2187 = vld [vmem:[#allocation2 + $0x28] sm:$0xff]
      %v2188 = vld [vmem:[%s1736] ss:$8 sm:$0x3]
      %v2190 = vperm.slane %v2188, 0
      %v2191 = vperm.slane %v2188, 1
      %2192 = vrot.lane.b32.xlu0 %v2190, 32
      %v2193 = vpop.permute.xlu0 %2192
      %2194 = vrot.lane.b32.xlu0 %v2191, 32
      %v2195 = vpop.permute.xlu0 %2194
      %v2196 = vsel %vm1745, %v2193, %v2195
      %v2200 = vmul.f32 %v2182, %v2193
      %v2201 = vmul.f32 %v2183, %v2196
      %v2202 = vmul.f32 %v2184, %v2195
      %v2203 = vmul.f32 %v2185, %v2193
      %v2204 = vmul.f32 %v2186, %v2196
      %v2205 = vmul.f32 %v2187, %v2195
      %2212 = vrot.lane.b32.xlu0 %v2200, 96
      %v2213 = vpop.permute.xlu0 %2212
      %2214 = vrot.lane.b32.xlu0 %v2201, 96
      %v2215 = vpop.permute.xlu0 %2214
      %2216 = vrot.lane.b32.xlu0 %v2202, 96
      %v2217 = vpop.permute.xlu0 %2216
      %2218 = vrot.lane.b32.xlu0 %v2203, 96
      %v2219 = vpop.permute.xlu0 %2218
      %2220 = vrot.lane.b32.xlu0 %v2204, 96
      %v2221 = vpop.permute.xlu0 %2220
      %2222 = vrot.lane.b32.xlu0 %v2205, 96
      %v2223 = vpop.permute.xlu0 %2222
      %v2224 = vsel %vm1571, %v2213, %v2215
      %v2225 = vsel %vm1571, %v2215, %v2217
      %v2226 = vsel %vm1571, %v2219, %v2221
      %v2227 = vsel %vm1571, %v2221, %v2223
      %2232 = vst [vmem:[#allocation3 + $0x60] sm:$0xff] %v2224
      %2233 = vst [vmem:[#allocation3 + $0x68] sm:$0xff] %v2225
      %2234 = vst [vmem:[#allocation3 + $0x70] sm:$0xff] %v2226
      %2235 = vst [vmem:[#allocation3 + $0x78] sm:$0xff] %v2227
      %v2236 = vld [vmem:[#allocation2] sm:$0xff]
      %v2237 = vld [vmem:[#allocation2 + $0x8] sm:$0xff]
      %v2238 = vld [vmem:[#allocation2 + $0x10] sm:$0xff]
      %v2239 = vld [vmem:[#allocation2 + $0x18] sm:$0xff]
      %v2240 = vld [vmem:[#allocation2 + $0x20] sm:$0xff]
      %v2241 = vld [vmem:[#allocation2 + $0x28] sm:$0xff]
      %v2242 = vld [vmem:[%s1771] ss:$8 sm:$0x3]
      %v2244 = vperm.slane %v2242, 0
      %v2245 = vperm.slane %v2242, 1
      %2246 = vrot.lane.b32.xlu0 %v2244, 34
      %v2247 = vpop.permute.xlu0 %2246
      %2248 = vrot.lane.b32.xlu0 %v2245, 34
      %v2249 = vpop.permute.xlu0 %2248
      %v2250 = vsel %vm554, %v2247, %v2249
      %v2254 = vmul.f32 %v2236, %v2247
      %v2255 = vmul.f32 %v2237, %v2250
      %v2256 = vmul.f32 %v2238, %v2249
      %v2257 = vmul.f32 %v2239, %v2247
      %v2258 = vmul.f32 %v2240, %v2250
      %v2259 = vmul.f32 %v2241, %v2249
      %2266 = vrot.lane.b32.xlu0 %v2254, 94
      %v2267 = vpop.permute.xlu0 %2266
      %2268 = vrot.lane.b32.xlu0 %v2255, 94
      %v2269 = vpop.permute.xlu0 %2268
      %2270 = vrot.lane.b32.xlu0 %v2256, 94
      %v2271 = vpop.permute.xlu0 %2270
      %2272 = vrot.lane.b32.xlu0 %v2257, 94
      %v2273 = vpop.permute.xlu0 %2272
      %2274 = vrot.lane.b32.xlu0 %v2258, 94
      %v2275 = vpop.permute.xlu0 %2274
      %2276 = vrot.lane.b32.xlu0 %v2259, 94
      %v2277 = vpop.permute.xlu0 %2276
      %v2278 = vsel %vm741, %v2267, %v2269
      %v2279 = vsel %vm741, %v2269, %v2271
      %v2280 = vsel %vm741, %v2273, %v2275
      %v2281 = vsel %vm741, %v2275, %v2277
      %2286 = vst [vmem:[#allocation3 + $0x80] sm:$0xff] %v2278
      %2287 = vst [vmem:[#allocation3 + $0x88] sm:$0xff] %v2279
      %2288 = vst [vmem:[#allocation3 + $0x90] sm:$0xff] %v2280
      %2289 = vst [vmem:[#allocation3 + $0x98] sm:$0xff] %v2281
      %v2290 = vld [vmem:[#allocation2] sm:$0xff]
      %v2291 = vld [vmem:[#allocation2 + $0x8] sm:$0xff]
      %v2292 = vld [vmem:[#allocation2 + $0x10] sm:$0xff]
      %v2293 = vld [vmem:[#allocation2 + $0x18] sm:$0xff]
      %v2294 = vld [vmem:[#allocation2 + $0x20] sm:$0xff]
      %v2295 = vld [vmem:[#allocation2 + $0x28] sm:$0xff]
      %v2296 = vld [vmem:[%s1805] ss:$8 sm:$0x3]
      %v2298 = vperm.slane %v2296, 0
      %v2299 = vperm.slane %v2296, 1
      %2300 = vrot.lane.b32.xlu0 %v2298, 36
      %v2301 = vpop.permute.xlu0 %2300
      %2302 = vrot.lane.b32.xlu0 %v2299, 36
      %v2303 = vpop.permute.xlu0 %2302
      %v2304 = vsel %vm921, %v2301, %v2303
      %v2308 = vmul.f32 %v2290, %v2301
      %v2309 = vmul.f32 %v2291, %v2304
      %v2310 = vmul.f32 %v2292, %v2303
      %v2311 = vmul.f32 %v2293, %v2301
      %v2312 = vmul.f32 %v2294, %v2304
      %v2313 = vmul.f32 %v2295, %v2303
      %2320 = vrot.lane.b32.xlu0 %v2308, 92
      %v2321 = vpop.permute.xlu0 %2320
      %2322 = vrot.lane.b32.xlu0 %v2309, 92
      %v2323 = vpop.permute.xlu0 %2322
      %2324 = vrot.lane.b32.xlu0 %v2310, 92
      %v2325 = vpop.permute.xlu0 %2324
      %2326 = vrot.lane.b32.xlu0 %v2311, 92
      %v2327 = vpop.permute.xlu0 %2326
      %2328 = vrot.lane.b32.xlu0 %v2312, 92
      %v2329 = vpop.permute.xlu0 %2328
      %2330 = vrot.lane.b32.xlu0 %v2313, 92
      %v2331 = vpop.permute.xlu0 %2330
      %v2332 = vsel %vm1830, %v2321, %v2323
      %v2333 = vsel %vm1830, %v2323, %v2325
      %v2334 = vsel %vm1830, %v2327, %v2329
      %v2335 = vsel %vm1830, %v2329, %v2331
      %2340 = vst [vmem:[#allocation3 + $0xa0] sm:$0xff] %v2332
      %2341 = vst [vmem:[#allocation3 + $0xa8] sm:$0xff] %v2333
      %2342 = vst [vmem:[#allocation3 + $0xb0] sm:$0xff] %v2334
      %2343 = vst [vmem:[#allocation3 + $0xb8] sm:$0xff] %v2335
      %v2344 = vld [vmem:[#allocation2] sm:$0xff]
      %v2345 = vld [vmem:[#allocation2 + $0x8] sm:$0xff]
      %v2346 = vld [vmem:[#allocation2 + $0x10] sm:$0xff]
      %v2347 = vld [vmem:[#allocation2 + $0x18] sm:$0xff]
      %v2348 = vld [vmem:[#allocation2 + $0x20] sm:$0xff]
      %v2349 = vld [vmem:[#allocation2 + $0x28] sm:$0xff]
      %v2350 = vld [vmem:[%s1840] ss:$8 sm:$0x3]
      %v2352 = vperm.slane %v2350, 0
      %v2353 = vperm.slane %v2350, 1
      %2354 = vrot.lane.b32.xlu0 %v2352, 64
      %v2355 = vpop.permute.xlu0 %2354
      %2356 = vrot.lane.b32.xlu0 %v2353, 64
      %v2357 = vpop.permute.xlu0 %2356
      %v2358 = vsel %vm1849, %v2355, %v2357
      %v2362 = vmul.f32 %v2344, %v2355
      %v2363 = vmul.f32 %v2345, %v2358
      %v2364 = vmul.f32 %v2346, %v2357
      %v2365 = vmul.f32 %v2347, %v2355
      %v2366 = vmul.f32 %v2348, %v2358
      %v2367 = vmul.f32 %v2349, %v2357
      %2374 = vrot.lane.b32.xlu0 %v2362, 64
      %v2375 = vpop.permute.xlu0 %2374
      %2376 = vrot.lane.b32.xlu0 %v2363, 64
      %v2377 = vpop.permute.xlu0 %2376
      %2378 = vrot.lane.b32.xlu0 %v2364, 64
      %v2379 = vpop.permute.xlu0 %2378
      %2380 = vrot.lane.b32.xlu0 %v2365, 64
      %v2381 = vpop.permute.xlu0 %2380
      %2382 = vrot.lane.b32.xlu0 %v2366, 64
      %v2383 = vpop.permute.xlu0 %2382
      %2384 = vrot.lane.b32.xlu0 %v2367, 64
      %v2385 = vpop.permute.xlu0 %2384
      %v2386 = vsel %vm1849, %v2375, %v2377
      %v2387 = vsel %vm1849, %v2377, %v2379
      %v2388 = vsel %vm1849, %v2381, %v2383
      %v2389 = vsel %vm1849, %v2383, %v2385
      %2394 = vst [vmem:[#allocation3 + $0xc0] sm:$0xff] %v2386
      %2395 = vst [vmem:[#allocation3 + $0xc8] sm:$0xff] %v2387
      %2396 = vst [vmem:[#allocation3 + $0xd0] sm:$0xff] %v2388
      %2397 = vst [vmem:[#allocation3 + $0xd8] sm:$0xff] %v2389
      %v2398 = vld [vmem:[#allocation2] sm:$0xff]
      %v2399 = vld [vmem:[#allocation2 + $0x8] sm:$0xff]
      %v2400 = vld [vmem:[#allocation2 + $0x10] sm:$0xff]
      %v2401 = vld [vmem:[#allocation2 + $0x18] sm:$0xff]
      %v2402 = vld [vmem:[#allocation2 + $0x20] sm:$0xff]
      %v2403 = vld [vmem:[#allocation2 + $0x28] sm:$0xff]
      %v2404 = vld [vmem:[%s1875] ss:$8 sm:$0x3]
      %v2406 = vperm.slane %v2404, 0
      %v2407 = vperm.slane %v2404, 1
      %2408 = vrot.lane.b32.xlu0 %v2406, 66
      %v2409 = vpop.permute.xlu0 %2408
      %2410 = vrot.lane.b32.xlu0 %v2407, 66
      %v2411 = vpop.permute.xlu0 %2410
      %v2412 = vsel %vm1554, %v2409, %v2411
      %v2416 = vmul.f32 %v2398, %v2409
      %v2417 = vmul.f32 %v2399, %v2412
      %v2418 = vmul.f32 %v2400, %v2411
      %v2419 = vmul.f32 %v2401, %v2409
      %v2420 = vmul.f32 %v2402, %v2412
      %v2421 = vmul.f32 %v2403, %v2411
      %2428 = vrot.lane.b32.xlu0 %v2416, 62
      %v2429 = vpop.permute.xlu0 %2428
      %2430 = vrot.lane.b32.xlu0 %v2417, 62
      %v2431 = vpop.permute.xlu0 %2430
      %2432 = vrot.lane.b32.xlu0 %v2418, 62
      %v2433 = vpop.permute.xlu0 %2432
      %2434 = vrot.lane.b32.xlu0 %v2419, 62
      %v2435 = vpop.permute.xlu0 %2434
      %2436 = vrot.lane.b32.xlu0 %v2420, 62
      %v2437 = vpop.permute.xlu0 %2436
      %2438 = vrot.lane.b32.xlu0 %v2421, 62
      %v2439 = vpop.permute.xlu0 %2438
      %v2440 = vsel %vm1900, %v2429, %v2431
      %v2441 = vsel %vm1900, %v2431, %v2433
      %v2442 = vsel %vm1900, %v2435, %v2437
      %v2443 = vsel %vm1900, %v2437, %v2439
      %2448 = vst [vmem:[#allocation3 + $0xe0] sm:$0xff] %v2440
      %2449 = vst [vmem:[#allocation3 + $0xe8] sm:$0xff] %v2441
      %2450 = vst [vmem:[#allocation3 + $0xf0] sm:$0xff] %v2442
      %2451 = vst [vmem:[#allocation3 + $0xf8] sm:$0xff] %v2443
      %v2452 = vld [vmem:[#allocation2] sm:$0xff]
      %v2453 = vld [vmem:[#allocation2 + $0x8] sm:$0xff]
      %v2454 = vld [vmem:[#allocation2 + $0x10] sm:$0xff]
      %v2455 = vld [vmem:[#allocation2 + $0x18] sm:$0xff]
      %v2456 = vld [vmem:[#allocation2 + $0x20] sm:$0xff]
      %v2457 = vld [vmem:[#allocation2 + $0x28] sm:$0xff]
      %v2458 = vld [vmem:[%s1910] ss:$8 sm:$0x3]
      %v2460 = vperm.slane %v2458, 0
      %v2461 = vperm.slane %v2458, 1
      %2462 = vrot.lane.b32.xlu0 %v2460, 68
      %v2463 = vpop.permute.xlu0 %2462
      %2464 = vrot.lane.b32.xlu0 %v2461, 68
      %v2465 = vpop.permute.xlu0 %2464
      %v2466 = vsel %vm540, %v2463, %v2465
      %v2470 = vmul.f32 %v2452, %v2463
      %v2471 = vmul.f32 %v2453, %v2466
      %v2472 = vmul.f32 %v2454, %v2465
      %v2473 = vmul.f32 %v2455, %v2463
      %v2474 = vmul.f32 %v2456, %v2466
      %v2475 = vmul.f32 %v2457, %v2465
      %2482 = vrot.lane.b32.xlu0 %v2470, 60
      %v2483 = vpop.permute.xlu0 %2482
      %2484 = vrot.lane.b32.xlu0 %v2471, 60
      %v2485 = vpop.permute.xlu0 %2484
      %2486 = vrot.lane.b32.xlu0 %v2472, 60
      %v2487 = vpop.permute.xlu0 %2486
      %2488 = vrot.lane.b32.xlu0 %v2473, 60
      %v2489 = vpop.permute.xlu0 %2488
      %2490 = vrot.lane.b32.xlu0 %v2474, 60
      %v2491 = vpop.permute.xlu0 %2490
      %2492 = vrot.lane.b32.xlu0 %v2475, 60
      %v2493 = vpop.permute.xlu0 %2492
      %v2494 = vsel %vm1935, %v2483, %v2485
      %v2495 = vsel %vm1935, %v2485, %v2487
      %v2496 = vsel %vm1935, %v2489, %v2491
      %v2497 = vsel %vm1935, %v2491, %v2493
      %2502 = vst [vmem:[#allocation3 + $0x100] sm:$0xff] %v2494
      %2503 = vst [vmem:[#allocation3 + $0x108] sm:$0xff] %v2495
      %2504 = vst [vmem:[#allocation3 + $0x110] sm:$0xff] %v2496
      %2505 = vst [vmem:[#allocation3 + $0x118] sm:$0xff] %v2497
      %v2506 = vld [vmem:[#allocation3] sm:$0xff]
      %v2507 = vld [vmem:[#allocation3 + $0x8] sm:$0xff]
      %v2508 = vld [vmem:[#allocation3 + $0x10] sm:$0xff]
      %v2509 = vld [vmem:[#allocation3 + $0x18] sm:$0xff]
      %v2510 = vld [vmem:[#allocation3 + $0x20] sm:$0xff]
      %v2511 = vld [vmem:[#allocation3 + $0x28] sm:$0xff]
      %v2512 = vld [vmem:[#allocation3 + $0x30] sm:$0xff]
      %v2513 = vld [vmem:[#allocation3 + $0x38] sm:$0xff]
      %v2514 = vld [vmem:[#allocation3 + $0x40] sm:$0xff]
      %v2515 = vld [vmem:[#allocation3 + $0x48] sm:$0xff]
      %v2516 = vld [vmem:[#allocation3 + $0x50] sm:$0xff]
      %v2517 = vld [vmem:[#allocation3 + $0x58] sm:$0xff]
      %v2518 = vld [vmem:[#allocation3 + $0x60] sm:$0xff]
      %v2519 = vld [vmem:[#allocation3 + $0x68] sm:$0xff]
      %v2520 = vld [vmem:[#allocation3 + $0x70] sm:$0xff]
      %v2521 = vld [vmem:[#allocation3 + $0x78] sm:$0xff]
      %v2522 = vld [vmem:[#allocation3 + $0x80] sm:$0xff]
      %v2523 = vld [vmem:[#allocation3 + $0x88] sm:$0xff]
      %v2524 = vld [vmem:[#allocation3 + $0x90] sm:$0xff]
      %v2525 = vld [vmem:[#allocation3 + $0x98] sm:$0xff]
      %v2526 = vld [vmem:[#allocation3 + $0xa0] sm:$0xff]
      %v2527 = vld [vmem:[#allocation3 + $0xa8] sm:$0xff]
      %v2528 = vld [vmem:[#allocation3 + $0xb0] sm:$0xff]
      %v2529 = vld [vmem:[#allocation3 + $0xb8] sm:$0xff]
      %v2530 = vld [vmem:[#allocation3 + $0xc0] sm:$0xff]
      %v2531 = vld [vmem:[#allocation3 + $0xc8] sm:$0xff]
      %v2532 = vld [vmem:[#allocation3 + $0xd0] sm:$0xff]
      %v2533 = vld [vmem:[#allocation3 + $0xd8] sm:$0xff]
      %v2534 = vld [vmem:[#allocation3 + $0xe0] sm:$0xff]
      %v2535 = vld [vmem:[#allocation3 + $0xe8] sm:$0xff]
      %v2536 = vld [vmem:[#allocation3 + $0xf0] sm:$0xff]
      %v2537 = vld [vmem:[#allocation3 + $0xf8] sm:$0xff]
      %v2538 = vld [vmem:[#allocation3 + $0x100] sm:$0xff]
      %v2539 = vld [vmem:[#allocation3 + $0x108] sm:$0xff]
      %v2540 = vld [vmem:[#allocation3 + $0x110] sm:$0xff]
      %v2541 = vld [vmem:[#allocation3 + $0x118] sm:$0xff]
      %v2542 = vpack.c.bf16 %v2508, %v2506
      %v2543 = vpack.c.bf16 %v2509, %v2507
      %v2544 = vpack.c.bf16 %v2512, %v2510
      %v2545 = vpack.c.bf16 %v2513, %v2511
      %v2546 = vpack.c.bf16 %v2516, %v2514
      %v2547 = vpack.c.bf16 %v2517, %v2515
      %v2548 = vpack.c.bf16 %v2520, %v2518
      %v2549 = vpack.c.bf16 %v2521, %v2519
      %v2550 = vpack.c.bf16 %v2524, %v2522
      %v2551 = vpack.c.bf16 %v2525, %v2523
      %v2552 = vpack.c.bf16 %v2528, %v2526
      %v2553 = vpack.c.bf16 %v2529, %v2527
      %v2554 = vpack.c.bf16 %v2532, %v2530
      %v2555 = vpack.c.bf16 %v2533, %v2531
      %v2556 = vpack.c.bf16 %v2536, %v2534
      %v2557 = vpack.c.bf16 %v2537, %v2535
      %v2558 = vpack.c.bf16 %v2540, %v2538
      %v2559 = vpack.c.bf16 %v2541, %v2539
      %v2560 = vld [vmem:[%s4] sm:$0xff]
      %v2561 = vld [vmem:[%s4 + $0x8] sm:$0xff]
      %v2562 = vld [vmem:[%s8] sm:$0xff]
      %v2563 = vld [vmem:[%s8 + $0x8] sm:$0xff]
      %2565 = vset.pattern.permute.xlu0 0
      %2566 = vperm.xlu0 %2565, %v2562
      %v2567 = vpop.permute.xlu0 %2566
      %2570 = vset.pattern.permute.xlu0 0
      %2571 = vperm.xlu0 %2570, %v2563
      %v2572 = vpop.permute.xlu0 %2571
      %v2576 = vunpack.c.l.b16 %v2560
      %v2577 = vunpack.c.h.b16 %v2560
      %v2578 = vunpack.c.l.b16 %v2561
      %v2579 = vunpack.c.h.b16 %v2561
      %v2580 = vpack.c.b16 %v2578, %v2576
      %v2581 = vpack.c.b16 %v2579, %v2577
      %vm2583 = vcmask 130048
      %v2585 = vsel %vm2583, %v2581, 0
      %2587 = vmatpush.bf16.msra.mxu0 %v2556
      %2588 = vmatpush.bf16.msra.mxu0 %v2554
      %2589 = vmatpush.bf16.msra.mxu0 %v2552
      %2590 = vmatpush.bf16.msra.mxu0 %v2550
      %2591 = vmatpush.bf16.msra.mxu0 %v2548
      %2592 = vmatpush.bf16.msra.mxu0 %v2546
      %2593 = vmatpush.bf16.msra.mxu0 %v2544
      %2594 = vmatpush.bf16.msra.mxu0 %v2542
      %2595 = vmatmul.bf16.gmra.mxu0 %v2580
      %v2596 = vpop.f32.mrf.mxu0
      %v2597 = vadd.f32 %v2567, %v2596
      %v2598 = vpop.f32.mrf.mxu0
      %v2599 = vadd.f32 %v2572, %v2598
      %2600 = vdwg.mxu0
      %2601 = vmatpush.bf16.msra.mxu0 0
      %2602 = vmatpush.bf16.msra.mxu0 0
      %2603 = vmatpush.bf16.msra.mxu0 0
      %2604 = vmatpush.bf16.msra.mxu0 0
      %2605 = vmatpush.bf16.msra.mxu0 0
      %2606 = vmatpush.bf16.msra.mxu0 0
      %2607 = vmatpush.bf16.msra.mxu0 0
      %2608 = vmatpush.bf16.msra.mxu0 %v2558
      %2609 = vmatmul.bf16.gmra.mxu0 %v2585
      %v2610 = vpop.f32.mrf.mxu0
      %v2611 = vadd.f32 %v2597, %v2610
      %v2612 = vpop.f32.mrf.mxu0
      %v2613 = vadd.f32 %v2599, %v2612
      %2614 = vdwg.mxu0
      %2615 = vmatpush.bf16.msra.mxu0 %v2557
      %2616 = vmatpush.bf16.msra.mxu0 %v2555
      %2617 = vmatpush.bf16.msra.mxu0 %v2553
      %2618 = vmatpush.bf16.msra.mxu0 %v2551
      %2619 = vmatpush.bf16.msra.mxu0 %v2549
      %2620 = vmatpush.bf16.msra.mxu0 %v2547
      %2621 = vmatpush.bf16.msra.mxu0 %v2545
      %2622 = vmatpush.bf16.msra.mxu0 %v2543
      %2623 = vmatmul.bf16.gmra.mxu0 %v2580
      %v2624 = vpop.f32.mrf.mxu0
      %v2625 = vadd.f32 %v2567, %v2624
      %v2626 = vpop.f32.mrf.mxu0
      %v2627 = vadd.f32 %v2572, %v2626
      %2628 = vdwg.mxu0
      %2629 = vmatpush.bf16.msra.mxu0 0
      %2630 = vmatpush.bf16.msra.mxu0 0
      %2631 = vmatpush.bf16.msra.mxu0 0
      %2632 = vmatpush.bf16.msra.mxu0 0
      %2633 = vmatpush.bf16.msra.mxu0 0
      %2634 = vmatpush.bf16.msra.mxu0 0
      %2635 = vmatpush.bf16.msra.mxu0 0
      %2636 = vmatpush.bf16.msra.mxu0 %v2559
      %2637 = vmatmul.bf16.gmra.mxu0 %v2585
      %v2638 = vpop.f32.mrf.mxu0
      %v2639 = vadd.f32 %v2625, %v2638
      %v2640 = vpop.f32.mrf.mxu0
      %v2641 = vadd.f32 %v2627, %v2640
      %2642 = vdwg.mxu0
      %v2643 = vmax.f32 %v2611, 0.0
      %v2644 = vmax.f32 %v2639, 0.0
      %v2645 = vmax.f32 %v2613, 0.0
      %v2646 = vmax.f32 %v2641, 0.0
      %v2647 = vld [vmem:[%s13] sm:$0xff]
      %v2648 = vld [vmem:[%s13 + $0x8] sm:$0xf]
      %v2650 = vsel %vm2583, %v2647, 0
      %v2653 = vsel %vm2583, %v2648, 0
      %2655 = vmatpush.msra.mxu0 0.0
      %2656 = vmatpush.msra.mxu0 0.0
      %2657 = vmatpush.msra.mxu0 0.0
      %2658 = vmatpush.msra.mxu0 0.0
      %2659 = vmatpush.msra.mxu0 0.0
      %2660 = vmatpush.msra.mxu0 0.0
      %2661 = vmatpush.msra.mxu0 0.0
      %2662 = vmatpush.msra.mxu0 0.0
      %2663 = vmatpush.msra.mxu0 0.0
      %2664 = vmatpush.msra.mxu0 0.0
      %2665 = vmatpush.msra.mxu0 0.0
      %2666 = vmatpush.msra.mxu0 0.0
      %2667 = vmatpush.msra.mxu0 0.0
      %2668 = vmatpush.msra.mxu0 0.0
      %2669 = vmatpush.msra.mxu0 %v2645
      %2670 = vmatpush.msra.mxu0 %v2643
      %2671 = vmatmul.f32.gmra.mxu0 %v2650
      %v2672 = vpop.f32.mrf.mxu0
      %v2673 = vadd.f32 0.0, %v2672
      %2674 = vmatmul.f32.gmra.mxu0 %v2653
      %v2675 = vpop.f32.mrf.mxu0
      %v2676 = vadd.f32 0.0, %v2675
      %2677 = vdwg.mxu0
      %2678 = vmatpush.msra.mxu0 0.0
      %2679 = vmatpush.msra.mxu0 0.0
      %2680 = vmatpush.msra.mxu0 0.0
      %2681 = vmatpush.msra.mxu0 0.0
      %2682 = vmatpush.msra.mxu0 0.0
      %2683 = vmatpush.msra.mxu0 0.0
      %2684 = vmatpush.msra.mxu0 0.0
      %2685 = vmatpush.msra.mxu0 0.0
      %2686 = vmatpush.msra.mxu0 0.0
      %2687 = vmatpush.msra.mxu0 0.0
      %2688 = vmatpush.msra.mxu0 0.0
      %2689 = vmatpush.msra.mxu0 0.0
      %2690 = vmatpush.msra.mxu0 0.0
      %2691 = vmatpush.msra.mxu0 0.0
      %2692 = vmatpush.msra.mxu0 %v2646
      %2693 = vmatpush.msra.mxu0 %v2644
      %2694 = vmatmul.f32.gmra.mxu0 %v2650
      %v2695 = vpop.f32.mrf.mxu0
      %v2696 = vadd.f32 0.0, %v2695
      %2697 = vmatmul.f32.gmra.mxu0 %v2653
      %v2698 = vpop.f32.mrf.mxu0
      %v2699 = vadd.f32 0.0, %v2698
      %2700 = vdwg.mxu0
      %v2701 = vld [vmem:[%s12] sm:$0x3]
      %v2703 = vperm.slane %v2701, 0
      %v2704 = vperm.slane %v2701, 1
      %v2707 = vmul.f32 %v2673, %v2703
      %v2708 = vmul.f32 %v2696, %v2704
      %v2709 = vmul.f32 %v2676, %v2703
      %v2710 = vmul.f32 %v2699, %v2704
      %v2711 = vadd.f32 %v2707, %v2708
      %2712 = vadd.xlane.f32.xlu0 %v2711
      %v2713 = vpop.xlane.xlu0 %2712
      %v2714 = vsel %vm1310, %v2709, 0.0
      %v2715 = vsel %vm1310, %v2710, 0.0
      %v2716 = vadd.f32 %v2714, %v2715
      %2717 = vadd.xlane.f32.xlu0 %v2716
      %v2718 = vpop.xlane.xlu0 %2717
      %v2719 = vld [vmem:[%s14] sm:$0xff]
      %v2720 = vld [vmem:[%s14 + $0x8] sm:$0xf]
      %v2721 = vadd.f32 %v2713, %v2719
      %v2722 = vadd.f32 %v2718, %v2720
      %v2723 = vld [vmem:[%s532] sm:$0x3f]
      %v2724 = vmul.f32 %v2721, 0.5
      %v2725 = vmul.f32 %v2722, 0.5
      %v2726 = vmul.f32 %v2724, 1.442695
      %v2727 = vpow.pop %v2726
      %v2728 = vmul.f32 %v2725, 1.442695
      %v2729 = vpow.pop %v2728
      %v2732 = vrot.slane %v2727, 6
      %v2733 = vrot.slane %v2729, 6
      %v2734 = vsel %vm925, %v2732, %v2733
      %v2736 = vmul.f32 %v2723, %v2734
      %v2737 = vadd.f32 %v2736, %v2721
      %vm2738 = vcmask 5120
      %2739 = vst.msk [vmem:[%s536] sm:$0x3f] %vm2738, %v2737
      %p2740 = scmp.lt.s32.totalorder %s27, 1
      %s2741 = scalar_select %p2740, %s27, 1
      %s2742 = smul.addr %s2741, 8
      %s2743 = scalar_lea.vmem %s16, %s2742
      // Predicated region
      $region85: #{_forward_impl.1} parent=83 // pred_check
        %p2744 = pneg %p391
      $region86: #{_forward_impl.1} parent=83 // pred_check_branch
        %2746 = sbr.rel (%p2744) target = $region88
      $region87: #{_forward_impl.1} parent=83 // pred_region
        _
      $region88: #{_forward_impl.1} parent=83 // pred_fallthru
        _
    $region84: #{_forward_impl.1} parent=5 // pred_fallthru
      _
    %p2747 = scmp.le.s32.totalorder 2, %s22
    // Predicated region
    $region89: #{_forward_impl.1} parent=5 // pred_check
      %p2748 = pneg %p2747
    $region90: #{_forward_impl.1} parent=5 // pred_check_branch
      %2750 = sbr.rel (%p2748) target = $region92
    $region91: #{_forward_impl.1} parent=5 // pred_region
      %s2751 = ssub.s32 %s22, 2
      // Predicated region
      $region93: #{_forward_impl.1} parent=91 // pred_check
        %p2752 = pneg %p397
      $region94: #{_forward_impl.1} parent=91 // pred_check_branch
        %2754 = sbr.rel (%p2752) target = $region96
      $region95: #{_forward_impl.1} parent=91 // pred_region
        %p2755 = scmp.lt.s32.totalorder %s28, 1
        %s2756 = scalar_select %p2755, %s28, 1
        %s2757 = smul.addr %s2756, 8
        %s2758 = scalar_lea.vmem %s16, %s2757
      $region96: #{_forward_impl.1} parent=91 // pred_fallthru
        _
    $region92: #{_forward_impl.1} parent=5 // pred_fallthru
      _
  $region6: #{_forward_impl.1} parent=0 // loop_footer
    %s26 = sadd.s32 1, %s22
  $region7: #{_forward_impl.1} parent=0 // loop_footer_branch
    %21 = sbr.rel target = $region3
  $region8: #{_forward_impl.1} parent=0 // loop_exit
    _

</llo_original>
